<compile_context>
chip_gen: v6e
topology: v6e:2x2x1
jax: 0.10.0
libtpu: 0.0.40
codegen_flags: <defaults>
</compile_context>

<pallas_src>
import functools

import jax
import jax.numpy as jnp
from jax.experimental import pallas as pl
from jax.experimental.pallas import tpu as pltpu

LANE = 128        # vreg lane width
SUBLANE = 8       # f32 sublane count
_MAX_UNROLL = 16  # max timesteps unrolled per grid step (review item 1)

GATE_PERM = (0, 1, 3, 2)  # PyTorch [i, f, g, o] -> kernel [i, f, o, g]


def _round_up(n, m):
    return ((n + m - 1) // m) * m


@functools.lru_cache(maxsize=1)
def _vmem_limit_bytes():
    """Chip-aware VMEM budget (~3/4 of physical, capped)."""
    cap = None
    try:
        cap = getattr(pltpu.get_tpu_info(), "vmem_capacity_bytes", None)
    except Exception:
        cap = None
    if not cap:
        cap = 64 * 1024 * 1024  # conservative fallback (v7x physical)
    return int(min(cap * 3 // 4, 100 * 1024 * 1024))


def _choose_t_chunk(T, Bp, Dp, Hp, n_bufs, fixed_bytes):
    """Pick the deepest unroll that keeps the chunk working set in budget."""
    budget = _vmem_limit_bytes() // 2
    # per-timestep bytes: 2x-buffered bf16 x chunk + f32 gx + f32 layer buffers
    per_t = Bp * (2 * Dp * 2 + 4 * Hp * 4 + n_bufs * Hp * 4)
    t = max(1, min(_MAX_UNROLL, T))
    while t > 1 and fixed_bytes + t * per_t > budget:
        t -= 1
    return t


# ----------------------------------------------------------------------------
# Fused kernel: all LSTM layers + fc head over one T-chunk grid
# ----------------------------------------------------------------------------
def _fused_lstm_fc_kernel(*args, num_layers, t_chunk, b_rows, seq_len):
    """args layout (inputs, outputs, scratch):
        x_ref                                   (t_chunk*Bp, Dp)   bf16
        [w_ih_l, w_hh_l, b_l] * num_layers      bf16 / bf16 / f32
        fc_w_ref, fc_b_ref                      bf16 / f32
        out_ref                                 (Bp, Op)           f32
        gx_ref                                  (t_chunk*Bp, 4Hp)  f32 scratch
        [h_l, c_l] * num_layers                 (Bp, Hp)           f32 scratch
        buf_0[, buf_1]                          (t_chunk*Bp, Hp)   f32 scratch
    """
    x_ref = args[0]
    layer_refs = [(args[1 + 3 * l], args[2 + 3 * l], args[3 + 3 * l])
                  for l in range(num_layers)]
    fc_w_ref = args[1 + 3 * num_layers]
    fc_b_ref = args[2 + 3 * num_layers]
    out_ref = args[3 + 3 * num_layers]
    s0 = 4 + 3 * num_layers
    gx_ref = args[s0]
    h_refs = [args[s0 + 1 + 2 * l] for l in range(num_layers)]
    c_refs = [args[s0 + 2 + 2 * l] for l in range(num_layers)]
    bufs = list(args[s0 + 1 + 2 * num_layers:])

    chunk = pl.program_id(0)
    needs_mask = (seq_len % t_chunk) != 0  # compile-time: ragged last chunk?
    t0 = chunk * t_chunk                   # global time offset of this chunk

    @pl.when(chunk == 0)
    def _():
        for l in range(num_layers):
            h_refs[l][...] = jnp.zeros_like(h_refs[l])
            c_refs[l][...] = jnp.zeros_like(c_refs[l])

    cur_in_ref = x_ref
    for l in range(num_layers):
        w_ih_ref, w_hh_ref, b_ref = layer_refs[l]
        Hp = w_hh_ref.shape[0]
        last_layer = (l == num_layers - 1)
        out_buf_ref = None if last_layer else bufs[l % len(bufs)]

        # Hoisted input projection for the whole chunk: one large bf16 MXU
        # matmul (f32 accumulate), parked in VMEM scratch so it does not sit
        # in vregs across the unrolled recurrence below.
        gx_ref[...] = (
            jnp.dot(cur_in_ref[...].astype(jnp.bfloat16), w_ih_ref[...],
                    preferred_element_type=jnp.float32) + b_ref[...])

        # TODO(synk): if the bundle dump shows W_hh being re-streamed every
        # step, switch to pltpu.matmul_push_rhs / matmul_acc_lhs / matmul_pop
        # to keep it weight-stationary across the unrolled timesteps.
        h = h_refs[l][...]
        c = c_refs[l][...]
        for t in range(t_chunk):  # static unroll: cross-step LLO visibility
            rows = pl.ds(t * b_rows, b_rows)
            gates = gx_ref[rows, :] + jnp.dot(
                h.astype(jnp.bfloat16), w_hh_ref[...],
                preferred_element_type=jnp.float32)
            # gate layout (pre-permuted in wrapper): [i | f | o | g]
            sig = jax.nn.sigmoid(gates[:, :3 * Hp])  # one wide EUP call
            i_g = sig[:, 0 * Hp:1 * Hp]
            f_g = sig[:, 1 * Hp:2 * Hp]
            o_g = sig[:, 2 * Hp:3 * Hp]
            g_g = jnp.tanh(gates[:, 3 * Hp:4 * Hp])
            c_new = f_g * c + i_g * g_g
            h_new = o_g * jnp.tanh(c_new)
            if needs_mask:
                # Ragged last chunk: timesteps past seq_len must NOT advance
                # the state (zero-padding T would change the result).
                valid = (t0 + t) < seq_len
                c = jnp.where(valid, c_new, c)
                h = jnp.where(valid, h_new, h)
            else:
                c = c_new
                h = h_new
            if out_buf_ref is not None:
                out_buf_ref[rows, :] = h
        h_refs[l][...] = h
        c_refs[l][...] = c
        cur_in_ref = out_buf_ref

    @pl.when(chunk == pl.num_programs(0) - 1)
    def _():
        h_last = h_refs[num_layers - 1][...]
        out_ref[...] = (
            jnp.dot(h_last.astype(jnp.bfloat16), fc_w_ref[...],
                    preferred_element_type=jnp.float32) + fc_b_ref[...]
        ).astype(out_ref.dtype)


# ----------------------------------------------------------------------------
# Padding helpers (zero padding is exact for the LSTM recurrence)
# ----------------------------------------------------------------------------
def _pad_gate_blocks(w, h, hp):
    """(rows, 4h) -> (rows, 4hp): gate blocks permuted to [i,f,o,g] and each
    zero-padded h -> hp."""
    rows = w.shape[0]
    w4 = w.reshape(rows, 4, h)[:, jnp.array(GATE_PERM), :]
    out = jnp.zeros((rows, 4, hp), w.dtype).at[:, :, :h].set(w4)
    return out.reshape(rows, 4 * hp)


def _pad_rows(w, rows_p):
    rows = w.shape[0]
    if rows == rows_p:
        return w
    return jnp.zeros((rows_p,) + w.shape[1:], w.dtype).at[:rows].set(w)


# ----------------------------------------------------------------------------
# Forward pass (== LSTMModel.forward)
# ----------------------------------------------------------------------------
@jax.jit
def lstm_model_forward(x, params):
    """x: (B, T, input_dim) batch-first f32.  h0 = c0 = 0, like the module."""
    B, T, D = x.shape
    layers = params["layers"]
    fc_w, fc_b = params["fc"]
    H = layers[0][1].shape[0]
    O = fc_w.shape[1]
    L = len(layers)

    Bp = _round_up(max(B, SUBLANE), SUBLANE)
    Hp = _round_up(H, LANE)
    Dp = _round_up(D, LANE)
    Op = _round_up(O, LANE)

    n_bufs = 0 if L == 1 else min(2, L - 1)

    # Fixed (non-per-timestep) VMEM: double-buffered bf16 weights, biases,
    # fc, and per-layer h/c state.
    fixed = 0
    for idx in range(L):
        d_in_p = Dp if idx == 0 else Hp
        fixed += 2 * (d_in_p * 4 * Hp + Hp * 4 * Hp) * 2 + 2 * 4 * Hp * 4
    fixed += 2 * (Hp * Op * 2 + Op * 4)
    fixed += 2 * L * Bp * Hp * 4
    t_chunk = _choose_t_chunk(T, Bp, Dp, Hp, n_bufs, fixed)

    n_chunks = -(-T // t_chunk)  # cdiv; ragged last chunk masked in-kernel
    Tp = n_chunks * t_chunk
    blk = t_chunk * Bp

    # Time-major, padded, bf16 input as a 2-D (Tp*Bp, Dp) slab.
    # TODO(synk): feed x through a 3-D BlockSpec to avoid materializing this
    # padded time-major copy in HBM (one extra input-sized pass today).
    x_tm = jnp.transpose(x, (1, 0, 2)).astype(jnp.bfloat16)
    x_pad = jnp.zeros((Tp, Bp, Dp), jnp.bfloat16).at[:T, :B, :D].set(x_tm)
    x2d = x_pad.reshape(Tp * Bp, Dp)

    inputs = [x2d]
    in_specs = [pl.BlockSpec((blk, Dp), lambda t: (t, 0))]
    for idx, (w_ih, w_hh, b) in enumerate(layers):
        d_in_p = Dp if idx == 0 else Hp
        w_ih_p = _pad_rows(_pad_gate_blocks(w_ih, H, Hp),
                           d_in_p).astype(jnp.bfloat16)
        w_hh_p = _pad_rows(_pad_gate_blocks(w_hh, H, Hp),
                           Hp).astype(jnp.bfloat16)
        b_p = _pad_gate_blocks(b, H, Hp)  # f32
        inputs += [w_ih_p, w_hh_p, b_p]
        # TODO(synk): mark these constant-index weight specs
        # pipeline_mode=pl.Buffered(1) (or DMA them once into scratch) so they
        # are single-buffered at realistic H on v7x's 64 MiB VMEM.
        in_specs += [
            pl.BlockSpec((d_in_p, 4 * Hp), lambda t: (0, 0)),
            pl.BlockSpec((Hp, 4 * Hp), lambda t: (0, 0)),
            pl.BlockSpec((1, 4 * Hp), lambda t: (0, 0)),
        ]
    fc_w_p = jnp.zeros((Hp, Op), jnp.bfloat16).at[:H, :O].set(
        fc_w.astype(jnp.bfloat16))
    fc_b_p = jnp.zeros((1, Op), jnp.float32).at[:, :O].set(fc_b)
    inputs += [fc_w_p, fc_b_p]
    in_specs += [pl.BlockSpec((Hp, Op), lambda t: (0, 0)),
                 pl.BlockSpec((1, Op), lambda t: (0, 0))]

    scratch = [pltpu.VMEM((blk, 4 * Hp), jnp.float32)]           # gx
    for _ in range(L):                                           # h, c
        scratch += [pltpu.VMEM((Bp, Hp), jnp.float32),
                    pltpu.VMEM((Bp, Hp), jnp.float32)]
    scratch += [pltpu.VMEM((blk, Hp), jnp.float32)               # layer bufs
                for _ in range(n_bufs)]

    kernel = functools.partial(_fused_lstm_fc_kernel, num_layers=L,
                               t_chunk=t_chunk, b_rows=Bp, seq_len=T)

    # TODO(synk): on v7x, a 2-TensorCore wavefront (pl.core_map) could run the
    # next chunk's hoisted x@W_ih on the otherwise-idle second core.
    out_p = pl.pallas_call(
        kernel,
        out_shape=jax.ShapeDtypeStruct((Bp, Op), jnp.float32),
        grid=(n_chunks,),
        in_specs=in_specs,
        out_specs=pl.BlockSpec((Bp, Op), lambda t: (0, 0)),
        scratch_shapes=scratch,
        compiler_params=pltpu.CompilerParams(
            dimension_semantics=("arbitrary",),   # serial recurrence over time
            vmem_limit_bytes=_vmem_limit_bytes()),
    )(*inputs)

    return out_p[:B, :O]


# ----------------------------------------------------------------------------
# Parameter init (shapes follow nn.LSTM / nn.Linear, stored pre-transposed)
# ----------------------------------------------------------------------------
def init_params(key, input_dim, hidden_dim, num_layers, output_dim):
    layers = []
    bound = 1.0 / float(hidden_dim) ** 0.5
    for layer in range(num_layers):
        d_in = input_dim if layer == 0 else hidden_dim
        key, k1, k2, k3, k4 = jax.random.split(key, 5)
        w_ih = jax.random.uniform(k1, (d_in, 4 * hidden_dim), jnp.float32,
                                  -bound, bound)
        w_hh = jax.random.uniform(k2, (hidden_dim, 4 * hidden_dim), jnp.float32,
                                  -bound, bound)
        b_ih = jax.random.uniform(k3, (1, 4 * hidden_dim), jnp.float32,
                                  -bound, bound)
        b_hh = jax.random.uniform(k4, (1, 4 * hidden_dim), jnp.float32,
                                  -bound, bound)
        layers.append((w_ih, w_hh, b_ih + b_hh))
    key, k5, k6 = jax.random.split(key, 3)
    fc_w = jax.random.uniform(k5, (hidden_dim, output_dim), jnp.float32,
                              -bound, bound)
    fc_b = jax.random.uniform(k6, (1, output_dim), jnp.float32, -bound, bound)
    return {"layers": layers, "fc": (fc_w, fc_b)}


# ----------------------------------------------------------------------------
# Pure-JAX f32 reference (same math, no Pallas, PyTorch gate order)
# ----------------------------------------------------------------------------
def lstm_reference(x, params):
    B, T, _ = x.shape
    h_seq = x
    for (w_ih, w_hh, b) in params["layers"]:
        H = w_hh.shape[0]
        h = jnp.zeros((B, H), jnp.float32)
        c = jnp.zeros((B, H), jnp.float32)
        outs = []
        for t in range(T):
            gates = h_seq[:, t, :] @ w_ih + h @ w_hh + b
            i_g = jax.nn.sigmoid(gates[:, 0 * H:1 * H])
            f_g = jax.nn.sigmoid(gates[:, 1 * H:2 * H])
            g_g = jnp.tanh(gates[:, 2 * H:3 * H])
            o_g = jax.nn.sigmoid(gates[:, 3 * H:4 * H])
            c = f_g * c + i_g * g_g
            h = o_g * jnp.tanh(c)
            outs.append(h)
        h_seq = jnp.stack(outs, axis=1)
    fc_w, fc_b = params["fc"]
    return h_seq[:, -1, :] @ fc_w + fc_b


if __name__ == "__main__":
    batch = 2
    seq_len = 8
    input_dim = 16
    hidden_dim = 32
    num_layers = 2
    output_dim = 4

    key = jax.random.PRNGKey(0)
    key, xk = jax.random.split(key)
    x = jax.random.normal(xk, (batch, seq_len, input_dim), jnp.float32)
    params = init_params(key, input_dim, hidden_dim, num_layers, output_dim)

    out = lstm_model_forward(x, params)
    out = jax.block_until_ready(out)
    assert out.shape == (batch, output_dim), out.shape
    assert bool(jnp.all(jnp.isfinite(out)))

    ref = jax.block_until_ready(lstm_reference(x, params))
    # bf16 matmul operands (f32 accumulate) => relaxed tolerance vs f32 ref.
    max_err = float(jnp.max(jnp.abs(out - ref)))
    assert max_err < 5e-2, f"mismatch vs reference: {max_err}"

    print("KERNEL_OK")
</pallas_src>

<mosaic_0001>
module attributes {stable_mosaic.version = 11 : i64} {
  func.func @_fused_lstm_fc_kernel(%arg0: i32, %arg1: memref<64x128xbf16, #tpu.memory_space<vmem>>, %arg2: memref<128x512xbf16, #tpu.memory_space<vmem>>, %arg3: memref<128x512xbf16, #tpu.memory_space<vmem>>, %arg4: memref<1x512xf32, #tpu.memory_space<vmem>>, %arg5: memref<128x512xbf16, #tpu.memory_space<vmem>>, %arg6: memref<128x512xbf16, #tpu.memory_space<vmem>>, %arg7: memref<1x512xf32, #tpu.memory_space<vmem>>, %arg8: memref<128x128xbf16, #tpu.memory_space<vmem>>, %arg9: memref<1x128xf32, #tpu.memory_space<vmem>>, %arg10: memref<8x128xf32, #tpu.memory_space<vmem>>, %arg11: memref<64x512xf32, #tpu.memory_space<vmem>>, %arg12: memref<8x128xf32, #tpu.memory_space<vmem>>, %arg13: memref<8x128xf32, #tpu.memory_space<vmem>>, %arg14: memref<8x128xf32, #tpu.memory_space<vmem>>, %arg15: memref<8x128xf32, #tpu.memory_space<vmem>>, %arg16: memref<64x128xf32, #tpu.memory_space<vmem>>) attributes {dimension_semantics = [#tpu.dimension_semantics<arbitrary>], iteration_bounds = array<i64: 1>, scalar_prefetch = 0 : i64, scratch_operands = 6 : i64, tpu.core_type = #tpu.core_type<tc>, window_params = [{transform_indices = @transform_0, window_bounds = array<i64: 64, 128>}, {pipeline_mode = #tpu.pipeline_mode<synchronous>, transform_indices = @transform_1, window_bounds = array<i64: 128, 512>}, {pipeline_mode = #tpu.pipeline_mode<synchronous>, transform_indices = @transform_2, window_bounds = array<i64: 128, 512>}, {pipeline_mode = #tpu.pipeline_mode<synchronous>, transform_indices = @transform_3, window_bounds = array<i64: 1, 512>}, {pipeline_mode = #tpu.pipeline_mode<synchronous>, transform_indices = @transform_4, window_bounds = array<i64: 128, 512>}, {pipeline_mode = #tpu.pipeline_mode<synchronous>, transform_indices = @transform_5, window_bounds = array<i64: 128, 512>}, {pipeline_mode = #tpu.pipeline_mode<synchronous>, transform_indices = @transform_6, window_bounds = array<i64: 1, 512>}, {pipeline_mode = #tpu.pipeline_mode<synchronous>, transform_indices = @transform_7, window_bounds = array<i64: 128, 128>}, {pipeline_mode = #tpu.pipeline_mode<synchronous>, transform_indices = @transform_8, window_bounds = array<i64: 1, 128>}, {pipeline_mode = #tpu.pipeline_mode<synchronous>, transform_indices = @transform_9, window_bounds = array<i64: 8, 128>}]} {
    %c0_i32 = arith.constant 0 : i32
    %0 = arith.cmpi eq, %arg0, %c0_i32 : i32
    %1 = arith.extui %0 : i1 to i32
    %c0_i32_0 = arith.constant 0 : i32
    %2 = arith.cmpi ne, %1, %c0_i32_0 : i32
    scf.if %2 {
      %cst_140 = arith.constant 0.000000e+00 : f32
      %373 = vector.broadcast %cst_140 : f32 to vector<8x128xf32>
      %c0_141 = arith.constant 0 : index
      %c0_142 = arith.constant 0 : index
      %374 = vector.load %arg12[%c0_141, %c0_142] : memref<8x128xf32, #tpu.memory_space<vmem>>, vector<8x128xf32>
      tpu.vector_store %arg12[%c0_141, %c0_142], %373 {strides = array<i32>} : memref<8x128xf32, #tpu.memory_space<vmem>>, vector<8x128xf32>,
      %cst_143 = arith.constant 0.000000e+00 : f32
      %375 = vector.broadcast %cst_143 : f32 to vector<8x128xf32>
      %c0_144 = arith.constant 0 : index
      %c0_145 = arith.constant 0 : index
      %376 = vector.load %arg13[%c0_144, %c0_145] : memref<8x128xf32, #tpu.memory_space<vmem>>, vector<8x128xf32>
      tpu.vector_store %arg13[%c0_144, %c0_145], %375 {strides = array<i32>} : memref<8x128xf32, #tpu.memory_space<vmem>>, vector<8x128xf32>,
      %cst_146 = arith.constant 0.000000e+00 : f32
      %377 = vector.broadcast %cst_146 : f32 to vector<8x128xf32>
      %c0_147 = arith.constant 0 : index
      %c0_148 = arith.constant 0 : index
      %378 = vector.load %arg14[%c0_147, %c0_148] : memref<8x128xf32, #tpu.memory_space<vmem>>, vector<8x128xf32>
      tpu.vector_store %arg14[%c0_147, %c0_148], %377 {strides = array<i32>} : memref<8x128xf32, #tpu.memory_space<vmem>>, vector<8x128xf32>,
      %cst_149 = arith.constant 0.000000e+00 : f32
      %379 = vector.broadcast %cst_149 : f32 to vector<8x128xf32>
      %c0_150 = arith.constant 0 : index
      %c0_151 = arith.constant 0 : index
      %380 = vector.load %arg15[%c0_150, %c0_151] : memref<8x128xf32, #tpu.memory_space<vmem>>, vector<8x128xf32>
      tpu.vector_store %arg15[%c0_150, %c0_151], %379 {strides = array<i32>} : memref<8x128xf32, #tpu.memory_space<vmem>>, vector<8x128xf32>,
    } else {
    }
    %c0 = arith.constant 0 : index
    %c0_1 = arith.constant 0 : index
    %3 = vector.load %arg1[%c0, %c0_1] : memref<64x128xbf16, #tpu.memory_space<vmem>>, vector<64x128xbf16>
    %c0_2 = arith.constant 0 : index
    %c0_3 = arith.constant 0 : index
    %4 = vector.load %arg2[%c0_2, %c0_3] : memref<128x512xbf16, #tpu.memory_space<vmem>>, vector<128x512xbf16>
    %cst = arith.constant dense<0.000000e+00> : vector<64x512xf32>
    %5 = tpu.matmul %3, %4, %cst {dimension_numbers = #tpu.dot_dimension_numbers<[1], [0], [0], [1], [0, 0, 1, 1], [], []>} : vector<64x128xbf16>, vector<128x512xbf16>, vector<64x512xf32> -> vector<64x512xf32>
    %c0_4 = arith.constant 0 : index
    %c0_5 = arith.constant 0 : index
    %6 = vector.load %arg4[%c0_4, %c0_5] : memref<1x512xf32, #tpu.memory_space<vmem>>, vector<1x512xf32>
    %7 = vector.broadcast %6 : vector<1x512xf32> to vector<64x512xf32>
    %8 = arith.addf %5, %7 : vector<64x512xf32>
    %c0_6 = arith.constant 0 : index
    %c0_7 = arith.constant 0 : index
    %9 = vector.load %arg11[%c0_6, %c0_7] : memref<64x512xf32, #tpu.memory_space<vmem>>, vector<64x512xf32>
    tpu.vector_store %arg11[%c0_6, %c0_7], %8 {strides = array<i32>} : memref<64x512xf32, #tpu.memory_space<vmem>>, vector<64x512xf32>,
    %c0_8 = arith.constant 0 : index
    %c0_9 = arith.constant 0 : index
    %10 = vector.load %arg12[%c0_8, %c0_9] : memref<8x128xf32, #tpu.memory_space<vmem>>, vector<8x128xf32>
    %c0_10 = arith.constant 0 : index
    %c0_11 = arith.constant 0 : index
    %11 = vector.load %arg13[%c0_10, %c0_11] : memref<8x128xf32, #tpu.memory_space<vmem>>, vector<8x128xf32>
    %c0_12 = arith.constant 0 : index
    %c0_13 = arith.constant 0 : index
    %12 = vector.load %arg11[%c0_12, %c0_13] : memref<64x512xf32, #tpu.memory_space<vmem>>, vector<8x512xf32>
    %13 = arith.truncf %10 : vector<8x128xf32> to vector<8x128xbf16>
    %c0_14 = arith.constant 0 : index
    %c0_15 = arith.constant 0 : index
    %14 = vector.load %arg3[%c0_14, %c0_15] : memref<128x512xbf16, #tpu.memory_space<vmem>>, vector<128x512xbf16>
    %cst_16 = arith.constant dense<0.000000e+00> : vector<8x512xf32>
    %15 = tpu.matmul %13, %14, %cst_16 {dimension_numbers = #tpu.dot_dimension_numbers<[1], [0], [0], [1], [0, 0, 1, 1], [], []>} : vector<8x128xbf16>, vector<128x512xbf16>, vector<8x512xf32> -> vector<8x512xf32>
    %16 = arith.addf %12, %15 : vector<8x512xf32>
    %17 = vector.extract_strided_slice %16 {offsets = [0, 0], sizes = [8, 384], strides = [1, 1]} : vector<8x512xf32> to vector<8x384xf32>
    %18 = arith.negf %17 : vector<8x384xf32>
    %19 = math.exp %18 : vector<8x384xf32>
    %cst_17 = arith.constant 1.000000e+00 : f32
    %20 = vector.broadcast %cst_17 : f32 to vector<8x384xf32>
    %21 = arith.addf %20, %19 : vector<8x384xf32>
    %22 = arith.divf %20, %21 : vector<8x384xf32>
    %23 = vector.extract_strided_slice %22 {offsets = [0, 0], sizes = [8, 128], strides = [1, 1]} : vector<8x384xf32> to vector<8x128xf32>
    %24 = vector.extract_strided_slice %22 {offsets = [0, 128], sizes = [8, 128], strides = [1, 1]} : vector<8x384xf32> to vector<8x128xf32>
    %25 = vector.extract_strided_slice %22 {offsets = [0, 256], sizes = [8, 128], strides = [1, 1]} : vector<8x384xf32> to vector<8x128xf32>
    %26 = vector.extract_strided_slice %16 {offsets = [0, 384], sizes = [8, 128], strides = [1, 1]} : vector<8x512xf32> to vector<8x128xf32>
    %27 = math.tanh %26 : vector<8x128xf32>
    %28 = arith.mulf %24, %11 : vector<8x128xf32>
    %29 = arith.mulf %23, %27 : vector<8x128xf32>
    %30 = arith.addf %28, %29 : vector<8x128xf32>
    %31 = math.tanh %30 : vector<8x128xf32>
    %32 = arith.mulf %25, %31 : vector<8x128xf32>
    %c0_18 = arith.constant 0 : index
    %c0_19 = arith.constant 0 : index
    %33 = vector.load %arg16[%c0_18, %c0_19] : memref<64x128xf32, #tpu.memory_space<vmem>>, vector<8x128xf32>
    tpu.vector_store %arg16[%c0_18, %c0_19], %32 {strides = array<i32>} : memref<64x128xf32, #tpu.memory_space<vmem>>, vector<8x128xf32>,
    %c8 = arith.constant 8 : index
    %c0_20 = arith.constant 0 : index
    %34 = vector.load %arg11[%c8, %c0_20] : memref<64x512xf32, #tpu.memory_space<vmem>>, vector<8x512xf32>
    %35 = arith.truncf %32 : vector<8x128xf32> to vector<8x128xbf16>
    %c0_21 = arith.constant 0 : index
    %c0_22 = arith.constant 0 : index
    %36 = vector.load %arg3[%c0_21, %c0_22] : memref<128x512xbf16, #tpu.memory_space<vmem>>, vector<128x512xbf16>
    %cst_23 = arith.constant dense<0.000000e+00> : vector<8x512xf32>
    %37 = tpu.matmul %35, %36, %cst_23 {dimension_numbers = #tpu.dot_dimension_numbers<[1], [0], [0], [1], [0, 0, 1, 1], [], []>} : vector<8x128xbf16>, vector<128x512xbf16>, vector<8x512xf32> -> vector<8x512xf32>
    %38 = arith.addf %34, %37 : vector<8x512xf32>
    %39 = vector.extract_strided_slice %38 {offsets = [0, 0], sizes = [8, 384], strides = [1, 1]} : vector<8x512xf32> to vector<8x384xf32>
    %40 = arith.negf %39 : vector<8x384xf32>
    %41 = math.exp %40 : vector<8x384xf32>
    %cst_24 = arith.constant 1.000000e+00 : f32
    %42 = vector.broadcast %cst_24 : f32 to vector<8x384xf32>
    %43 = arith.addf %42, %41 : vector<8x384xf32>
    %44 = arith.divf %42, %43 : vector<8x384xf32>
    %45 = vector.extract_strided_slice %44 {offsets = [0, 0], sizes = [8, 128], strides = [1, 1]} : vector<8x384xf32> to vector<8x128xf32>
    %46 = vector.extract_strided_slice %44 {offsets = [0, 128], sizes = [8, 128], strides = [1, 1]} : vector<8x384xf32> to vector<8x128xf32>
    %47 = vector.extract_strided_slice %44 {offsets = [0, 256], sizes = [8, 128], strides = [1, 1]} : vector<8x384xf32> to vector<8x128xf32>
    %48 = vector.extract_strided_slice %38 {offsets = [0, 384], sizes = [8, 128], strides = [1, 1]} : vector<8x512xf32> to vector<8x128xf32>
    %49 = math.tanh %48 : vector<8x128xf32>
    %50 = arith.mulf %46, %30 : vector<8x128xf32>
    %51 = arith.mulf %45, %49 : vector<8x128xf32>
    %52 = arith.addf %50, %51 : vector<8x128xf32>
    %53 = math.tanh %52 : vector<8x128xf32>
    %54 = arith.mulf %47, %53 : vector<8x128xf32>
    %c8_25 = arith.constant 8 : index
    %c0_26 = arith.constant 0 : index
    %55 = vector.load %arg16[%c8_25, %c0_26] : memref<64x128xf32, #tpu.memory_space<vmem>>, vector<8x128xf32>
    tpu.vector_store %arg16[%c8_25, %c0_26], %54 {strides = array<i32>} : memref<64x128xf32, #tpu.memory_space<vmem>>, vector<8x128xf32>,
    %c16 = arith.constant 16 : index
    %c0_27 = arith.constant 0 : index
    %56 = vector.load %arg11[%c16, %c0_27] : memref<64x512xf32, #tpu.memory_space<vmem>>, vector<8x512xf32>
    %57 = arith.truncf %54 : vector<8x128xf32> to vector<8x128xbf16>
    %c0_28 = arith.constant 0 : index
    %c0_29 = arith.constant 0 : index
    %58 = vector.load %arg3[%c0_28, %c0_29] : memref<128x512xbf16, #tpu.memory_space<vmem>>, vector<128x512xbf16>
    %cst_30 = arith.constant dense<0.000000e+00> : vector<8x512xf32>
    %59 = tpu.matmul %57, %58, %cst_30 {dimension_numbers = #tpu.dot_dimension_numbers<[1], [0], [0], [1], [0, 0, 1, 1], [], []>} : vector<8x128xbf16>, vector<128x512xbf16>, vector<8x512xf32> -> vector<8x512xf32>
    %60 = arith.addf %56, %59 : vector<8x512xf32>
    %61 = vector.extract_strided_slice %60 {offsets = [0, 0], sizes = [8, 384], strides = [1, 1]} : vector<8x512xf32> to vector<8x384xf32>
    %62 = arith.negf %61 : vector<8x384xf32>
    %63 = math.exp %62 : vector<8x384xf32>
    %cst_31 = arith.constant 1.000000e+00 : f32
    %64 = vector.broadcast %cst_31 : f32 to vector<8x384xf32>
    %65 = arith.addf %64, %63 : vector<8x384xf32>
    %66 = arith.divf %64, %65 : vector<8x384xf32>
    %67 = vector.extract_strided_slice %66 {offsets = [0, 0], sizes = [8, 128], strides = [1, 1]} : vector<8x384xf32> to vector<8x128xf32>
    %68 = vector.extract_strided_slice %66 {offsets = [0, 128], sizes = [8, 128], strides = [1, 1]} : vector<8x384xf32> to vector<8x128xf32>
    %69 = vector.extract_strided_slice %66 {offsets = [0, 256], sizes = [8, 128], strides = [1, 1]} : vector<8x384xf32> to vector<8x128xf32>
    %70 = vector.extract_strided_slice %60 {offsets = [0, 384], sizes = [8, 128], strides = [1, 1]} : vector<8x512xf32> to vector<8x128xf32>
    %71 = math.tanh %70 : vector<8x128xf32>
    %72 = arith.mulf %68, %52 : vector<8x128xf32>
    %73 = arith.mulf %67, %71 : vector<8x128xf32>
    %74 = arith.addf %72, %73 : vector<8x128xf32>
    %75 = math.tanh %74 : vector<8x128xf32>
    %76 = arith.mulf %69, %75 : vector<8x128xf32>
    %c16_32 = arith.constant 16 : index
    %c0_33 = arith.constant 0 : index
    %77 = vector.load %arg16[%c16_32, %c0_33] : memref<64x128xf32, #tpu.memory_space<vmem>>, vector<8x128xf32>
    tpu.vector_store %arg16[%c16_32, %c0_33], %76 {strides = array<i32>} : memref<64x128xf32, #tpu.memory_space<vmem>>, vector<8x128xf32>,
    %c24 = arith.constant 24 : index
    %c0_34 = arith.constant 0 : index
    %78 = vector.load %arg11[%c24, %c0_34] : memref<64x512xf32, #tpu.memory_space<vmem>>, vector<8x512xf32>
    %79 = arith.truncf %76 : vector<8x128xf32> to vector<8x128xbf16>
    %c0_35 = arith.constant 0 : index
    %c0_36 = arith.constant 0 : index
    %80 = vector.load %arg3[%c0_35, %c0_36] : memref<128x512xbf16, #tpu.memory_space<vmem>>, vector<128x512xbf16>
    %cst_37 = arith.constant dense<0.000000e+00> : vector<8x512xf32>
    %81 = tpu.matmul %79, %80, %cst_37 {dimension_numbers = #tpu.dot_dimension_numbers<[1], [0], [0], [1], [0, 0, 1, 1], [], []>} : vector<8x128xbf16>, vector<128x512xbf16>, vector<8x512xf32> -> vector<8x512xf32>
    %82 = arith.addf %78, %81 : vector<8x512xf32>
    %83 = vector.extract_strided_slice %82 {offsets = [0, 0], sizes = [8, 384], strides = [1, 1]} : vector<8x512xf32> to vector<8x384xf32>
    %84 = arith.negf %83 : vector<8x384xf32>
    %85 = math.exp %84 : vector<8x384xf32>
    %cst_38 = arith.constant 1.000000e+00 : f32
    %86 = vector.broadcast %cst_38 : f32 to vector<8x384xf32>
    %87 = arith.addf %86, %85 : vector<8x384xf32>
    %88 = arith.divf %86, %87 : vector<8x384xf32>
    %89 = vector.extract_strided_slice %88 {offsets = [0, 0], sizes = [8, 128], strides = [1, 1]} : vector<8x384xf32> to vector<8x128xf32>
    %90 = vector.extract_strided_slice %88 {offsets = [0, 128], sizes = [8, 128], strides = [1, 1]} : vector<8x384xf32> to vector<8x128xf32>
    %91 = vector.extract_strided_slice %88 {offsets = [0, 256], sizes = [8, 128], strides = [1, 1]} : vector<8x384xf32> to vector<8x128xf32>
    %92 = vector.extract_strided_slice %82 {offsets = [0, 384], sizes = [8, 128], strides = [1, 1]} : vector<8x512xf32> to vector<8x128xf32>
    %93 = math.tanh %92 : vector<8x128xf32>
    %94 = arith.mulf %90, %74 : vector<8x128xf32>
    %95 = arith.mulf %89, %93 : vector<8x128xf32>
    %96 = arith.addf %94, %95 : vector<8x128xf32>
    %97 = math.tanh %96 : vector<8x128xf32>
    %98 = arith.mulf %91, %97 : vector<8x128xf32>
    %c24_39 = arith.constant 24 : index
    %c0_40 = arith.constant 0 : index
    %99 = vector.load %arg16[%c24_39, %c0_40] : memref<64x128xf32, #tpu.memory_space<vmem>>, vector<8x128xf32>
    tpu.vector_store %arg16[%c24_39, %c0_40], %98 {strides = array<i32>} : memref<64x128xf32, #tpu.memory_space<vmem>>, vector<8x128xf32>,
    %c32 = arith.constant 32 : index
    %c0_41 = arith.constant 0 : index
    %100 = vector.load %arg11[%c32, %c0_41] : memref<64x512xf32, #tpu.memory_space<vmem>>, vector<8x512xf32>
    %101 = arith.truncf %98 : vector<8x128xf32> to vector<8x128xbf16>
    %c0_42 = arith.constant 0 : index
    %c0_43 = arith.constant 0 : index
    %102 = vector.load %arg3[%c0_42, %c0_43] : memref<128x512xbf16, #tpu.memory_space<vmem>>, vector<128x512xbf16>
    %cst_44 = arith.constant dense<0.000000e+00> : vector<8x512xf32>
    %103 = tpu.matmul %101, %102, %cst_44 {dimension_numbers = #tpu.dot_dimension_numbers<[1], [0], [0], [1], [0, 0, 1, 1], [], []>} : vector<8x128xbf16>, vector<128x512xbf16>, vector<8x512xf32> -> vector<8x512xf32>
    %104 = arith.addf %100, %103 : vector<8x512xf32>
    %105 = vector.extract_strided_slice %104 {offsets = [0, 0], sizes = [8, 384], strides = [1, 1]} : vector<8x512xf32> to vector<8x384xf32>
    %106 = arith.negf %105 : vector<8x384xf32>
    %107 = math.exp %106 : vector<8x384xf32>
    %cst_45 = arith.constant 1.000000e+00 : f32
    %108 = vector.broadcast %cst_45 : f32 to vector<8x384xf32>
    %109 = arith.addf %108, %107 : vector<8x384xf32>
    %110 = arith.divf %108, %109 : vector<8x384xf32>
    %111 = vector.extract_strided_slice %110 {offsets = [0, 0], sizes = [8, 128], strides = [1, 1]} : vector<8x384xf32> to vector<8x128xf32>
    %112 = vector.extract_strided_slice %110 {offsets = [0, 128], sizes = [8, 128], strides = [1, 1]} : vector<8x384xf32> to vector<8x128xf32>
    %113 = vector.extract_strided_slice %110 {offsets = [0, 256], sizes = [8, 128], strides = [1, 1]} : vector<8x384xf32> to vector<8x128xf32>
    %114 = vector.extract_strided_slice %104 {offsets = [0, 384], sizes = [8, 128], strides = [1, 1]} : vector<8x512xf32> to vector<8x128xf32>
    %115 = math.tanh %114 : vector<8x128xf32>
    %116 = arith.mulf %112, %96 : vector<8x128xf32>
    %117 = arith.mulf %111, %115 : vector<8x128xf32>
    %118 = arith.addf %116, %117 : vector<8x128xf32>
    %119 = math.tanh %118 : vector<8x128xf32>
    %120 = arith.mulf %113, %119 : vector<8x128xf32>
    %c32_46 = arith.constant 32 : index
    %c0_47 = arith.constant 0 : index
    %121 = vector.load %arg16[%c32_46, %c0_47] : memref<64x128xf32, #tpu.memory_space<vmem>>, vector<8x128xf32>
    tpu.vector_store %arg16[%c32_46, %c0_47], %120 {strides = array<i32>} : memref<64x128xf32, #tpu.memory_space<vmem>>, vector<8x128xf32>,
    %c40 = arith.constant 40 : index
    %c0_48 = arith.constant 0 : index
    %122 = vector.load %arg11[%c40, %c0_48] : memref<64x512xf32, #tpu.memory_space<vmem>>, vector<8x512xf32>
    %123 = arith.truncf %120 : vector<8x128xf32> to vector<8x128xbf16>
    %c0_49 = arith.constant 0 : index
    %c0_50 = arith.constant 0 : index
    %124 = vector.load %arg3[%c0_49, %c0_50] : memref<128x512xbf16, #tpu.memory_space<vmem>>, vector<128x512xbf16>
    %cst_51 = arith.constant dense<0.000000e+00> : vector<8x512xf32>
    %125 = tpu.matmul %123, %124, %cst_51 {dimension_numbers = #tpu.dot_dimension_numbers<[1], [0], [0], [1], [0, 0, 1, 1], [], []>} : vector<8x128xbf16>, vector<128x512xbf16>, vector<8x512xf32> -> vector<8x512xf32>
    %126 = arith.addf %122, %125 : vector<8x512xf32>
    %127 = vector.extract_strided_slice %126 {offsets = [0, 0], sizes = [8, 384], strides = [1, 1]} : vector<8x512xf32> to vector<8x384xf32>
    %128 = arith.negf %127 : vector<8x384xf32>
    %129 = math.exp %128 : vector<8x384xf32>
    %cst_52 = arith.constant 1.000000e+00 : f32
    %130 = vector.broadcast %cst_52 : f32 to vector<8x384xf32>
    %131 = arith.addf %130, %129 : vector<8x384xf32>
    %132 = arith.divf %130, %131 : vector<8x384xf32>
    %133 = vector.extract_strided_slice %132 {offsets = [0, 0], sizes = [8, 128], strides = [1, 1]} : vector<8x384xf32> to vector<8x128xf32>
    %134 = vector.extract_strided_slice %132 {offsets = [0, 128], sizes = [8, 128], strides = [1, 1]} : vector<8x384xf32> to vector<8x128xf32>
    %135 = vector.extract_strided_slice %132 {offsets = [0, 256], sizes = [8, 128], strides = [1, 1]} : vector<8x384xf32> to vector<8x128xf32>
    %136 = vector.extract_strided_slice %126 {offsets = [0, 384], sizes = [8, 128], strides = [1, 1]} : vector<8x512xf32> to vector<8x128xf32>
    %137 = math.tanh %136 : vector<8x128xf32>
    %138 = arith.mulf %134, %118 : vector<8x128xf32>
    %139 = arith.mulf %133, %137 : vector<8x128xf32>
    %140 = arith.addf %138, %139 : vector<8x128xf32>
    %141 = math.tanh %140 : vector<8x128xf32>
    %142 = arith.mulf %135, %141 : vector<8x128xf32>
    %c40_53 = arith.constant 40 : index
    %c0_54 = arith.constant 0 : index
    %143 = vector.load %arg16[%c40_53, %c0_54] : memref<64x128xf32, #tpu.memory_space<vmem>>, vector<8x128xf32>
    tpu.vector_store %arg16[%c40_53, %c0_54], %142 {strides = array<i32>} : memref<64x128xf32, #tpu.memory_space<vmem>>, vector<8x128xf32>,
    %c48 = arith.constant 48 : index
    %c0_55 = arith.constant 0 : index
    %144 = vector.load %arg11[%c48, %c0_55] : memref<64x512xf32, #tpu.memory_space<vmem>>, vector<8x512xf32>
    %145 = arith.truncf %142 : vector<8x128xf32> to vector<8x128xbf16>
    %c0_56 = arith.constant 0 : index
    %c0_57 = arith.constant 0 : index
    %146 = vector.load %arg3[%c0_56, %c0_57] : memref<128x512xbf16, #tpu.memory_space<vmem>>, vector<128x512xbf16>
    %cst_58 = arith.constant dense<0.000000e+00> : vector<8x512xf32>
    %147 = tpu.matmul %145, %146, %cst_58 {dimension_numbers = #tpu.dot_dimension_numbers<[1], [0], [0], [1], [0, 0, 1, 1], [], []>} : vector<8x128xbf16>, vector<128x512xbf16>, vector<8x512xf32> -> vector<8x512xf32>
    %148 = arith.addf %144, %147 : vector<8x512xf32>
    %149 = vector.extract_strided_slice %148 {offsets = [0, 0], sizes = [8, 384], strides = [1, 1]} : vector<8x512xf32> to vector<8x384xf32>
    %150 = arith.negf %149 : vector<8x384xf32>
    %151 = math.exp %150 : vector<8x384xf32>
    %cst_59 = arith.constant 1.000000e+00 : f32
    %152 = vector.broadcast %cst_59 : f32 to vector<8x384xf32>
    %153 = arith.addf %152, %151 : vector<8x384xf32>
    %154 = arith.divf %152, %153 : vector<8x384xf32>
    %155 = vector.extract_strided_slice %154 {offsets = [0, 0], sizes = [8, 128], strides = [1, 1]} : vector<8x384xf32> to vector<8x128xf32>
    %156 = vector.extract_strided_slice %154 {offsets = [0, 128], sizes = [8, 128], strides = [1, 1]} : vector<8x384xf32> to vector<8x128xf32>
    %157 = vector.extract_strided_slice %154 {offsets = [0, 256], sizes = [8, 128], strides = [1, 1]} : vector<8x384xf32> to vector<8x128xf32>
    %158 = vector.extract_strided_slice %148 {offsets = [0, 384], sizes = [8, 128], strides = [1, 1]} : vector<8x512xf32> to vector<8x128xf32>
    %159 = math.tanh %158 : vector<8x128xf32>
    %160 = arith.mulf %156, %140 : vector<8x128xf32>
    %161 = arith.mulf %155, %159 : vector<8x128xf32>
    %162 = arith.addf %160, %161 : vector<8x128xf32>
    %163 = math.tanh %162 : vector<8x128xf32>
    %164 = arith.mulf %157, %163 : vector<8x128xf32>
    %c48_60 = arith.constant 48 : index
    %c0_61 = arith.constant 0 : index
    %165 = vector.load %arg16[%c48_60, %c0_61] : memref<64x128xf32, #tpu.memory_space<vmem>>, vector<8x128xf32>
    tpu.vector_store %arg16[%c48_60, %c0_61], %164 {strides = array<i32>} : memref<64x128xf32, #tpu.memory_space<vmem>>, vector<8x128xf32>,
    %c56 = arith.constant 56 : index
    %c0_62 = arith.constant 0 : index
    %166 = vector.load %arg11[%c56, %c0_62] : memref<64x512xf32, #tpu.memory_space<vmem>>, vector<8x512xf32>
    %167 = arith.truncf %164 : vector<8x128xf32> to vector<8x128xbf16>
    %c0_63 = arith.constant 0 : index
    %c0_64 = arith.constant 0 : index
    %168 = vector.load %arg3[%c0_63, %c0_64] : memref<128x512xbf16, #tpu.memory_space<vmem>>, vector<128x512xbf16>
    %cst_65 = arith.constant dense<0.000000e+00> : vector<8x512xf32>
    %169 = tpu.matmul %167, %168, %cst_65 {dimension_numbers = #tpu.dot_dimension_numbers<[1], [0], [0], [1], [0, 0, 1, 1], [], []>} : vector<8x128xbf16>, vector<128x512xbf16>, vector<8x512xf32> -> vector<8x512xf32>
    %170 = arith.addf %166, %169 : vector<8x512xf32>
    %171 = vector.extract_strided_slice %170 {offsets = [0, 0], sizes = [8, 384], strides = [1, 1]} : vector<8x512xf32> to vector<8x384xf32>
    %172 = arith.negf %171 : vector<8x384xf32>
    %173 = math.exp %172 : vector<8x384xf32>
    %cst_66 = arith.constant 1.000000e+00 : f32
    %174 = vector.broadcast %cst_66 : f32 to vector<8x384xf32>
    %175 = arith.addf %174, %173 : vector<8x384xf32>
    %176 = arith.divf %174, %175 : vector<8x384xf32>
    %177 = vector.extract_strided_slice %176 {offsets = [0, 0], sizes = [8, 128], strides = [1, 1]} : vector<8x384xf32> to vector<8x128xf32>
    %178 = vector.extract_strided_slice %176 {offsets = [0, 128], sizes = [8, 128], strides = [1, 1]} : vector<8x384xf32> to vector<8x128xf32>
    %179 = vector.extract_strided_slice %176 {offsets = [0, 256], sizes = [8, 128], strides = [1, 1]} : vector<8x384xf32> to vector<8x128xf32>
    %180 = vector.extract_strided_slice %170 {offsets = [0, 384], sizes = [8, 128], strides = [1, 1]} : vector<8x512xf32> to vector<8x128xf32>
    %181 = math.tanh %180 : vector<8x128xf32>
    %182 = arith.mulf %178, %162 : vector<8x128xf32>
    %183 = arith.mulf %177, %181 : vector<8x128xf32>
    %184 = arith.addf %182, %183 : vector<8x128xf32>
    %185 = math.tanh %184 : vector<8x128xf32>
    %186 = arith.mulf %179, %185 : vector<8x128xf32>
    %c56_67 = arith.constant 56 : index
    %c0_68 = arith.constant 0 : index
    %187 = vector.load %arg16[%c56_67, %c0_68] : memref<64x128xf32, #tpu.memory_space<vmem>>, vector<8x128xf32>
    tpu.vector_store %arg16[%c56_67, %c0_68], %186 {strides = array<i32>} : memref<64x128xf32, #tpu.memory_space<vmem>>, vector<8x128xf32>,
    %c0_69 = arith.constant 0 : index
    %c0_70 = arith.constant 0 : index
    %188 = vector.load %arg12[%c0_69, %c0_70] : memref<8x128xf32, #tpu.memory_space<vmem>>, vector<8x128xf32>
    tpu.vector_store %arg12[%c0_69, %c0_70], %186 {strides = array<i32>} : memref<8x128xf32, #tpu.memory_space<vmem>>, vector<8x128xf32>,
    %c0_71 = arith.constant 0 : index
    %c0_72 = arith.constant 0 : index
    %189 = vector.load %arg13[%c0_71, %c0_72] : memref<8x128xf32, #tpu.memory_space<vmem>>, vector<8x128xf32>
    tpu.vector_store %arg13[%c0_71, %c0_72], %184 {strides = array<i32>} : memref<8x128xf32, #tpu.memory_space<vmem>>, vector<8x128xf32>,
    %c0_73 = arith.constant 0 : index
    %c0_74 = arith.constant 0 : index
    %190 = vector.load %arg16[%c0_73, %c0_74] : memref<64x128xf32, #tpu.memory_space<vmem>>, vector<64x128xf32>
    %191 = arith.truncf %190 : vector<64x128xf32> to vector<64x128xbf16>
    %c0_75 = arith.constant 0 : index
    %c0_76 = arith.constant 0 : index
    %192 = vector.load %arg5[%c0_75, %c0_76] : memref<128x512xbf16, #tpu.memory_space<vmem>>, vector<128x512xbf16>
    %cst_77 = arith.constant dense<0.000000e+00> : vector<64x512xf32>
    %193 = tpu.matmul %191, %192, %cst_77 {dimension_numbers = #tpu.dot_dimension_numbers<[1], [0], [0], [1], [0, 0, 1, 1], [], []>} : vector<64x128xbf16>, vector<128x512xbf16>, vector<64x512xf32> -> vector<64x512xf32>
    %c0_78 = arith.constant 0 : index
    %c0_79 = arith.constant 0 : index
    %194 = vector.load %arg7[%c0_78, %c0_79] : memref<1x512xf32, #tpu.memory_space<vmem>>, vector<1x512xf32>
    %195 = vector.broadcast %194 : vector<1x512xf32> to vector<64x512xf32>
    %196 = arith.addf %193, %195 : vector<64x512xf32>
    %c0_80 = arith.constant 0 : index
    %c0_81 = arith.constant 0 : index
    %197 = vector.load %arg11[%c0_80, %c0_81] : memref<64x512xf32, #tpu.memory_space<vmem>>, vector<64x512xf32>
    tpu.vector_store %arg11[%c0_80, %c0_81], %196 {strides = array<i32>} : memref<64x512xf32, #tpu.memory_space<vmem>>, vector<64x512xf32>,
    %c0_82 = arith.constant 0 : index
    %c0_83 = arith.constant 0 : index
    %198 = vector.load %arg14[%c0_82, %c0_83] : memref<8x128xf32, #tpu.memory_space<vmem>>, vector<8x128xf32>
    %c0_84 = arith.constant 0 : index
    %c0_85 = arith.constant 0 : index
    %199 = vector.load %arg15[%c0_84, %c0_85] : memref<8x128xf32, #tpu.memory_space<vmem>>, vector<8x128xf32>
    %c0_86 = arith.constant 0 : index
    %c0_87 = arith.constant 0 : index
    %200 = vector.load %arg11[%c0_86, %c0_87] : memref<64x512xf32, #tpu.memory_space<vmem>>, vector<8x512xf32>
    %201 = arith.truncf %198 : vector<8x128xf32> to vector<8x128xbf16>
    %c0_88 = arith.constant 0 : index
    %c0_89 = arith.constant 0 : index
    %202 = vector.load %arg6[%c0_88, %c0_89] : memref<128x512xbf16, #tpu.memory_space<vmem>>, vector<128x512xbf16>
    %cst_90 = arith.constant dense<0.000000e+00> : vector<8x512xf32>
    %203 = tpu.matmul %201, %202, %cst_90 {dimension_numbers = #tpu.dot_dimension_numbers<[1], [0], [0], [1], [0, 0, 1, 1], [], []>} : vector<8x128xbf16>, vector<128x512xbf16>, vector<8x512xf32> -> vector<8x512xf32>
    %204 = arith.addf %200, %203 : vector<8x512xf32>
    %205 = vector.extract_strided_slice %204 {offsets = [0, 0], sizes = [8, 384], strides = [1, 1]} : vector<8x512xf32> to vector<8x384xf32>
    %206 = arith.negf %205 : vector<8x384xf32>
    %207 = math.exp %206 : vector<8x384xf32>
    %cst_91 = arith.constant 1.000000e+00 : f32
    %208 = vector.broadcast %cst_91 : f32 to vector<8x384xf32>
    %209 = arith.addf %208, %207 : vector<8x384xf32>
    %210 = arith.divf %208, %209 : vector<8x384xf32>
    %211 = vector.extract_strided_slice %210 {offsets = [0, 0], sizes = [8, 128], strides = [1, 1]} : vector<8x384xf32> to vector<8x128xf32>
    %212 = vector.extract_strided_slice %210 {offsets = [0, 128], sizes = [8, 128], strides = [1, 1]} : vector<8x384xf32> to vector<8x128xf32>
    %213 = vector.extract_strided_slice %210 {offsets = [0, 256], sizes = [8, 128], strides = [1, 1]} : vector<8x384xf32> to vector<8x128xf32>
    %214 = vector.extract_strided_slice %204 {offsets = [0, 384], sizes = [8, 128], strides = [1, 1]} : vector<8x512xf32> to vector<8x128xf32>
    %215 = math.tanh %214 : vector<8x128xf32>
    %216 = arith.mulf %212, %199 : vector<8x128xf32>
    %217 = arith.mulf %211, %215 : vector<8x128xf32>
    %218 = arith.addf %216, %217 : vector<8x128xf32>
    %219 = math.tanh %218 : vector<8x128xf32>
    %220 = arith.mulf %213, %219 : vector<8x128xf32>
    %c8_92 = arith.constant 8 : index
    %c0_93 = arith.constant 0 : index
    %221 = vector.load %arg11[%c8_92, %c0_93] : memref<64x512xf32, #tpu.memory_space<vmem>>, vector<8x512xf32>
    %222 = arith.truncf %220 : vector<8x128xf32> to vector<8x128xbf16>
    %c0_94 = arith.constant 0 : index
    %c0_95 = arith.constant 0 : index
    %223 = vector.load %arg6[%c0_94, %c0_95] : memref<128x512xbf16, #tpu.memory_space<vmem>>, vector<128x512xbf16>
    %cst_96 = arith.constant dense<0.000000e+00> : vector<8x512xf32>
    %224 = tpu.matmul %222, %223, %cst_96 {dimension_numbers = #tpu.dot_dimension_numbers<[1], [0], [0], [1], [0, 0, 1, 1], [], []>} : vector<8x128xbf16>, vector<128x512xbf16>, vector<8x512xf32> -> vector<8x512xf32>
    %225 = arith.addf %221, %224 : vector<8x512xf32>
    %226 = vector.extract_strided_slice %225 {offsets = [0, 0], sizes = [8, 384], strides = [1, 1]} : vector<8x512xf32> to vector<8x384xf32>
    %227 = arith.negf %226 : vector<8x384xf32>
    %228 = math.exp %227 : vector<8x384xf32>
    %cst_97 = arith.constant 1.000000e+00 : f32
    %229 = vector.broadcast %cst_97 : f32 to vector<8x384xf32>
    %230 = arith.addf %229, %228 : vector<8x384xf32>
    %231 = arith.divf %229, %230 : vector<8x384xf32>
    %232 = vector.extract_strided_slice %231 {offsets = [0, 0], sizes = [8, 128], strides = [1, 1]} : vector<8x384xf32> to vector<8x128xf32>
    %233 = vector.extract_strided_slice %231 {offsets = [0, 128], sizes = [8, 128], strides = [1, 1]} : vector<8x384xf32> to vector<8x128xf32>
    %234 = vector.extract_strided_slice %231 {offsets = [0, 256], sizes = [8, 128], strides = [1, 1]} : vector<8x384xf32> to vector<8x128xf32>
    %235 = vector.extract_strided_slice %225 {offsets = [0, 384], sizes = [8, 128], strides = [1, 1]} : vector<8x512xf32> to vector<8x128xf32>
    %236 = math.tanh %235 : vector<8x128xf32>
    %237 = arith.mulf %233, %218 : vector<8x128xf32>
    %238 = arith.mulf %232, %236 : vector<8x128xf32>
    %239 = arith.addf %237, %238 : vector<8x128xf32>
    %240 = math.tanh %239 : vector<8x128xf32>
    %241 = arith.mulf %234, %240 : vector<8x128xf32>
    %c16_98 = arith.constant 16 : index
    %c0_99 = arith.constant 0 : index
    %242 = vector.load %arg11[%c16_98, %c0_99] : memref<64x512xf32, #tpu.memory_space<vmem>>, vector<8x512xf32>
    %243 = arith.truncf %241 : vector<8x128xf32> to vector<8x128xbf16>
    %c0_100 = arith.constant 0 : index
    %c0_101 = arith.constant 0 : index
    %244 = vector.load %arg6[%c0_100, %c0_101] : memref<128x512xbf16, #tpu.memory_space<vmem>>, vector<128x512xbf16>
    %cst_102 = arith.constant dense<0.000000e+00> : vector<8x512xf32>
    %245 = tpu.matmul %243, %244, %cst_102 {dimension_numbers = #tpu.dot_dimension_numbers<[1], [0], [0], [1], [0, 0, 1, 1], [], []>} : vector<8x128xbf16>, vector<128x512xbf16>, vector<8x512xf32> -> vector<8x512xf32>
    %246 = arith.addf %242, %245 : vector<8x512xf32>
    %247 = vector.extract_strided_slice %246 {offsets = [0, 0], sizes = [8, 384], strides = [1, 1]} : vector<8x512xf32> to vector<8x384xf32>
    %248 = arith.negf %247 : vector<8x384xf32>
    %249 = math.exp %248 : vector<8x384xf32>
    %cst_103 = arith.constant 1.000000e+00 : f32
    %250 = vector.broadcast %cst_103 : f32 to vector<8x384xf32>
    %251 = arith.addf %250, %249 : vector<8x384xf32>
    %252 = arith.divf %250, %251 : vector<8x384xf32>
    %253 = vector.extract_strided_slice %252 {offsets = [0, 0], sizes = [8, 128], strides = [1, 1]} : vector<8x384xf32> to vector<8x128xf32>
    %254 = vector.extract_strided_slice %252 {offsets = [0, 128], sizes = [8, 128], strides = [1, 1]} : vector<8x384xf32> to vector<8x128xf32>
    %255 = vector.extract_strided_slice %252 {offsets = [0, 256], sizes = [8, 128], strides = [1, 1]} : vector<8x384xf32> to vector<8x128xf32>
    %256 = vector.extract_strided_slice %246 {offsets = [0, 384], sizes = [8, 128], strides = [1, 1]} : vector<8x512xf32> to vector<8x128xf32>
    %257 = math.tanh %256 : vector<8x128xf32>
    %258 = arith.mulf %254, %239 : vector<8x128xf32>
    %259 = arith.mulf %253, %257 : vector<8x128xf32>
    %260 = arith.addf %258, %259 : vector<8x128xf32>
    %261 = math.tanh %260 : vector<8x128xf32>
    %262 = arith.mulf %255, %261 : vector<8x128xf32>
    %c24_104 = arith.constant 24 : index
    %c0_105 = arith.constant 0 : index
    %263 = vector.load %arg11[%c24_104, %c0_105] : memref<64x512xf32, #tpu.memory_space<vmem>>, vector<8x512xf32>
    %264 = arith.truncf %262 : vector<8x128xf32> to vector<8x128xbf16>
    %c0_106 = arith.constant 0 : index
    %c0_107 = arith.constant 0 : index
    %265 = vector.load %arg6[%c0_106, %c0_107] : memref<128x512xbf16, #tpu.memory_space<vmem>>, vector<128x512xbf16>
    %cst_108 = arith.constant dense<0.000000e+00> : vector<8x512xf32>
    %266 = tpu.matmul %264, %265, %cst_108 {dimension_numbers = #tpu.dot_dimension_numbers<[1], [0], [0], [1], [0, 0, 1, 1], [], []>} : vector<8x128xbf16>, vector<128x512xbf16>, vector<8x512xf32> -> vector<8x512xf32>
    %267 = arith.addf %263, %266 : vector<8x512xf32>
    %268 = vector.extract_strided_slice %267 {offsets = [0, 0], sizes = [8, 384], strides = [1, 1]} : vector<8x512xf32> to vector<8x384xf32>
    %269 = arith.negf %268 : vector<8x384xf32>
    %270 = math.exp %269 : vector<8x384xf32>
    %cst_109 = arith.constant 1.000000e+00 : f32
    %271 = vector.broadcast %cst_109 : f32 to vector<8x384xf32>
    %272 = arith.addf %271, %270 : vector<8x384xf32>
    %273 = arith.divf %271, %272 : vector<8x384xf32>
    %274 = vector.extract_strided_slice %273 {offsets = [0, 0], sizes = [8, 128], strides = [1, 1]} : vector<8x384xf32> to vector<8x128xf32>
    %275 = vector.extract_strided_slice %273 {offsets = [0, 128], sizes = [8, 128], strides = [1, 1]} : vector<8x384xf32> to vector<8x128xf32>
    %276 = vector.extract_strided_slice %273 {offsets = [0, 256], sizes = [8, 128], strides = [1, 1]} : vector<8x384xf32> to vector<8x128xf32>
    %277 = vector.extract_strided_slice %267 {offsets = [0, 384], sizes = [8, 128], strides = [1, 1]} : vector<8x512xf32> to vector<8x128xf32>
    %278 = math.tanh %277 : vector<8x128xf32>
    %279 = arith.mulf %275, %260 : vector<8x128xf32>
    %280 = arith.mulf %274, %278 : vector<8x128xf32>
    %281 = arith.addf %279, %280 : vector<8x128xf32>
    %282 = math.tanh %281 : vector<8x128xf32>
    %283 = arith.mulf %276, %282 : vector<8x128xf32>
    %c32_110 = arith.constant 32 : index
    %c0_111 = arith.constant 0 : index
    %284 = vector.load %arg11[%c32_110, %c0_111] : memref<64x512xf32, #tpu.memory_space<vmem>>, vector<8x512xf32>
    %285 = arith.truncf %283 : vector<8x128xf32> to vector<8x128xbf16>
    %c0_112 = arith.constant 0 : index
    %c0_113 = arith.constant 0 : index
    %286 = vector.load %arg6[%c0_112, %c0_113] : memref<128x512xbf16, #tpu.memory_space<vmem>>, vector<128x512xbf16>
    %cst_114 = arith.constant dense<0.000000e+00> : vector<8x512xf32>
    %287 = tpu.matmul %285, %286, %cst_114 {dimension_numbers = #tpu.dot_dimension_numbers<[1], [0], [0], [1], [0, 0, 1, 1], [], []>} : vector<8x128xbf16>, vector<128x512xbf16>, vector<8x512xf32> -> vector<8x512xf32>
    %288 = arith.addf %284, %287 : vector<8x512xf32>
    %289 = vector.extract_strided_slice %288 {offsets = [0, 0], sizes = [8, 384], strides = [1, 1]} : vector<8x512xf32> to vector<8x384xf32>
    %290 = arith.negf %289 : vector<8x384xf32>
    %291 = math.exp %290 : vector<8x384xf32>
    %cst_115 = arith.constant 1.000000e+00 : f32
    %292 = vector.broadcast %cst_115 : f32 to vector<8x384xf32>
    %293 = arith.addf %292, %291 : vector<8x384xf32>
    %294 = arith.divf %292, %293 : vector<8x384xf32>
    %295 = vector.extract_strided_slice %294 {offsets = [0, 0], sizes = [8, 128], strides = [1, 1]} : vector<8x384xf32> to vector<8x128xf32>
    %296 = vector.extract_strided_slice %294 {offsets = [0, 128], sizes = [8, 128], strides = [1, 1]} : vector<8x384xf32> to vector<8x128xf32>
    %297 = vector.extract_strided_slice %294 {offsets = [0, 256], sizes = [8, 128], strides = [1, 1]} : vector<8x384xf32> to vector<8x128xf32>
    %298 = vector.extract_strided_slice %288 {offsets = [0, 384], sizes = [8, 128], strides = [1, 1]} : vector<8x512xf32> to vector<8x128xf32>
    %299 = math.tanh %298 : vector<8x128xf32>
    %300 = arith.mulf %296, %281 : vector<8x128xf32>
    %301 = arith.mulf %295, %299 : vector<8x128xf32>
    %302 = arith.addf %300, %301 : vector<8x128xf32>
    %303 = math.tanh %302 : vector<8x128xf32>
    %304 = arith.mulf %297, %303 : vector<8x128xf32>
    %c40_116 = arith.constant 40 : index
    %c0_117 = arith.constant 0 : index
    %305 = vector.load %arg11[%c40_116, %c0_117] : memref<64x512xf32, #tpu.memory_space<vmem>>, vector<8x512xf32>
    %306 = arith.truncf %304 : vector<8x128xf32> to vector<8x128xbf16>
    %c0_118 = arith.constant 0 : index
    %c0_119 = arith.constant 0 : index
    %307 = vector.load %arg6[%c0_118, %c0_119] : memref<128x512xbf16, #tpu.memory_space<vmem>>, vector<128x512xbf16>
    %cst_120 = arith.constant dense<0.000000e+00> : vector<8x512xf32>
    %308 = tpu.matmul %306, %307, %cst_120 {dimension_numbers = #tpu.dot_dimension_numbers<[1], [0], [0], [1], [0, 0, 1, 1], [], []>} : vector<8x128xbf16>, vector<128x512xbf16>, vector<8x512xf32> -> vector<8x512xf32>
    %309 = arith.addf %305, %308 : vector<8x512xf32>
    %310 = vector.extract_strided_slice %309 {offsets = [0, 0], sizes = [8, 384], strides = [1, 1]} : vector<8x512xf32> to vector<8x384xf32>
    %311 = arith.negf %310 : vector<8x384xf32>
    %312 = math.exp %311 : vector<8x384xf32>
    %cst_121 = arith.constant 1.000000e+00 : f32
    %313 = vector.broadcast %cst_121 : f32 to vector<8x384xf32>
    %314 = arith.addf %313, %312 : vector<8x384xf32>
    %315 = arith.divf %313, %314 : vector<8x384xf32>
    %316 = vector.extract_strided_slice %315 {offsets = [0, 0], sizes = [8, 128], strides = [1, 1]} : vector<8x384xf32> to vector<8x128xf32>
    %317 = vector.extract_strided_slice %315 {offsets = [0, 128], sizes = [8, 128], strides = [1, 1]} : vector<8x384xf32> to vector<8x128xf32>
    %318 = vector.extract_strided_slice %315 {offsets = [0, 256], sizes = [8, 128], strides = [1, 1]} : vector<8x384xf32> to vector<8x128xf32>
    %319 = vector.extract_strided_slice %309 {offsets = [0, 384], sizes = [8, 128], strides = [1, 1]} : vector<8x512xf32> to vector<8x128xf32>
    %320 = math.tanh %319 : vector<8x128xf32>
    %321 = arith.mulf %317, %302 : vector<8x128xf32>
    %322 = arith.mulf %316, %320 : vector<8x128xf32>
    %323 = arith.addf %321, %322 : vector<8x128xf32>
    %324 = math.tanh %323 : vector<8x128xf32>
    %325 = arith.mulf %318, %324 : vector<8x128xf32>
    %c48_122 = arith.constant 48 : index
    %c0_123 = arith.constant 0 : index
    %326 = vector.load %arg11[%c48_122, %c0_123] : memref<64x512xf32, #tpu.memory_space<vmem>>, vector<8x512xf32>
    %327 = arith.truncf %325 : vector<8x128xf32> to vector<8x128xbf16>
    %c0_124 = arith.constant 0 : index
    %c0_125 = arith.constant 0 : index
    %328 = vector.load %arg6[%c0_124, %c0_125] : memref<128x512xbf16, #tpu.memory_space<vmem>>, vector<128x512xbf16>
    %cst_126 = arith.constant dense<0.000000e+00> : vector<8x512xf32>
    %329 = tpu.matmul %327, %328, %cst_126 {dimension_numbers = #tpu.dot_dimension_numbers<[1], [0], [0], [1], [0, 0, 1, 1], [], []>} : vector<8x128xbf16>, vector<128x512xbf16>, vector<8x512xf32> -> vector<8x512xf32>
    %330 = arith.addf %326, %329 : vector<8x512xf32>
    %331 = vector.extract_strided_slice %330 {offsets = [0, 0], sizes = [8, 384], strides = [1, 1]} : vector<8x512xf32> to vector<8x384xf32>
    %332 = arith.negf %331 : vector<8x384xf32>
    %333 = math.exp %332 : vector<8x384xf32>
    %cst_127 = arith.constant 1.000000e+00 : f32
    %334 = vector.broadcast %cst_127 : f32 to vector<8x384xf32>
    %335 = arith.addf %334, %333 : vector<8x384xf32>
    %336 = arith.divf %334, %335 : vector<8x384xf32>
    %337 = vector.extract_strided_slice %336 {offsets = [0, 0], sizes = [8, 128], strides = [1, 1]} : vector<8x384xf32> to vector<8x128xf32>
    %338 = vector.extract_strided_slice %336 {offsets = [0, 128], sizes = [8, 128], strides = [1, 1]} : vector<8x384xf32> to vector<8x128xf32>
    %339 = vector.extract_strided_slice %336 {offsets = [0, 256], sizes = [8, 128], strides = [1, 1]} : vector<8x384xf32> to vector<8x128xf32>
    %340 = vector.extract_strided_slice %330 {offsets = [0, 384], sizes = [8, 128], strides = [1, 1]} : vector<8x512xf32> to vector<8x128xf32>
    %341 = math.tanh %340 : vector<8x128xf32>
    %342 = arith.mulf %338, %323 : vector<8x128xf32>
    %343 = arith.mulf %337, %341 : vector<8x128xf32>
    %344 = arith.addf %342, %343 : vector<8x128xf32>
    %345 = math.tanh %344 : vector<8x128xf32>
    %346 = arith.mulf %339, %345 : vector<8x128xf32>
    %c56_128 = arith.constant 56 : index
    %c0_129 = arith.constant 0 : index
    %347 = vector.load %arg11[%c56_128, %c0_129] : memref<64x512xf32, #tpu.memory_space<vmem>>, vector<8x512xf32>
    %348 = arith.truncf %346 : vector<8x128xf32> to vector<8x128xbf16>
    %c0_130 = arith.constant 0 : index
    %c0_131 = arith.constant 0 : index
    %349 = vector.load %arg6[%c0_130, %c0_131] : memref<128x512xbf16, #tpu.memory_space<vmem>>, vector<128x512xbf16>
    %cst_132 = arith.constant dense<0.000000e+00> : vector<8x512xf32>
    %350 = tpu.matmul %348, %349, %cst_132 {dimension_numbers = #tpu.dot_dimension_numbers<[1], [0], [0], [1], [0, 0, 1, 1], [], []>} : vector<8x128xbf16>, vector<128x512xbf16>, vector<8x512xf32> -> vector<8x512xf32>
    %351 = arith.addf %347, %350 : vector<8x512xf32>
    %352 = vector.extract_strided_slice %351 {offsets = [0, 0], sizes = [8, 384], strides = [1, 1]} : vector<8x512xf32> to vector<8x384xf32>
    %353 = arith.negf %352 : vector<8x384xf32>
    %354 = math.exp %353 : vector<8x384xf32>
    %cst_133 = arith.constant 1.000000e+00 : f32
    %355 = vector.broadcast %cst_133 : f32 to vector<8x384xf32>
    %356 = arith.addf %355, %354 : vector<8x384xf32>
    %357 = arith.divf %355, %356 : vector<8x384xf32>
    %358 = vector.extract_strided_slice %357 {offsets = [0, 0], sizes = [8, 128], strides = [1, 1]} : vector<8x384xf32> to vector<8x128xf32>
    %359 = vector.extract_strided_slice %357 {offsets = [0, 128], sizes = [8, 128], strides = [1, 1]} : vector<8x384xf32> to vector<8x128xf32>
    %360 = vector.extract_strided_slice %357 {offsets = [0, 256], sizes = [8, 128], strides = [1, 1]} : vector<8x384xf32> to vector<8x128xf32>
    %361 = vector.extract_strided_slice %351 {offsets = [0, 384], sizes = [8, 128], strides = [1, 1]} : vector<8x512xf32> to vector<8x128xf32>
    %362 = math.tanh %361 : vector<8x128xf32>
    %363 = arith.mulf %359, %344 : vector<8x128xf32>
    %364 = arith.mulf %358, %362 : vector<8x128xf32>
    %365 = arith.addf %363, %364 : vector<8x128xf32>
    %366 = math.tanh %365 : vector<8x128xf32>
    %367 = arith.mulf %360, %366 : vector<8x128xf32>
    %c0_134 = arith.constant 0 : index
    %c0_135 = arith.constant 0 : index
    %368 = vector.load %arg14[%c0_134, %c0_135] : memref<8x128xf32, #tpu.memory_space<vmem>>, vector<8x128xf32>
    tpu.vector_store %arg14[%c0_134, %c0_135], %367 {strides = array<i32>} : memref<8x128xf32, #tpu.memory_space<vmem>>, vector<8x128xf32>,
    %c0_136 = arith.constant 0 : index
    %c0_137 = arith.constant 0 : index
    %369 = vector.load %arg15[%c0_136, %c0_137] : memref<8x128xf32, #tpu.memory_space<vmem>>, vector<8x128xf32>
    tpu.vector_store %arg15[%c0_136, %c0_137], %365 {strides = array<i32>} : memref<8x128xf32, #tpu.memory_space<vmem>>, vector<8x128xf32>,
    %c0_i32_138 = arith.constant 0 : i32
    %370 = arith.cmpi eq, %arg0, %c0_i32_138 : i32
    %371 = arith.extui %370 : i1 to i32
    %c0_i32_139 = arith.constant 0 : i32
    %372 = arith.cmpi ne, %371, %c0_i32_139 : i32
    scf.if %372 {
      %c0_140 = arith.constant 0 : index
      %c0_141 = arith.constant 0 : index
      %373 = vector.load %arg14[%c0_140, %c0_141] : memref<8x128xf32, #tpu.memory_space<vmem>>, vector<8x128xf32>
      %374 = arith.truncf %373 : vector<8x128xf32> to vector<8x128xbf16>
      %c0_142 = arith.constant 0 : index
      %c0_143 = arith.constant 0 : index
      %375 = vector.load %arg8[%c0_142, %c0_143] : memref<128x128xbf16, #tpu.memory_space<vmem>>, vector<128x128xbf16>
      %cst_144 = arith.constant dense<0.000000e+00> : vector<8x128xf32>
      %376 = tpu.matmul %374, %375, %cst_144 {dimension_numbers = #tpu.dot_dimension_numbers<[1], [0], [0], [1], [0, 0, 1, 1], [], []>} : vector<8x128xbf16>, vector<128x128xbf16>, vector<8x128xf32> -> vector<8x128xf32>
      %c0_145 = arith.constant 0 : index
      %c0_146 = arith.constant 0 : index
      %377 = vector.load %arg9[%c0_145, %c0_146] : memref<1x128xf32, #tpu.memory_space<vmem>>, vector<1x128xf32>
      %378 = vector.broadcast %377 : vector<1x128xf32> to vector<8x128xf32>
      %379 = arith.addf %376, %378 : vector<8x128xf32>
      %c0_147 = arith.constant 0 : index
      %c0_148 = arith.constant 0 : index
      %380 = vector.load %arg10[%c0_147, %c0_148] : memref<8x128xf32, #tpu.memory_space<vmem>>, vector<8x128xf32>
      tpu.vector_store %arg10[%c0_147, %c0_148], %379 {strides = array<i32>} : memref<8x128xf32, #tpu.memory_space<vmem>>, vector<8x128xf32>,
    } else {
    }
    return
  }
  func.func @transform_0(%arg0: i32) -> (i32, i32) {
    %c0_i32 = arith.constant 0 : i32
    %c0_i32_0 = arith.constant 0 : i32
    return %arg0, %c0_i32 : i32, i32
  }
  func.func @transform_1(%arg0: i32) -> (i32, i32) {
    %c0_i32 = arith.constant 0 : i32
    %c0_i32_0 = arith.constant 0 : i32
    %c0_i32_1 = arith.constant 0 : i32
    return %c0_i32, %c0_i32_0 : i32, i32
  }
  func.func @transform_2(%arg0: i32) -> (i32, i32) {
    %c0_i32 = arith.constant 0 : i32
    %c0_i32_0 = arith.constant 0 : i32
    %c0_i32_1 = arith.constant 0 : i32
    return %c0_i32, %c0_i32_0 : i32, i32
  }
  func.func @transform_3(%arg0: i32) -> (i32, i32) {
    %c0_i32 = arith.constant 0 : i32
    %c0_i32_0 = arith.constant 0 : i32
    %c0_i32_1 = arith.constant 0 : i32
    return %c0_i32, %c0_i32_0 : i32, i32
  }
  func.func @transform_4(%arg0: i32) -> (i32, i32) {
    %c0_i32 = arith.constant 0 : i32
    %c0_i32_0 = arith.constant 0 : i32
    %c0_i32_1 = arith.constant 0 : i32
    return %c0_i32, %c0_i32_0 : i32, i32
  }
  func.func @transform_5(%arg0: i32) -> (i32, i32) {
    %c0_i32 = arith.constant 0 : i32
    %c0_i32_0 = arith.constant 0 : i32
    %c0_i32_1 = arith.constant 0 : i32
    return %c0_i32, %c0_i32_0 : i32, i32
  }
  func.func @transform_6(%arg0: i32) -> (i32, i32) {
    %c0_i32 = arith.constant 0 : i32
    %c0_i32_0 = arith.constant 0 : i32
    %c0_i32_1 = arith.constant 0 : i32
    return %c0_i32, %c0_i32_0 : i32, i32
  }
  func.func @transform_7(%arg0: i32) -> (i32, i32) {
    %c0_i32 = arith.constant 0 : i32
    %c0_i32_0 = arith.constant 0 : i32
    %c0_i32_1 = arith.constant 0 : i32
    return %c0_i32, %c0_i32_0 : i32, i32
  }
  func.func @transform_8(%arg0: i32) -> (i32, i32) {
    %c0_i32 = arith.constant 0 : i32
    %c0_i32_0 = arith.constant 0 : i32
    %c0_i32_1 = arith.constant 0 : i32
    return %c0_i32, %c0_i32_0 : i32, i32
  }
  func.func @transform_9(%arg0: i32) -> (i32, i32) {
    %c0_i32 = arith.constant 0 : i32
    %c0_i32_0 = arith.constant 0 : i32
    %c0_i32_1 = arith.constant 0 : i32
    return %c0_i32, %c0_i32_0 : i32, i32
  }
}

</mosaic_0001>

<llo_original>
// kernel: lstm_model_forward.1
$region0: #{lstm_model_forward.1}
  #allocation0 [shape = 'u32[]', space=smem, size = 0x4, offset = 0x4, fixed_abs, tag = 'smem constant byte address 0x4 - core index']
  #allocation1 [shape = 'u32[144,128]{1,0:T(1,128)}', space=vmem, size = 0x12000, scoped, tag = 'internal scratch']
  #allocation2 [shape = 'f32[64,512]{1,0:T(8,128)}', space=vmem, size = 0x20000, scoped, tag = 'scratch operand']
  #allocation3 [shape = 'f32[8,128]{1,0:T(8,128)}', space=vmem, size = 0x1000, scoped, tag = 'scratch operand']
  #allocation4 [shape = 'f32[8,128]{1,0:T(8,128)}', space=vmem, size = 0x1000, scoped, tag = 'scratch operand']
  #allocation5 [shape = 'f32[8,128]{1,0:T(8,128)}', space=vmem, size = 0x1000, scoped, tag = 'scratch operand']
  #allocation6 [shape = 'f32[8,128]{1,0:T(8,128)}', space=vmem, size = 0x1000, scoped, tag = 'scratch operand']
  #allocation7 [shape = 'f32[64,128]{1,0:T(8,128)}', space=vmem, size = 0x8000, scoped, tag = 'scratch operand']
  %s0 = inlined_call_operand.vmem [shape: bf16[64,128], index: 0, kind: input, shape index: {}]
  %s1 = inlined_call_operand.vmem [shape: bf16[128,512], index: 1, kind: input, shape index: {}]
  %s2 = inlined_call_operand.vmem [shape: bf16[128,512], index: 2, kind: input, shape index: {}]
  %s3 = inlined_call_operand.vmem [shape: f32[1,512], index: 3, kind: input, shape index: {}]
  %s4 = inlined_call_operand.vmem [shape: bf16[128,512], index: 4, kind: input, shape index: {}]
  %s5 = inlined_call_operand.vmem [shape: bf16[128,512], index: 5, kind: input, shape index: {}]
  %s6 = inlined_call_operand.vmem [shape: f32[1,512], index: 6, kind: input, shape index: {}]
  %s7 = inlined_call_operand.vmem [shape: bf16[128,128], index: 7, kind: input, shape index: {}]
  %s8 = inlined_call_operand.vmem [shape: f32[1,128], index: 8, kind: input, shape index: {}]
  %s9 = inlined_call_operand.vmem [shape: f32[8,128], index: 9, kind: output, shape index: {}]
  %s10 = sld [smem:[#allocation0]]
  $region54: #{lstm_model_forward.1} parent=0
    _
  %s12 = ssub.s32 1, %s10
  %s13 = scalar_select 0, %s12, %s10
  // Predicated region
  $region2: #{lstm_model_forward.1} parent=0 // pred_check
    _
  $region3: #{lstm_model_forward.1} parent=0 // pred_check_branch
    %15 = sbr.rel (0) target = $region5
  $region4: #{lstm_model_forward.1} parent=0 // pred_region
    _
  $region5: #{lstm_model_forward.1} parent=0 // pred_fallthru
    _
  // Predicated region
  $region6: #{lstm_model_forward.1} parent=0 // pred_check
    _
  $region7: #{lstm_model_forward.1} parent=0 // pred_check_branch
    %17 = sbr.rel (0) target = $region9
  $region8: #{lstm_model_forward.1} parent=0 // pred_region
    _
  $region9: #{lstm_model_forward.1} parent=0 // pred_fallthru
    _
  // Predicated region
  $region10: #{lstm_model_forward.1} parent=0 // pred_check
    _
  $region11: #{lstm_model_forward.1} parent=0 // pred_check_branch
    %19 = sbr.rel (0) target = $region13
  $region12: #{lstm_model_forward.1} parent=0 // pred_region
    _
  $region13: #{lstm_model_forward.1} parent=0 // pred_fallthru
    _
  // Predicated region
  $region14: #{lstm_model_forward.1} parent=0 // pred_check
    _
  $region15: #{lstm_model_forward.1} parent=0 // pred_check_branch
    %21 = sbr.rel (0) target = $region17
  $region16: #{lstm_model_forward.1} parent=0 // pred_region
    _
  $region17: #{lstm_model_forward.1} parent=0 // pred_fallthru
    _
  // Predicated region
  $region18: #{lstm_model_forward.1} parent=0 // pred_check
    _
  $region19: #{lstm_model_forward.1} parent=0 // pred_check_branch
    %23 = sbr.rel (0) target = $region21
  $region20: #{lstm_model_forward.1} parent=0 // pred_region
    _
  $region21: #{lstm_model_forward.1} parent=0 // pred_fallthru
    _
  // Predicated region
  $region22: #{lstm_model_forward.1} parent=0 // pred_check
    _
  $region23: #{lstm_model_forward.1} parent=0 // pred_check_branch
    %25 = sbr.rel (0) target = $region25
  $region24: #{lstm_model_forward.1} parent=0 // pred_region
    _
  $region25: #{lstm_model_forward.1} parent=0 // pred_fallthru
    _
  // Predicated region
  $region26: #{lstm_model_forward.1} parent=0 // pred_check
    _
  $region27: #{lstm_model_forward.1} parent=0 // pred_check_branch
    %27 = sbr.rel (0) target = $region29
  $region28: #{lstm_model_forward.1} parent=0 // pred_region
    _
  $region29: #{lstm_model_forward.1} parent=0 // pred_fallthru
    _
  // Predicated region
  $region30: #{lstm_model_forward.1} parent=0 // pred_check
    _
  $region31: #{lstm_model_forward.1} parent=0 // pred_check_branch
    %29 = sbr.rel (0) target = $region33
  $region32: #{lstm_model_forward.1} parent=0 // pred_region
    _
  $region33: #{lstm_model_forward.1} parent=0 // pred_fallthru
    _
  // Predicated region
  $region34: #{lstm_model_forward.1} parent=0 // pred_check
    _
  $region35: #{lstm_model_forward.1} parent=0 // pred_check_branch
    %31 = sbr.rel (0) target = $region37
  $region36: #{lstm_model_forward.1} parent=0 // pred_region
    _
  $region37: #{lstm_model_forward.1} parent=0 // pred_fallthru
    _
  %p33 = scmp.eq.s32.totalorder 0, 0
  // Predicated region
  $region38: #{lstm_model_forward.1} parent=0 // pred_check
    %p34 = pneg %p33
  $region39: #{lstm_model_forward.1} parent=0 // pred_check_branch
    %36 = sbr.rel (%p34) target = $region41
  $region40: #{lstm_model_forward.1} parent=0 // pred_region
    %37 = vst [vmem:[#allocation3] sm:$0xff] 0.0
    %38 = vst [vmem:[#allocation4] sm:$0xff] 0.0
    %39 = vst [vmem:[#allocation5] sm:$0xff] 0.0
    %40 = vst [vmem:[#allocation6] sm:$0xff] 0.0
  $region41: #{lstm_model_forward.1} parent=0 // pred_fallthru
    _
  %v41 = vld [vmem:[%s0] sm:$0xf]
  %v42 = vld [vmem:[%s0 + $0x4] sm:$0xf]
  %v43 = vld [vmem:[%s0 + $0x8] sm:$0xf]
  %v44 = vld [vmem:[%s0 + $0xc] sm:$0xf]
  %v45 = vld [vmem:[%s0 + $0x10] sm:$0xf]
  %v46 = vld [vmem:[%s0 + $0x14] sm:$0xf]
  %v47 = vld [vmem:[%s0 + $0x18] sm:$0xf]
  %v48 = vld [vmem:[%s0 + $0x1c] sm:$0xf]
  %v49 = vld [vmem:[%s1] sm:$0xff]
  %v50 = vld [vmem:[%s1 + $0x8] sm:$0xff]
  %v51 = vld [vmem:[%s1 + $0x10] sm:$0xff]
  %v52 = vld [vmem:[%s1 + $0x18] sm:$0xff]
  %v53 = vld [vmem:[%s1 + $0x20] sm:$0xff]
  %v54 = vld [vmem:[%s1 + $0x28] sm:$0xff]
  %v55 = vld [vmem:[%s1 + $0x30] sm:$0xff]
  %v56 = vld [vmem:[%s1 + $0x38] sm:$0xff]
  %v57 = vld [vmem:[%s1 + $0x40] sm:$0xff]
  %v58 = vld [vmem:[%s1 + $0x48] sm:$0xff]
  %v59 = vld [vmem:[%s1 + $0x50] sm:$0xff]
  %v60 = vld [vmem:[%s1 + $0x58] sm:$0xff]
  %v61 = vld [vmem:[%s1 + $0x60] sm:$0xff]
  %v62 = vld [vmem:[%s1 + $0x68] sm:$0xff]
  %v63 = vld [vmem:[%s1 + $0x70] sm:$0xff]
  %v64 = vld [vmem:[%s1 + $0x78] sm:$0xff]
  %v65 = vld [vmem:[%s1 + $0x80] sm:$0xff]
  %v66 = vld [vmem:[%s1 + $0x88] sm:$0xff]
  %v67 = vld [vmem:[%s1 + $0x90] sm:$0xff]
  %v68 = vld [vmem:[%s1 + $0x98] sm:$0xff]
  %v69 = vld [vmem:[%s1 + $0xa0] sm:$0xff]
  %v70 = vld [vmem:[%s1 + $0xa8] sm:$0xff]
  %v71 = vld [vmem:[%s1 + $0xb0] sm:$0xff]
  %v72 = vld [vmem:[%s1 + $0xb8] sm:$0xff]
  %v73 = vld [vmem:[%s1 + $0xc0] sm:$0xff]
  %v74 = vld [vmem:[%s1 + $0xc8] sm:$0xff]
  %v75 = vld [vmem:[%s1 + $0xd0] sm:$0xff]
  %v76 = vld [vmem:[%s1 + $0xd8] sm:$0xff]
  %v77 = vld [vmem:[%s1 + $0xe0] sm:$0xff]
  %v78 = vld [vmem:[%s1 + $0xe8] sm:$0xff]
  %v79 = vld [vmem:[%s1 + $0xf0] sm:$0xff]
  %v80 = vld [vmem:[%s1 + $0xf8] sm:$0xff]
  %v81 = vld [vmem:[%s3] sm:$0xf]
  %v83 = vlaneseq
  %v84 = vshrl.u32 %v83, 7
  %v85 = vsub.s32 0, %v84
  %v86 = vrot.slane %v81, %v85
  %v87 = vlaneseq
  %v88 = vshrl.u32 %v87, 7
  %v89 = vsub.s32 1, %v88
  %v90 = vrot.slane %v81, %v89
  %v91 = vlaneseq
  %v92 = vshrl.u32 %v91, 7
  %v93 = vsub.s32 2, %v92
  %v94 = vrot.slane %v81, %v93
  %v95 = vlaneseq
  %v96 = vshrl.u32 %v95, 7
  %v97 = vsub.s32 3, %v96
  %v98 = vrot.slane %v81, %v97
  %v111 = vunpack.c.l.b16 %v41
  %v112 = vunpack.c.l.b16 %v42
  %v113 = vunpack.c.l.b16 %v43
  %v114 = vunpack.c.l.b16 %v44
  %v115 = vunpack.c.l.b16 %v45
  %v116 = vunpack.c.l.b16 %v46
  %v117 = vunpack.c.l.b16 %v47
  %v118 = vunpack.c.l.b16 %v48
  %v119 = vpack.c.b16 %v112, %v111
  %v120 = vpack.c.b16 %v114, %v113
  %v121 = vpack.c.b16 %v116, %v115
  %v122 = vpack.c.b16 %v118, %v117
  %v159 = vunpack.c.l.b16 %v49
  %v160 = vunpack.c.h.b16 %v49
  %v161 = vunpack.c.l.b16 %v50
  %v162 = vunpack.c.h.b16 %v50
  %v163 = vunpack.c.l.b16 %v51
  %v164 = vunpack.c.h.b16 %v51
  %v165 = vunpack.c.l.b16 %v52
  %v166 = vunpack.c.h.b16 %v52
  %v167 = vunpack.c.l.b16 %v53
  %v168 = vunpack.c.h.b16 %v53
  %v169 = vunpack.c.l.b16 %v54
  %v170 = vunpack.c.h.b16 %v54
  %v171 = vunpack.c.l.b16 %v55
  %v172 = vunpack.c.h.b16 %v55
  %v173 = vunpack.c.l.b16 %v56
  %v174 = vunpack.c.h.b16 %v56
  %v175 = vunpack.c.l.b16 %v57
  %v176 = vunpack.c.h.b16 %v57
  %v177 = vunpack.c.l.b16 %v58
  %v178 = vunpack.c.h.b16 %v58
  %v179 = vunpack.c.l.b16 %v59
  %v180 = vunpack.c.h.b16 %v59
  %v181 = vunpack.c.l.b16 %v60
  %v182 = vunpack.c.h.b16 %v60
  %v183 = vunpack.c.l.b16 %v61
  %v184 = vunpack.c.h.b16 %v61
  %v185 = vunpack.c.l.b16 %v62
  %v186 = vunpack.c.h.b16 %v62
  %v187 = vunpack.c.l.b16 %v63
  %v188 = vunpack.c.h.b16 %v63
  %v189 = vunpack.c.l.b16 %v64
  %v190 = vunpack.c.h.b16 %v64
  %v191 = vunpack.c.l.b16 %v65
  %v192 = vunpack.c.h.b16 %v65
  %v193 = vunpack.c.l.b16 %v66
  %v194 = vunpack.c.h.b16 %v66
  %v195 = vunpack.c.l.b16 %v67
  %v196 = vunpack.c.h.b16 %v67
  %v197 = vunpack.c.l.b16 %v68
  %v198 = vunpack.c.h.b16 %v68
  %v199 = vunpack.c.l.b16 %v69
  %v200 = vunpack.c.h.b16 %v69
  %v201 = vunpack.c.l.b16 %v70
  %v202 = vunpack.c.h.b16 %v70
  %v203 = vunpack.c.l.b16 %v71
  %v204 = vunpack.c.h.b16 %v71
  %v205 = vunpack.c.l.b16 %v72
  %v206 = vunpack.c.h.b16 %v72
  %v207 = vunpack.c.l.b16 %v73
  %v208 = vunpack.c.h.b16 %v73
  %v209 = vunpack.c.l.b16 %v74
  %v210 = vunpack.c.h.b16 %v74
  %v211 = vunpack.c.l.b16 %v75
  %v212 = vunpack.c.h.b16 %v75
  %v213 = vunpack.c.l.b16 %v76
  %v214 = vunpack.c.h.b16 %v76
  %v215 = vunpack.c.l.b16 %v77
  %v216 = vunpack.c.h.b16 %v77
  %v217 = vunpack.c.l.b16 %v78
  %v218 = vunpack.c.h.b16 %v78
  %v219 = vunpack.c.l.b16 %v79
  %v220 = vunpack.c.h.b16 %v79
  %v221 = vunpack.c.l.b16 %v80
  %v222 = vunpack.c.h.b16 %v80
  %v223 = vpack.c.b16 %v163, %v159
  %v224 = vpack.c.b16 %v164, %v160
  %v225 = vpack.c.b16 %v165, %v161
  %v226 = vpack.c.b16 %v166, %v162
  %v227 = vpack.c.b16 %v171, %v167
  %v228 = vpack.c.b16 %v172, %v168
  %v229 = vpack.c.b16 %v173, %v169
  %v230 = vpack.c.b16 %v174, %v170
  %v231 = vpack.c.b16 %v179, %v175
  %v232 = vpack.c.b16 %v180, %v176
  %v233 = vpack.c.b16 %v181, %v177
  %v234 = vpack.c.b16 %v182, %v178
  %v235 = vpack.c.b16 %v187, %v183
  %v236 = vpack.c.b16 %v188, %v184
  %v237 = vpack.c.b16 %v189, %v185
  %v238 = vpack.c.b16 %v190, %v186
  %v239 = vpack.c.b16 %v195, %v191
  %v240 = vpack.c.b16 %v196, %v192
  %v241 = vpack.c.b16 %v197, %v193
  %v242 = vpack.c.b16 %v198, %v194
  %v243 = vpack.c.b16 %v203, %v199
  %v244 = vpack.c.b16 %v204, %v200
  %v245 = vpack.c.b16 %v205, %v201
  %v246 = vpack.c.b16 %v206, %v202
  %v247 = vpack.c.b16 %v211, %v207
  %v248 = vpack.c.b16 %v212, %v208
  %v249 = vpack.c.b16 %v213, %v209
  %v250 = vpack.c.b16 %v214, %v210
  %v251 = vpack.c.b16 %v219, %v215
  %v252 = vpack.c.b16 %v220, %v216
  %v253 = vpack.c.b16 %v221, %v217
  %v254 = vpack.c.b16 %v222, %v218
  %287 = vmatprep.subr.bf16.mxu0 %v252
  %288 = vmatpush1.bf16.msra.mxu0 %v251
  %289 = vmatprep.subr.bf16.mxu0 %v248
  %290 = vmatpush1.bf16.msra.mxu0 %v247
  %291 = vmatprep.subr.bf16.mxu0 %v244
  %292 = vmatpush1.bf16.msra.mxu0 %v243
  %293 = vmatprep.subr.bf16.mxu0 %v240
  %294 = vmatpush1.bf16.msra.mxu0 %v239
  %295 = vmatprep.subr.bf16.mxu0 %v236
  %296 = vmatpush1.bf16.msra.mxu0 %v235
  %297 = vmatprep.subr.bf16.mxu0 %v232
  %298 = vmatpush1.bf16.msra.mxu0 %v231
  %299 = vmatprep.subr.bf16.mxu0 %v228
  %300 = vmatpush1.bf16.msra.mxu0 %v227
  %301 = vmatprep.subr.bf16.mxu0 %v224
  %302 = vmatpush1.bf16.msra.mxu0 %v223
  %303 = vmatprep.subr.bf16.mxu0 0
  %304 = vmatpush2.bf16.msra.mxu0 0
  %305 = vmatprep.subr.bf16.mxu0 0
  %306 = vmatpush2.bf16.msra.mxu0 0
  %307 = vmatprep.subr.bf16.mxu0 0
  %308 = vmatpush2.bf16.msra.mxu0 0
  %309 = vmatprep.subr.bf16.mxu0 0
  %310 = vmatpush2.bf16.msra.mxu0 0
  %311 = vmatprep.subr.bf16.mxu0 0
  %312 = vmatpush2.bf16.msra.mxu0 0
  %313 = vmatprep.subr.bf16.mxu0 0
  %314 = vmatpush2.bf16.msra.mxu0 0
  %315 = vmatprep.subr.bf16.mxu0 0
  %316 = vmatpush2.bf16.msra.mxu0 0
  %317 = vmatprep.subr.bf16.mxu0 0
  %318 = vmatpush2.bf16.msra.mxu0 0
  %319 = vmatprep.mubr.bf16.mxu0 0
  %320 = vmatmul.mubr.bf16.gmra.mxu0 %v119
  %v321 = vpop.f32.mrf.mxu0
  %v322 = vadd.f32 %v86, %v321
  %v323 = vpop.f32.mrf.mxu0
  %v324 = vadd.f32 %v90, %v323
  %v325 = vpop.f32.mrf.mxu0
  %v326 = vadd.f32 %v86, %v325
  %v327 = vpop.f32.mrf.mxu0
  %v328 = vadd.f32 %v90, %v327
  %329 = vmatprep.mubr.bf16.mxu0 0
  %330 = vmatmul.mubr.bf16.gmra.mxu0 %v120
  %v331 = vpop.f32.mrf.mxu0
  %v332 = vadd.f32 %v86, %v331
  %v333 = vpop.f32.mrf.mxu0
  %v334 = vadd.f32 %v90, %v333
  %v335 = vpop.f32.mrf.mxu0
  %v336 = vadd.f32 %v86, %v335
  %v337 = vpop.f32.mrf.mxu0
  %v338 = vadd.f32 %v90, %v337
  %339 = vmatprep.mubr.bf16.mxu0 0
  %340 = vmatmul.mubr.bf16.gmra.mxu0 %v121
  %v341 = vpop.f32.mrf.mxu0
  %v342 = vadd.f32 %v86, %v341
  %v343 = vpop.f32.mrf.mxu0
  %v344 = vadd.f32 %v90, %v343
  %v345 = vpop.f32.mrf.mxu0
  %v346 = vadd.f32 %v86, %v345
  %v347 = vpop.f32.mrf.mxu0
  %v348 = vadd.f32 %v90, %v347
  %349 = vmatprep.mubr.bf16.mxu0 0
  %350 = vmatmul.mubr.bf16.gmra.mxu0 %v122
  %v351 = vpop.f32.mrf.mxu0
  %v352 = vadd.f32 %v86, %v351
  %v353 = vpop.f32.mrf.mxu0
  %v354 = vadd.f32 %v90, %v353
  %v355 = vpop.f32.mrf.mxu0
  %v356 = vadd.f32 %v86, %v355
  %v357 = vpop.f32.mrf.mxu0
  %v358 = vadd.f32 %v90, %v357
  %359 = vdwg.mxu0
  %360 = vmatprep.subr.bf16.mxu0 %v254
  %361 = vmatpush1.bf16.msra.mxu0 %v253
  %362 = vmatprep.subr.bf16.mxu0 %v250
  %363 = vmatpush1.bf16.msra.mxu0 %v249
  %364 = vmatprep.subr.bf16.mxu0 %v246
  %365 = vmatpush1.bf16.msra.mxu0 %v245
  %366 = vmatprep.subr.bf16.mxu0 %v242
  %367 = vmatpush1.bf16.msra.mxu0 %v241
  %368 = vmatprep.subr.bf16.mxu0 %v238
  %369 = vmatpush1.bf16.msra.mxu0 %v237
  %370 = vmatprep.subr.bf16.mxu0 %v234
  %371 = vmatpush1.bf16.msra.mxu0 %v233
  %372 = vmatprep.subr.bf16.mxu0 %v230
  %373 = vmatpush1.bf16.msra.mxu0 %v229
  %374 = vmatprep.subr.bf16.mxu0 %v226
  %375 = vmatpush1.bf16.msra.mxu0 %v225
  %376 = vmatprep.subr.bf16.mxu0 0
  %377 = vmatpush2.bf16.msra.mxu0 0
  %378 = vmatprep.subr.bf16.mxu0 0
  %379 = vmatpush2.bf16.msra.mxu0 0
  %380 = vmatprep.subr.bf16.mxu0 0
  %381 = vmatpush2.bf16.msra.mxu0 0
  %382 = vmatprep.subr.bf16.mxu0 0
  %383 = vmatpush2.bf16.msra.mxu0 0
  %384 = vmatprep.subr.bf16.mxu0 0
  %385 = vmatpush2.bf16.msra.mxu0 0
  %386 = vmatprep.subr.bf16.mxu0 0
  %387 = vmatpush2.bf16.msra.mxu0 0
  %388 = vmatprep.subr.bf16.mxu0 0
  %389 = vmatpush2.bf16.msra.mxu0 0
  %390 = vmatprep.subr.bf16.mxu0 0
  %391 = vmatpush2.bf16.msra.mxu0 0
  %392 = vmatprep.mubr.bf16.mxu0 0
  %393 = vmatmul.mubr.bf16.gmra.mxu0 %v119
  %v394 = vpop.f32.mrf.mxu0
  %v395 = vadd.f32 %v94, %v394
  %v396 = vpop.f32.mrf.mxu0
  %v397 = vadd.f32 %v98, %v396
  %v398 = vpop.f32.mrf.mxu0
  %v399 = vadd.f32 %v94, %v398
  %v400 = vpop.f32.mrf.mxu0
  %v401 = vadd.f32 %v98, %v400
  %402 = vmatprep.mubr.bf16.mxu0 0
  %403 = vmatmul.mubr.bf16.gmra.mxu0 %v120
  %v404 = vpop.f32.mrf.mxu0
  %v405 = vadd.f32 %v94, %v404
  %v406 = vpop.f32.mrf.mxu0
  %v407 = vadd.f32 %v98, %v406
  %v408 = vpop.f32.mrf.mxu0
  %v409 = vadd.f32 %v94, %v408
  %v410 = vpop.f32.mrf.mxu0
  %v411 = vadd.f32 %v98, %v410
  %412 = vmatprep.mubr.bf16.mxu0 0
  %413 = vmatmul.mubr.bf16.gmra.mxu0 %v121
  %v414 = vpop.f32.mrf.mxu0
  %v415 = vadd.f32 %v94, %v414
  %v416 = vpop.f32.mrf.mxu0
  %v417 = vadd.f32 %v98, %v416
  %v418 = vpop.f32.mrf.mxu0
  %v419 = vadd.f32 %v94, %v418
  %v420 = vpop.f32.mrf.mxu0
  %v421 = vadd.f32 %v98, %v420
  %422 = vmatprep.mubr.bf16.mxu0 0
  %423 = vmatmul.mubr.bf16.gmra.mxu0 %v122
  %v424 = vpop.f32.mrf.mxu0
  %v425 = vadd.f32 %v94, %v424
  %v426 = vpop.f32.mrf.mxu0
  %v427 = vadd.f32 %v98, %v426
  %v428 = vpop.f32.mrf.mxu0
  %v429 = vadd.f32 %v94, %v428
  %v430 = vpop.f32.mrf.mxu0
  %v431 = vadd.f32 %v98, %v430
  %432 = vdwg.mxu0
  %433 = vst [vmem:[#allocation2] sm:$0xff] %v322
  %434 = vst [vmem:[#allocation2 + $0x8] sm:$0xff] %v324
  %435 = vst [vmem:[#allocation2 + $0x10] sm:$0xff] %v395
  %436 = vst [vmem:[#allocation2 + $0x18] sm:$0xff] %v397
  %437 = vst [vmem:[#allocation2 + $0x20] sm:$0xff] %v326
  %438 = vst [vmem:[#allocation2 + $0x28] sm:$0xff] %v328
  %439 = vst [vmem:[#allocation2 + $0x30] sm:$0xff] %v399
  %440 = vst [vmem:[#allocation2 + $0x38] sm:$0xff] %v401
  %441 = vst [vmem:[#allocation2 + $0x40] sm:$0xff] %v332
  %442 = vst [vmem:[#allocation2 + $0x48] sm:$0xff] %v334
  %443 = vst [vmem:[#allocation2 + $0x50] sm:$0xff] %v405
  %444 = vst [vmem:[#allocation2 + $0x58] sm:$0xff] %v407
  %445 = vst [vmem:[#allocation2 + $0x60] sm:$0xff] %v336
  %446 = vst [vmem:[#allocation2 + $0x68] sm:$0xff] %v338
  %447 = vst [vmem:[#allocation2 + $0x70] sm:$0xff] %v409
  %448 = vst [vmem:[#allocation2 + $0x78] sm:$0xff] %v411
  %449 = vst [vmem:[#allocation2 + $0x80] sm:$0xff] %v342
  %450 = vst [vmem:[#allocation2 + $0x88] sm:$0xff] %v344
  %451 = vst [vmem:[#allocation2 + $0x90] sm:$0xff] %v415
  %452 = vst [vmem:[#allocation2 + $0x98] sm:$0xff] %v417
  %453 = vst [vmem:[#allocation2 + $0xa0] sm:$0xff] %v346
  %454 = vst [vmem:[#allocation2 + $0xa8] sm:$0xff] %v348
  %455 = vst [vmem:[#allocation2 + $0xb0] sm:$0xff] %v419
  %456 = vst [vmem:[#allocation2 + $0xb8] sm:$0xff] %v421
  %457 = vst [vmem:[#allocation2 + $0xc0] sm:$0xff] %v352
  %458 = vst [vmem:[#allocation2 + $0xc8] sm:$0xff] %v354
  %459 = vst [vmem:[#allocation2 + $0xd0] sm:$0xff] %v425
  %460 = vst [vmem:[#allocation2 + $0xd8] sm:$0xff] %v427
  %461 = vst [vmem:[#allocation2 + $0xe0] sm:$0xff] %v356
  %462 = vst [vmem:[#allocation2 + $0xe8] sm:$0xff] %v358
  %463 = vst [vmem:[#allocation2 + $0xf0] sm:$0xff] %v429
  %464 = vst [vmem:[#allocation2 + $0xf8] sm:$0xff] %v431
  %v465 = vld [vmem:[#allocation3] sm:$0xff]
  %v466 = vld [vmem:[#allocation4] sm:$0xff]
  %v467 = vld [vmem:[#allocation2] sm:$0xff]
  %v468 = vld [vmem:[#allocation2 + $0x8] sm:$0xff]
  %v469 = vld [vmem:[#allocation2 + $0x10] sm:$0xff]
  %v470 = vld [vmem:[#allocation2 + $0x18] sm:$0xff]
  %v471 = vpack.c.bf16 %v465, %v465
  %v472 = vld [vmem:[%s2] sm:$0xff]
  %v473 = vld [vmem:[%s2 + $0x8] sm:$0xff]
  %v474 = vld [vmem:[%s2 + $0x10] sm:$0xff]
  %v475 = vld [vmem:[%s2 + $0x18] sm:$0xff]
  %v476 = vld [vmem:[%s2 + $0x20] sm:$0xff]
  %v477 = vld [vmem:[%s2 + $0x28] sm:$0xff]
  %v478 = vld [vmem:[%s2 + $0x30] sm:$0xff]
  %v479 = vld [vmem:[%s2 + $0x38] sm:$0xff]
  %v480 = vld [vmem:[%s2 + $0x40] sm:$0xff]
  %v481 = vld [vmem:[%s2 + $0x48] sm:$0xff]
  %v482 = vld [vmem:[%s2 + $0x50] sm:$0xff]
  %v483 = vld [vmem:[%s2 + $0x58] sm:$0xff]
  %v484 = vld [vmem:[%s2 + $0x60] sm:$0xff]
  %v485 = vld [vmem:[%s2 + $0x68] sm:$0xff]
  %v486 = vld [vmem:[%s2 + $0x70] sm:$0xff]
  %v487 = vld [vmem:[%s2 + $0x78] sm:$0xff]
  %v488 = vld [vmem:[%s2 + $0x80] sm:$0xff]
  %v489 = vld [vmem:[%s2 + $0x88] sm:$0xff]
  %v490 = vld [vmem:[%s2 + $0x90] sm:$0xff]
  %v491 = vld [vmem:[%s2 + $0x98] sm:$0xff]
  %v492 = vld [vmem:[%s2 + $0xa0] sm:$0xff]
  %v493 = vld [vmem:[%s2 + $0xa8] sm:$0xff]
  %v494 = vld [vmem:[%s2 + $0xb0] sm:$0xff]
  %v495 = vld [vmem:[%s2 + $0xb8] sm:$0xff]
  %v496 = vld [vmem:[%s2 + $0xc0] sm:$0xff]
  %v497 = vld [vmem:[%s2 + $0xc8] sm:$0xff]
  %v498 = vld [vmem:[%s2 + $0xd0] sm:$0xff]
  %v499 = vld [vmem:[%s2 + $0xd8] sm:$0xff]
  %v500 = vld [vmem:[%s2 + $0xe0] sm:$0xff]
  %v501 = vld [vmem:[%s2 + $0xe8] sm:$0xff]
  %v502 = vld [vmem:[%s2 + $0xf0] sm:$0xff]
  %v503 = vld [vmem:[%s2 + $0xf8] sm:$0xff]
  %v536 = vunpack.c.l.b16 %v472
  %v537 = vunpack.c.h.b16 %v472
  %v538 = vunpack.c.l.b16 %v473
  %v539 = vunpack.c.h.b16 %v473
  %v540 = vunpack.c.l.b16 %v474
  %v541 = vunpack.c.h.b16 %v474
  %v542 = vunpack.c.l.b16 %v475
  %v543 = vunpack.c.h.b16 %v475
  %v544 = vunpack.c.l.b16 %v476
  %v545 = vunpack.c.h.b16 %v476
  %v546 = vunpack.c.l.b16 %v477
  %v547 = vunpack.c.h.b16 %v477
  %v548 = vunpack.c.l.b16 %v478
  %v549 = vunpack.c.h.b16 %v478
  %v550 = vunpack.c.l.b16 %v479
  %v551 = vunpack.c.h.b16 %v479
  %v552 = vunpack.c.l.b16 %v480
  %v553 = vunpack.c.h.b16 %v480
  %v554 = vunpack.c.l.b16 %v481
  %v555 = vunpack.c.h.b16 %v481
  %v556 = vunpack.c.l.b16 %v482
  %v557 = vunpack.c.h.b16 %v482
  %v558 = vunpack.c.l.b16 %v483
  %v559 = vunpack.c.h.b16 %v483
  %v560 = vunpack.c.l.b16 %v484
  %v561 = vunpack.c.h.b16 %v484
  %v562 = vunpack.c.l.b16 %v485
  %v563 = vunpack.c.h.b16 %v485
  %v564 = vunpack.c.l.b16 %v486
  %v565 = vunpack.c.h.b16 %v486
  %v566 = vunpack.c.l.b16 %v487
  %v567 = vunpack.c.h.b16 %v487
  %v568 = vunpack.c.l.b16 %v488
  %v569 = vunpack.c.h.b16 %v488
  %v570 = vunpack.c.l.b16 %v489
  %v571 = vunpack.c.h.b16 %v489
  %v572 = vunpack.c.l.b16 %v490
  %v573 = vunpack.c.h.b16 %v490
  %v574 = vunpack.c.l.b16 %v491
  %v575 = vunpack.c.h.b16 %v491
  %v576 = vunpack.c.l.b16 %v492
  %v577 = vunpack.c.h.b16 %v492
  %v578 = vunpack.c.l.b16 %v493
  %v579 = vunpack.c.h.b16 %v493
  %v580 = vunpack.c.l.b16 %v494
  %v581 = vunpack.c.h.b16 %v494
  %v582 = vunpack.c.l.b16 %v495
  %v583 = vunpack.c.h.b16 %v495
  %v584 = vunpack.c.l.b16 %v496
  %v585 = vunpack.c.h.b16 %v496
  %v586 = vunpack.c.l.b16 %v497
  %v587 = vunpack.c.h.b16 %v497
  %v588 = vunpack.c.l.b16 %v498
  %v589 = vunpack.c.h.b16 %v498
  %v590 = vunpack.c.l.b16 %v499
  %v591 = vunpack.c.h.b16 %v499
  %v592 = vunpack.c.l.b16 %v500
  %v593 = vunpack.c.h.b16 %v500
  %v594 = vunpack.c.l.b16 %v501
  %v595 = vunpack.c.h.b16 %v501
  %v596 = vunpack.c.l.b16 %v502
  %v597 = vunpack.c.h.b16 %v502
  %v598 = vunpack.c.l.b16 %v503
  %v599 = vunpack.c.h.b16 %v503
  %v600 = vpack.c.b16 %v540, %v536
  %v601 = vpack.c.b16 %v541, %v537
  %v602 = vpack.c.b16 %v542, %v538
  %v603 = vpack.c.b16 %v543, %v539
  %v604 = vpack.c.b16 %v548, %v544
  %v605 = vpack.c.b16 %v549, %v545
  %v606 = vpack.c.b16 %v550, %v546
  %v607 = vpack.c.b16 %v551, %v547
  %v608 = vpack.c.b16 %v556, %v552
  %v609 = vpack.c.b16 %v557, %v553
  %v610 = vpack.c.b16 %v558, %v554
  %v611 = vpack.c.b16 %v559, %v555
  %v612 = vpack.c.b16 %v564, %v560
  %v613 = vpack.c.b16 %v565, %v561
  %v614 = vpack.c.b16 %v566, %v562
  %v615 = vpack.c.b16 %v567, %v563
  %v616 = vpack.c.b16 %v572, %v568
  %v617 = vpack.c.b16 %v573, %v569
  %v618 = vpack.c.b16 %v574, %v570
  %v619 = vpack.c.b16 %v575, %v571
  %v620 = vpack.c.b16 %v580, %v576
  %v621 = vpack.c.b16 %v581, %v577
  %v622 = vpack.c.b16 %v582, %v578
  %v623 = vpack.c.b16 %v583, %v579
  %v624 = vpack.c.b16 %v588, %v584
  %v625 = vpack.c.b16 %v589, %v585
  %v626 = vpack.c.b16 %v590, %v586
  %v627 = vpack.c.b16 %v591, %v587
  %v628 = vpack.c.b16 %v596, %v592
  %v629 = vpack.c.b16 %v597, %v593
  %v630 = vpack.c.b16 %v598, %v594
  %v631 = vpack.c.b16 %v599, %v595
  %664 = vmatprep.subr.bf16.mxu0 %v629
  %665 = vmatpush1.bf16.msra.mxu0 %v628
  %666 = vmatprep.subr.bf16.mxu0 %v625
  %667 = vmatpush1.bf16.msra.mxu0 %v624
  %668 = vmatprep.subr.bf16.mxu0 %v621
  %669 = vmatpush1.bf16.msra.mxu0 %v620
  %670 = vmatprep.subr.bf16.mxu0 %v617
  %671 = vmatpush1.bf16.msra.mxu0 %v616
  %672 = vmatprep.subr.bf16.mxu0 %v613
  %673 = vmatpush1.bf16.msra.mxu0 %v612
  %674 = vmatprep.subr.bf16.mxu0 %v609
  %675 = vmatpush1.bf16.msra.mxu0 %v608
  %676 = vmatprep.subr.bf16.mxu0 %v605
  %677 = vmatpush1.bf16.msra.mxu0 %v604
  %678 = vmatprep.subr.bf16.mxu0 %v601
  %679 = vmatpush1.bf16.msra.mxu0 %v600
  %680 = vmatprep.subr.bf16.mxu0 0
  %681 = vmatpush2.bf16.msra.mxu0 0
  %682 = vmatprep.subr.bf16.mxu0 0
  %683 = vmatpush2.bf16.msra.mxu0 0
  %684 = vmatprep.subr.bf16.mxu0 0
  %685 = vmatpush2.bf16.msra.mxu0 0
  %686 = vmatprep.subr.bf16.mxu0 0
  %687 = vmatpush2.bf16.msra.mxu0 0
  %688 = vmatprep.subr.bf16.mxu0 0
  %689 = vmatpush2.bf16.msra.mxu0 0
  %690 = vmatprep.subr.bf16.mxu0 0
  %691 = vmatpush2.bf16.msra.mxu0 0
  %692 = vmatprep.subr.bf16.mxu0 0
  %693 = vmatpush2.bf16.msra.mxu0 0
  %694 = vmatprep.subr.bf16.mxu0 0
  %695 = vmatpush2.bf16.msra.mxu0 0
  %696 = vmatprep.mubr.bf16.mxu0 0
  %697 = vmatmul.mubr.bf16.gmra.mxu0 %v471
  %v698 = vpop.f32.mrf.mxu0
  %v699 = vadd.f32 0.0, %v698
  %v700 = vpop.f32.mrf.mxu0
  %v701 = vadd.f32 0.0, %v700
  %v702 = vpop.f32.mrf.mxu0
  %v703 = vpop.f32.mrf.mxu0
  %704 = vdwg.mxu0
  %705 = vmatprep.subr.bf16.mxu0 %v631
  %706 = vmatpush1.bf16.msra.mxu0 %v630
  %707 = vmatprep.subr.bf16.mxu0 %v627
  %708 = vmatpush1.bf16.msra.mxu0 %v626
  %709 = vmatprep.subr.bf16.mxu0 %v623
  %710 = vmatpush1.bf16.msra.mxu0 %v622
  %711 = vmatprep.subr.bf16.mxu0 %v619
  %712 = vmatpush1.bf16.msra.mxu0 %v618
  %713 = vmatprep.subr.bf16.mxu0 %v615
  %714 = vmatpush1.bf16.msra.mxu0 %v614
  %715 = vmatprep.subr.bf16.mxu0 %v611
  %716 = vmatpush1.bf16.msra.mxu0 %v610
  %717 = vmatprep.subr.bf16.mxu0 %v607
  %718 = vmatpush1.bf16.msra.mxu0 %v606
  %719 = vmatprep.subr.bf16.mxu0 %v603
  %720 = vmatpush1.bf16.msra.mxu0 %v602
  %721 = vmatprep.subr.bf16.mxu0 0
  %722 = vmatpush2.bf16.msra.mxu0 0
  %723 = vmatprep.subr.bf16.mxu0 0
  %724 = vmatpush2.bf16.msra.mxu0 0
  %725 = vmatprep.subr.bf16.mxu0 0
  %726 = vmatpush2.bf16.msra.mxu0 0
  %727 = vmatprep.subr.bf16.mxu0 0
  %728 = vmatpush2.bf16.msra.mxu0 0
  %729 = vmatprep.subr.bf16.mxu0 0
  %730 = vmatpush2.bf16.msra.mxu0 0
  %731 = vmatprep.subr.bf16.mxu0 0
  %732 = vmatpush2.bf16.msra.mxu0 0
  %733 = vmatprep.subr.bf16.mxu0 0
  %734 = vmatpush2.bf16.msra.mxu0 0
  %735 = vmatprep.subr.bf16.mxu0 0
  %736 = vmatpush2.bf16.msra.mxu0 0
  %737 = vmatprep.mubr.bf16.mxu0 0
  %738 = vmatmul.mubr.bf16.gmra.mxu0 %v471
  %v739 = vpop.f32.mrf.mxu0
  %v740 = vadd.f32 0.0, %v739
  %v741 = vpop.f32.mrf.mxu0
  %v742 = vadd.f32 0.0, %v741
  %v743 = vpop.f32.mrf.mxu0
  %v744 = vpop.f32.mrf.mxu0
  %745 = vdwg.mxu0
  %v746 = vadd.f32 %v467, %v699
  %v747 = vadd.f32 %v468, %v701
  %v748 = vadd.f32 %v469, %v740
  %v749 = vadd.f32 %v470, %v742
  %v750 = vxor.u32 %v746, 2147483648
  %v751 = vxor.u32 %v747, 2147483648
  %v752 = vxor.u32 %v748, 2147483648
  %v753 = vmul.f32 %v750, 1.442695
  %v754 = vpow.pop %v753
  %v755 = vmul.f32 %v751, 1.442695
  %v756 = vpow.pop %v755
  %v757 = vmul.f32 %v752, 1.442695
  %v758 = vpow.pop %v757
  %v759 = vadd.f32 %v754, 1.0
  %v760 = vadd.f32 %v756, 1.0
  %v761 = vadd.f32 %v758, 1.0
  %v762 = vrcp.pop %v759
  %v763 = vmul.f32 1.0, %v762
  %v764 = vrcp.pop %v760
  %v765 = vmul.f32 1.0, %v764
  %v766 = vrcp.pop %v761
  %v767 = vmul.f32 1.0, %v766
  %v768 = vtanh.pop %v749
  %v769 = vmul.f32 %v765, %v466
  %v770 = vmul.f32 %v763, %v768
  %v771 = vadd.f32 %v769, %v770
  %v772 = vtanh.pop %v771
  %v773 = vmul.f32 %v767, %v772
  %774 = vst [vmem:[#allocation7] sm:$0xff] %v773
  %v775 = vld [vmem:[#allocation2 + $0x20] sm:$0xff]
  %v776 = vld [vmem:[#allocation2 + $0x28] sm:$0xff]
  %v777 = vld [vmem:[#allocation2 + $0x30] sm:$0xff]
  %v778 = vld [vmem:[#allocation2 + $0x38] sm:$0xff]
  %v779 = vpack.c.bf16 %v773, %v773
  %v780 = vld [vmem:[%s2] sm:$0xff]
  %v781 = vld [vmem:[%s2 + $0x8] sm:$0xff]
  %v782 = vld [vmem:[%s2 + $0x10] sm:$0xff]
  %v783 = vld [vmem:[%s2 + $0x18] sm:$0xff]
  %v784 = vld [vmem:[%s2 + $0x20] sm:$0xff]
  %v785 = vld [vmem:[%s2 + $0x28] sm:$0xff]
  %v786 = vld [vmem:[%s2 + $0x30] sm:$0xff]
  %v787 = vld [vmem:[%s2 + $0x38] sm:$0xff]
  %v788 = vld [vmem:[%s2 + $0x40] sm:$0xff]
  %v789 = vld [vmem:[%s2 + $0x48] sm:$0xff]
  %v790 = vld [vmem:[%s2 + $0x50] sm:$0xff]
  %v791 = vld [vmem:[%s2 + $0x58] sm:$0xff]
  %v792 = vld [vmem:[%s2 + $0x60] sm:$0xff]
  %v793 = vld [vmem:[%s2 + $0x68] sm:$0xff]
  %v794 = vld [vmem:[%s2 + $0x70] sm:$0xff]
  %v795 = vld [vmem:[%s2 + $0x78] sm:$0xff]
  %v796 = vld [vmem:[%s2 + $0x80] sm:$0xff]
  %v797 = vld [vmem:[%s2 + $0x88] sm:$0xff]
  %v798 = vld [vmem:[%s2 + $0x90] sm:$0xff]
  %v799 = vld [vmem:[%s2 + $0x98] sm:$0xff]
  %v800 = vld [vmem:[%s2 + $0xa0] sm:$0xff]
  %v801 = vld [vmem:[%s2 + $0xa8] sm:$0xff]
  %v802 = vld [vmem:[%s2 + $0xb0] sm:$0xff]
  %v803 = vld [vmem:[%s2 + $0xb8] sm:$0xff]
  %v804 = vld [vmem:[%s2 + $0xc0] sm:$0xff]
  %v805 = vld [vmem:[%s2 + $0xc8] sm:$0xff]
  %v806 = vld [vmem:[%s2 + $0xd0] sm:$0xff]
  %v807 = vld [vmem:[%s2 + $0xd8] sm:$0xff]
  %v808 = vld [vmem:[%s2 + $0xe0] sm:$0xff]
  %v809 = vld [vmem:[%s2 + $0xe8] sm:$0xff]
  %v810 = vld [vmem:[%s2 + $0xf0] sm:$0xff]
  %v811 = vld [vmem:[%s2 + $0xf8] sm:$0xff]
  %v844 = vunpack.c.l.b16 %v780
  %v845 = vunpack.c.h.b16 %v780
  %v846 = vunpack.c.l.b16 %v781
  %v847 = vunpack.c.h.b16 %v781
  %v848 = vunpack.c.l.b16 %v782
  %v849 = vunpack.c.h.b16 %v782
  %v850 = vunpack.c.l.b16 %v783
  %v851 = vunpack.c.h.b16 %v783
  %v852 = vunpack.c.l.b16 %v784
  %v853 = vunpack.c.h.b16 %v784
  %v854 = vunpack.c.l.b16 %v785
  %v855 = vunpack.c.h.b16 %v785
  %v856 = vunpack.c.l.b16 %v786
  %v857 = vunpack.c.h.b16 %v786
  %v858 = vunpack.c.l.b16 %v787
  %v859 = vunpack.c.h.b16 %v787
  %v860 = vunpack.c.l.b16 %v788
  %v861 = vunpack.c.h.b16 %v788
  %v862 = vunpack.c.l.b16 %v789
  %v863 = vunpack.c.h.b16 %v789
  %v864 = vunpack.c.l.b16 %v790
  %v865 = vunpack.c.h.b16 %v790
  %v866 = vunpack.c.l.b16 %v791
  %v867 = vunpack.c.h.b16 %v791
  %v868 = vunpack.c.l.b16 %v792
  %v869 = vunpack.c.h.b16 %v792
  %v870 = vunpack.c.l.b16 %v793
  %v871 = vunpack.c.h.b16 %v793
  %v872 = vunpack.c.l.b16 %v794
  %v873 = vunpack.c.h.b16 %v794
  %v874 = vunpack.c.l.b16 %v795
  %v875 = vunpack.c.h.b16 %v795
  %v876 = vunpack.c.l.b16 %v796
  %v877 = vunpack.c.h.b16 %v796
  %v878 = vunpack.c.l.b16 %v797
  %v879 = vunpack.c.h.b16 %v797
  %v880 = vunpack.c.l.b16 %v798
  %v881 = vunpack.c.h.b16 %v798
  %v882 = vunpack.c.l.b16 %v799
  %v883 = vunpack.c.h.b16 %v799
  %v884 = vunpack.c.l.b16 %v800
  %v885 = vunpack.c.h.b16 %v800
  %v886 = vunpack.c.l.b16 %v801
  %v887 = vunpack.c.h.b16 %v801
  %v888 = vunpack.c.l.b16 %v802
  %v889 = vunpack.c.h.b16 %v802
  %v890 = vunpack.c.l.b16 %v803
  %v891 = vunpack.c.h.b16 %v803
  %v892 = vunpack.c.l.b16 %v804
  %v893 = vunpack.c.h.b16 %v804
  %v894 = vunpack.c.l.b16 %v805
  %v895 = vunpack.c.h.b16 %v805
  %v896 = vunpack.c.l.b16 %v806
  %v897 = vunpack.c.h.b16 %v806
  %v898 = vunpack.c.l.b16 %v807
  %v899 = vunpack.c.h.b16 %v807
  %v900 = vunpack.c.l.b16 %v808
  %v901 = vunpack.c.h.b16 %v808
  %v902 = vunpack.c.l.b16 %v809
  %v903 = vunpack.c.h.b16 %v809
  %v904 = vunpack.c.l.b16 %v810
  %v905 = vunpack.c.h.b16 %v810
  %v906 = vunpack.c.l.b16 %v811
  %v907 = vunpack.c.h.b16 %v811
  %v908 = vpack.c.b16 %v848, %v844
  %v909 = vpack.c.b16 %v849, %v845
  %v910 = vpack.c.b16 %v850, %v846
  %v911 = vpack.c.b16 %v851, %v847
  %v912 = vpack.c.b16 %v856, %v852
  %v913 = vpack.c.b16 %v857, %v853
  %v914 = vpack.c.b16 %v858, %v854
  %v915 = vpack.c.b16 %v859, %v855
  %v916 = vpack.c.b16 %v864, %v860
  %v917 = vpack.c.b16 %v865, %v861
  %v918 = vpack.c.b16 %v866, %v862
  %v919 = vpack.c.b16 %v867, %v863
  %v920 = vpack.c.b16 %v872, %v868
  %v921 = vpack.c.b16 %v873, %v869
  %v922 = vpack.c.b16 %v874, %v870
  %v923 = vpack.c.b16 %v875, %v871
  %v924 = vpack.c.b16 %v880, %v876
  %v925 = vpack.c.b16 %v881, %v877
  %v926 = vpack.c.b16 %v882, %v878
  %v927 = vpack.c.b16 %v883, %v879
  %v928 = vpack.c.b16 %v888, %v884
  %v929 = vpack.c.b16 %v889, %v885
  %v930 = vpack.c.b16 %v890, %v886
  %v931 = vpack.c.b16 %v891, %v887
  %v932 = vpack.c.b16 %v896, %v892
  %v933 = vpack.c.b16 %v897, %v893
  %v934 = vpack.c.b16 %v898, %v894
  %v935 = vpack.c.b16 %v899, %v895
  %v936 = vpack.c.b16 %v904, %v900
  %v937 = vpack.c.b16 %v905, %v901
  %v938 = vpack.c.b16 %v906, %v902
  %v939 = vpack.c.b16 %v907, %v903
  %972 = vmatprep.subr.bf16.mxu0 %v937
  %973 = vmatpush1.bf16.msra.mxu0 %v936
  %974 = vmatprep.subr.bf16.mxu0 %v933
  %975 = vmatpush1.bf16.msra.mxu0 %v932
  %976 = vmatprep.subr.bf16.mxu0 %v929
  %977 = vmatpush1.bf16.msra.mxu0 %v928
  %978 = vmatprep.subr.bf16.mxu0 %v925
  %979 = vmatpush1.bf16.msra.mxu0 %v924
  %980 = vmatprep.subr.bf16.mxu0 %v921
  %981 = vmatpush1.bf16.msra.mxu0 %v920
  %982 = vmatprep.subr.bf16.mxu0 %v917
  %983 = vmatpush1.bf16.msra.mxu0 %v916
  %984 = vmatprep.subr.bf16.mxu0 %v913
  %985 = vmatpush1.bf16.msra.mxu0 %v912
  %986 = vmatprep.subr.bf16.mxu0 %v909
  %987 = vmatpush1.bf16.msra.mxu0 %v908
  %988 = vmatprep.subr.bf16.mxu0 0
  %989 = vmatpush2.bf16.msra.mxu0 0
  %990 = vmatprep.subr.bf16.mxu0 0
  %991 = vmatpush2.bf16.msra.mxu0 0
  %992 = vmatprep.subr.bf16.mxu0 0
  %993 = vmatpush2.bf16.msra.mxu0 0
  %994 = vmatprep.subr.bf16.mxu0 0
  %995 = vmatpush2.bf16.msra.mxu0 0
  %996 = vmatprep.subr.bf16.mxu0 0
  %997 = vmatpush2.bf16.msra.mxu0 0
  %998 = vmatprep.subr.bf16.mxu0 0
  %999 = vmatpush2.bf16.msra.mxu0 0
  %1000 = vmatprep.subr.bf16.mxu0 0
  %1001 = vmatpush2.bf16.msra.mxu0 0
  %1002 = vmatprep.subr.bf16.mxu0 0
  %1003 = vmatpush2.bf16.msra.mxu0 0
  %1004 = vmatprep.mubr.bf16.mxu0 0
  %1005 = vmatmul.mubr.bf16.gmra.mxu0 %v779
  %v1006 = vpop.f32.mrf.mxu0
  %v1007 = vadd.f32 0.0, %v1006
  %v1008 = vpop.f32.mrf.mxu0
  %v1009 = vadd.f32 0.0, %v1008
  %v1010 = vpop.f32.mrf.mxu0
  %v1011 = vpop.f32.mrf.mxu0
  %1012 = vdwg.mxu0
  %1013 = vmatprep.subr.bf16.mxu0 %v939
  %1014 = vmatpush1.bf16.msra.mxu0 %v938
  %1015 = vmatprep.subr.bf16.mxu0 %v935
  %1016 = vmatpush1.bf16.msra.mxu0 %v934
  %1017 = vmatprep.subr.bf16.mxu0 %v931
  %1018 = vmatpush1.bf16.msra.mxu0 %v930
  %1019 = vmatprep.subr.bf16.mxu0 %v927
  %1020 = vmatpush1.bf16.msra.mxu0 %v926
  %1021 = vmatprep.subr.bf16.mxu0 %v923
  %1022 = vmatpush1.bf16.msra.mxu0 %v922
  %1023 = vmatprep.subr.bf16.mxu0 %v919
  %1024 = vmatpush1.bf16.msra.mxu0 %v918
  %1025 = vmatprep.subr.bf16.mxu0 %v915
  %1026 = vmatpush1.bf16.msra.mxu0 %v914
  %1027 = vmatprep.subr.bf16.mxu0 %v911
  %1028 = vmatpush1.bf16.msra.mxu0 %v910
  %1029 = vmatprep.subr.bf16.mxu0 0
  %1030 = vmatpush2.bf16.msra.mxu0 0
  %1031 = vmatprep.subr.bf16.mxu0 0
  %1032 = vmatpush2.bf16.msra.mxu0 0
  %1033 = vmatprep.subr.bf16.mxu0 0
  %1034 = vmatpush2.bf16.msra.mxu0 0
  %1035 = vmatprep.subr.bf16.mxu0 0
  %1036 = vmatpush2.bf16.msra.mxu0 0
  %1037 = vmatprep.subr.bf16.mxu0 0
  %1038 = vmatpush2.bf16.msra.mxu0 0
  %1039 = vmatprep.subr.bf16.mxu0 0
  %1040 = vmatpush2.bf16.msra.mxu0 0
  %1041 = vmatprep.subr.bf16.mxu0 0
  %1042 = vmatpush2.bf16.msra.mxu0 0
  %1043 = vmatprep.subr.bf16.mxu0 0
  %1044 = vmatpush2.bf16.msra.mxu0 0
  %1045 = vmatprep.mubr.bf16.mxu0 0
  %1046 = vmatmul.mubr.bf16.gmra.mxu0 %v779
  %v1047 = vpop.f32.mrf.mxu0
  %v1048 = vadd.f32 0.0, %v1047
  %v1049 = vpop.f32.mrf.mxu0
  %v1050 = vadd.f32 0.0, %v1049
  %v1051 = vpop.f32.mrf.mxu0
  %v1052 = vpop.f32.mrf.mxu0
  %1053 = vdwg.mxu0
  %v1054 = vadd.f32 %v775, %v1007
  %v1055 = vadd.f32 %v776, %v1009
  %v1056 = vadd.f32 %v777, %v1048
  %v1057 = vadd.f32 %v778, %v1050
  %v1058 = vxor.u32 %v1054, 2147483648
  %v1059 = vxor.u32 %v1055, 2147483648
  %v1060 = vxor.u32 %v1056, 2147483648
  %v1061 = vmul.f32 %v1058, 1.442695
  %v1062 = vpow.pop %v1061
  %v1063 = vmul.f32 %v1059, 1.442695
  %v1064 = vpow.pop %v1063
  %v1065 = vmul.f32 %v1060, 1.442695
  %v1066 = vpow.pop %v1065
  %v1067 = vadd.f32 %v1062, 1.0
  %v1068 = vadd.f32 %v1064, 1.0
  %v1069 = vadd.f32 %v1066, 1.0
  %v1070 = vrcp.pop %v1067
  %v1071 = vmul.f32 1.0, %v1070
  %v1072 = vrcp.pop %v1068
  %v1073 = vmul.f32 1.0, %v1072
  %v1074 = vrcp.pop %v1069
  %v1075 = vmul.f32 1.0, %v1074
  %v1076 = vtanh.pop %v1057
  %v1077 = vmul.f32 %v1073, %v771
  %v1078 = vmul.f32 %v1071, %v1076
  %v1079 = vadd.f32 %v1077, %v1078
  %v1080 = vtanh.pop %v1079
  %v1081 = vmul.f32 %v1075, %v1080
  %1082 = vst [vmem:[#allocation7 + $0x8] sm:$0xff] %v1081
  %v1083 = vld [vmem:[#allocation2 + $0x40] sm:$0xff]
  %v1084 = vld [vmem:[#allocation2 + $0x48] sm:$0xff]
  %v1085 = vld [vmem:[#allocation2 + $0x50] sm:$0xff]
  %v1086 = vld [vmem:[#allocation2 + $0x58] sm:$0xff]
  %v1087 = vpack.c.bf16 %v1081, %v1081
  %v1088 = vld [vmem:[%s2] sm:$0xff]
  %v1089 = vld [vmem:[%s2 + $0x8] sm:$0xff]
  %v1090 = vld [vmem:[%s2 + $0x10] sm:$0xff]
  %v1091 = vld [vmem:[%s2 + $0x18] sm:$0xff]
  %v1092 = vld [vmem:[%s2 + $0x20] sm:$0xff]
  %v1093 = vld [vmem:[%s2 + $0x28] sm:$0xff]
  %v1094 = vld [vmem:[%s2 + $0x30] sm:$0xff]
  %v1095 = vld [vmem:[%s2 + $0x38] sm:$0xff]
  %v1096 = vld [vmem:[%s2 + $0x40] sm:$0xff]
  %v1097 = vld [vmem:[%s2 + $0x48] sm:$0xff]
  %v1098 = vld [vmem:[%s2 + $0x50] sm:$0xff]
  %v1099 = vld [vmem:[%s2 + $0x58] sm:$0xff]
  %v1100 = vld [vmem:[%s2 + $0x60] sm:$0xff]
  %v1101 = vld [vmem:[%s2 + $0x68] sm:$0xff]
  %v1102 = vld [vmem:[%s2 + $0x70] sm:$0xff]
  %v1103 = vld [vmem:[%s2 + $0x78] sm:$0xff]
  %v1104 = vld [vmem:[%s2 + $0x80] sm:$0xff]
  %v1105 = vld [vmem:[%s2 + $0x88] sm:$0xff]
  %v1106 = vld [vmem:[%s2 + $0x90] sm:$0xff]
  %v1107 = vld [vmem:[%s2 + $0x98] sm:$0xff]
  %v1108 = vld [vmem:[%s2 + $0xa0] sm:$0xff]
  %v1109 = vld [vmem:[%s2 + $0xa8] sm:$0xff]
  %v1110 = vld [vmem:[%s2 + $0xb0] sm:$0xff]
  %v1111 = vld [vmem:[%s2 + $0xb8] sm:$0xff]
  %v1112 = vld [vmem:[%s2 + $0xc0] sm:$0xff]
  %v1113 = vld [vmem:[%s2 + $0xc8] sm:$0xff]
  %v1114 = vld [vmem:[%s2 + $0xd0] sm:$0xff]
  %v1115 = vld [vmem:[%s2 + $0xd8] sm:$0xff]
  %v1116 = vld [vmem:[%s2 + $0xe0] sm:$0xff]
  %v1117 = vld [vmem:[%s2 + $0xe8] sm:$0xff]
  %v1118 = vld [vmem:[%s2 + $0xf0] sm:$0xff]
  %v1119 = vld [vmem:[%s2 + $0xf8] sm:$0xff]
  %v1152 = vunpack.c.l.b16 %v1088
  %v1153 = vunpack.c.h.b16 %v1088
  %v1154 = vunpack.c.l.b16 %v1089
  %v1155 = vunpack.c.h.b16 %v1089
  %v1156 = vunpack.c.l.b16 %v1090
  %v1157 = vunpack.c.h.b16 %v1090
  %v1158 = vunpack.c.l.b16 %v1091
  %v1159 = vunpack.c.h.b16 %v1091
  %v1160 = vunpack.c.l.b16 %v1092
  %v1161 = vunpack.c.h.b16 %v1092
  %v1162 = vunpack.c.l.b16 %v1093
  %v1163 = vunpack.c.h.b16 %v1093
  %v1164 = vunpack.c.l.b16 %v1094
  %v1165 = vunpack.c.h.b16 %v1094
  %v1166 = vunpack.c.l.b16 %v1095
  %v1167 = vunpack.c.h.b16 %v1095
  %v1168 = vunpack.c.l.b16 %v1096
  %v1169 = vunpack.c.h.b16 %v1096
  %v1170 = vunpack.c.l.b16 %v1097
  %v1171 = vunpack.c.h.b16 %v1097
  %v1172 = vunpack.c.l.b16 %v1098
  %v1173 = vunpack.c.h.b16 %v1098
  %v1174 = vunpack.c.l.b16 %v1099
  %v1175 = vunpack.c.h.b16 %v1099
  %v1176 = vunpack.c.l.b16 %v1100
  %v1177 = vunpack.c.h.b16 %v1100
  %v1178 = vunpack.c.l.b16 %v1101
  %v1179 = vunpack.c.h.b16 %v1101
  %v1180 = vunpack.c.l.b16 %v1102
  %v1181 = vunpack.c.h.b16 %v1102
  %v1182 = vunpack.c.l.b16 %v1103
  %v1183 = vunpack.c.h.b16 %v1103
  %v1184 = vunpack.c.l.b16 %v1104
  %v1185 = vunpack.c.h.b16 %v1104
  %v1186 = vunpack.c.l.b16 %v1105
  %v1187 = vunpack.c.h.b16 %v1105
  %v1188 = vunpack.c.l.b16 %v1106
  %v1189 = vunpack.c.h.b16 %v1106
  %v1190 = vunpack.c.l.b16 %v1107
  %v1191 = vunpack.c.h.b16 %v1107
  %v1192 = vunpack.c.l.b16 %v1108
  %v1193 = vunpack.c.h.b16 %v1108
  %v1194 = vunpack.c.l.b16 %v1109
  %v1195 = vunpack.c.h.b16 %v1109
  %v1196 = vunpack.c.l.b16 %v1110
  %v1197 = vunpack.c.h.b16 %v1110
  %v1198 = vunpack.c.l.b16 %v1111
  %v1199 = vunpack.c.h.b16 %v1111
  %v1200 = vunpack.c.l.b16 %v1112
  %v1201 = vunpack.c.h.b16 %v1112
  %v1202 = vunpack.c.l.b16 %v1113
  %v1203 = vunpack.c.h.b16 %v1113
  %v1204 = vunpack.c.l.b16 %v1114
  %v1205 = vunpack.c.h.b16 %v1114
  %v1206 = vunpack.c.l.b16 %v1115
  %v1207 = vunpack.c.h.b16 %v1115
  %v1208 = vunpack.c.l.b16 %v1116
  %v1209 = vunpack.c.h.b16 %v1116
  %v1210 = vunpack.c.l.b16 %v1117
  %v1211 = vunpack.c.h.b16 %v1117
  %v1212 = vunpack.c.l.b16 %v1118
  %v1213 = vunpack.c.h.b16 %v1118
  %v1214 = vunpack.c.l.b16 %v1119
  %v1215 = vunpack.c.h.b16 %v1119
  %v1216 = vpack.c.b16 %v1156, %v1152
  %v1217 = vpack.c.b16 %v1157, %v1153
  %v1218 = vpack.c.b16 %v1158, %v1154
  %v1219 = vpack.c.b16 %v1159, %v1155
  %v1220 = vpack.c.b16 %v1164, %v1160
  %v1221 = vpack.c.b16 %v1165, %v1161
  %v1222 = vpack.c.b16 %v1166, %v1162
  %v1223 = vpack.c.b16 %v1167, %v1163
  %v1224 = vpack.c.b16 %v1172, %v1168
  %v1225 = vpack.c.b16 %v1173, %v1169
  %v1226 = vpack.c.b16 %v1174, %v1170
  %v1227 = vpack.c.b16 %v1175, %v1171
  %v1228 = vpack.c.b16 %v1180, %v1176
  %v1229 = vpack.c.b16 %v1181, %v1177
  %v1230 = vpack.c.b16 %v1182, %v1178
  %v1231 = vpack.c.b16 %v1183, %v1179
  %v1232 = vpack.c.b16 %v1188, %v1184
  %v1233 = vpack.c.b16 %v1189, %v1185
  %v1234 = vpack.c.b16 %v1190, %v1186
  %v1235 = vpack.c.b16 %v1191, %v1187
  %v1236 = vpack.c.b16 %v1196, %v1192
  %v1237 = vpack.c.b16 %v1197, %v1193
  %v1238 = vpack.c.b16 %v1198, %v1194
  %v1239 = vpack.c.b16 %v1199, %v1195
  %v1240 = vpack.c.b16 %v1204, %v1200
  %v1241 = vpack.c.b16 %v1205, %v1201
  %v1242 = vpack.c.b16 %v1206, %v1202
  %v1243 = vpack.c.b16 %v1207, %v1203
  %v1244 = vpack.c.b16 %v1212, %v1208
  %v1245 = vpack.c.b16 %v1213, %v1209
  %v1246 = vpack.c.b16 %v1214, %v1210
  %v1247 = vpack.c.b16 %v1215, %v1211
  %1280 = vmatprep.subr.bf16.mxu0 %v1245
  %1281 = vmatpush1.bf16.msra.mxu0 %v1244
  %1282 = vmatprep.subr.bf16.mxu0 %v1241
  %1283 = vmatpush1.bf16.msra.mxu0 %v1240
  %1284 = vmatprep.subr.bf16.mxu0 %v1237
  %1285 = vmatpush1.bf16.msra.mxu0 %v1236
  %1286 = vmatprep.subr.bf16.mxu0 %v1233
  %1287 = vmatpush1.bf16.msra.mxu0 %v1232
  %1288 = vmatprep.subr.bf16.mxu0 %v1229
  %1289 = vmatpush1.bf16.msra.mxu0 %v1228
  %1290 = vmatprep.subr.bf16.mxu0 %v1225
  %1291 = vmatpush1.bf16.msra.mxu0 %v1224
  %1292 = vmatprep.subr.bf16.mxu0 %v1221
  %1293 = vmatpush1.bf16.msra.mxu0 %v1220
  %1294 = vmatprep.subr.bf16.mxu0 %v1217
  %1295 = vmatpush1.bf16.msra.mxu0 %v1216
  %1296 = vmatprep.subr.bf16.mxu0 0
  %1297 = vmatpush2.bf16.msra.mxu0 0
  %1298 = vmatprep.subr.bf16.mxu0 0
  %1299 = vmatpush2.bf16.msra.mxu0 0
  %1300 = vmatprep.subr.bf16.mxu0 0
  %1301 = vmatpush2.bf16.msra.mxu0 0
  %1302 = vmatprep.subr.bf16.mxu0 0
  %1303 = vmatpush2.bf16.msra.mxu0 0
  %1304 = vmatprep.subr.bf16.mxu0 0
  %1305 = vmatpush2.bf16.msra.mxu0 0
  %1306 = vmatprep.subr.bf16.mxu0 0
  %1307 = vmatpush2.bf16.msra.mxu0 0
  %1308 = vmatprep.subr.bf16.mxu0 0
  %1309 = vmatpush2.bf16.msra.mxu0 0
  %1310 = vmatprep.subr.bf16.mxu0 0
  %1311 = vmatpush2.bf16.msra.mxu0 0
  %1312 = vmatprep.mubr.bf16.mxu0 0
  %1313 = vmatmul.mubr.bf16.gmra.mxu0 %v1087
  %v1314 = vpop.f32.mrf.mxu0
  %v1315 = vadd.f32 0.0, %v1314
  %v1316 = vpop.f32.mrf.mxu0
  %v1317 = vadd.f32 0.0, %v1316
  %v1318 = vpop.f32.mrf.mxu0
  %v1319 = vpop.f32.mrf.mxu0
  %1320 = vdwg.mxu0
  %1321 = vmatprep.subr.bf16.mxu0 %v1247
  %1322 = vmatpush1.bf16.msra.mxu0 %v1246
  %1323 = vmatprep.subr.bf16.mxu0 %v1243
  %1324 = vmatpush1.bf16.msra.mxu0 %v1242
  %1325 = vmatprep.subr.bf16.mxu0 %v1239
  %1326 = vmatpush1.bf16.msra.mxu0 %v1238
  %1327 = vmatprep.subr.bf16.mxu0 %v1235
  %1328 = vmatpush1.bf16.msra.mxu0 %v1234
  %1329 = vmatprep.subr.bf16.mxu0 %v1231
  %1330 = vmatpush1.bf16.msra.mxu0 %v1230
  %1331 = vmatprep.subr.bf16.mxu0 %v1227
  %1332 = vmatpush1.bf16.msra.mxu0 %v1226
  %1333 = vmatprep.subr.bf16.mxu0 %v1223
  %1334 = vmatpush1.bf16.msra.mxu0 %v1222
  %1335 = vmatprep.subr.bf16.mxu0 %v1219
  %1336 = vmatpush1.bf16.msra.mxu0 %v1218
  %1337 = vmatprep.subr.bf16.mxu0 0
  %1338 = vmatpush2.bf16.msra.mxu0 0
  %1339 = vmatprep.subr.bf16.mxu0 0
  %1340 = vmatpush2.bf16.msra.mxu0 0
  %1341 = vmatprep.subr.bf16.mxu0 0
  %1342 = vmatpush2.bf16.msra.mxu0 0
  %1343 = vmatprep.subr.bf16.mxu0 0
  %1344 = vmatpush2.bf16.msra.mxu0 0
  %1345 = vmatprep.subr.bf16.mxu0 0
  %1346 = vmatpush2.bf16.msra.mxu0 0
  %1347 = vmatprep.subr.bf16.mxu0 0
  %1348 = vmatpush2.bf16.msra.mxu0 0
  %1349 = vmatprep.subr.bf16.mxu0 0
  %1350 = vmatpush2.bf16.msra.mxu0 0
  %1351 = vmatprep.subr.bf16.mxu0 0
  %1352 = vmatpush2.bf16.msra.mxu0 0
  %1353 = vmatprep.mubr.bf16.mxu0 0
  %1354 = vmatmul.mubr.bf16.gmra.mxu0 %v1087
  %v1355 = vpop.f32.mrf.mxu0
  %v1356 = vadd.f32 0.0, %v1355
  %v1357 = vpop.f32.mrf.mxu0
  %v1358 = vadd.f32 0.0, %v1357
  %v1359 = vpop.f32.mrf.mxu0
  %v1360 = vpop.f32.mrf.mxu0
  %1361 = vdwg.mxu0
  %v1362 = vadd.f32 %v1083, %v1315
  %v1363 = vadd.f32 %v1084, %v1317
  %v1364 = vadd.f32 %v1085, %v1356
  %v1365 = vadd.f32 %v1086, %v1358
  %v1366 = vxor.u32 %v1362, 2147483648
  %v1367 = vxor.u32 %v1363, 2147483648
  %v1368 = vxor.u32 %v1364, 2147483648
  %v1369 = vmul.f32 %v1366, 1.442695
  %v1370 = vpow.pop %v1369
  %v1371 = vmul.f32 %v1367, 1.442695
  %v1372 = vpow.pop %v1371
  %v1373 = vmul.f32 %v1368, 1.442695
  %v1374 = vpow.pop %v1373
  %v1375 = vadd.f32 %v1370, 1.0
  %v1376 = vadd.f32 %v1372, 1.0
  %v1377 = vadd.f32 %v1374, 1.0
  %v1378 = vrcp.pop %v1375
  %v1379 = vmul.f32 1.0, %v1378
  %v1380 = vrcp.pop %v1376
  %v1381 = vmul.f32 1.0, %v1380
  %v1382 = vrcp.pop %v1377
  %v1383 = vmul.f32 1.0, %v1382
  %v1384 = vtanh.pop %v1365
  %v1385 = vmul.f32 %v1381, %v1079
  %v1386 = vmul.f32 %v1379, %v1384
  %v1387 = vadd.f32 %v1385, %v1386
  %v1388 = vtanh.pop %v1387
  %v1389 = vmul.f32 %v1383, %v1388
  %1390 = vst [vmem:[#allocation7 + $0x10] sm:$0xff] %v1389
  %v1391 = vld [vmem:[#allocation2 + $0x60] sm:$0xff]
  %v1392 = vld [vmem:[#allocation2 + $0x68] sm:$0xff]
  %v1393 = vld [vmem:[#allocation2 + $0x70] sm:$0xff]
  %v1394 = vld [vmem:[#allocation2 + $0x78] sm:$0xff]
  %v1395 = vpack.c.bf16 %v1389, %v1389
  %v1396 = vld [vmem:[%s2] sm:$0xff]
  %v1397 = vld [vmem:[%s2 + $0x8] sm:$0xff]
  %v1398 = vld [vmem:[%s2 + $0x10] sm:$0xff]
  %v1399 = vld [vmem:[%s2 + $0x18] sm:$0xff]
  %v1400 = vld [vmem:[%s2 + $0x20] sm:$0xff]
  %v1401 = vld [vmem:[%s2 + $0x28] sm:$0xff]
  %v1402 = vld [vmem:[%s2 + $0x30] sm:$0xff]
  %v1403 = vld [vmem:[%s2 + $0x38] sm:$0xff]
  %v1404 = vld [vmem:[%s2 + $0x40] sm:$0xff]
  %v1405 = vld [vmem:[%s2 + $0x48] sm:$0xff]
  %v1406 = vld [vmem:[%s2 + $0x50] sm:$0xff]
  %v1407 = vld [vmem:[%s2 + $0x58] sm:$0xff]
  %v1408 = vld [vmem:[%s2 + $0x60] sm:$0xff]
  %v1409 = vld [vmem:[%s2 + $0x68] sm:$0xff]
  %v1410 = vld [vmem:[%s2 + $0x70] sm:$0xff]
  %v1411 = vld [vmem:[%s2 + $0x78] sm:$0xff]
  %v1412 = vld [vmem:[%s2 + $0x80] sm:$0xff]
  %v1413 = vld [vmem:[%s2 + $0x88] sm:$0xff]
  %v1414 = vld [vmem:[%s2 + $0x90] sm:$0xff]
  %v1415 = vld [vmem:[%s2 + $0x98] sm:$0xff]
  %v1416 = vld [vmem:[%s2 + $0xa0] sm:$0xff]
  %v1417 = vld [vmem:[%s2 + $0xa8] sm:$0xff]
  %v1418 = vld [vmem:[%s2 + $0xb0] sm:$0xff]
  %v1419 = vld [vmem:[%s2 + $0xb8] sm:$0xff]
  %v1420 = vld [vmem:[%s2 + $0xc0] sm:$0xff]
  %v1421 = vld [vmem:[%s2 + $0xc8] sm:$0xff]
  %v1422 = vld [vmem:[%s2 + $0xd0] sm:$0xff]
  %v1423 = vld [vmem:[%s2 + $0xd8] sm:$0xff]
  %v1424 = vld [vmem:[%s2 + $0xe0] sm:$0xff]
  %v1425 = vld [vmem:[%s2 + $0xe8] sm:$0xff]
  %v1426 = vld [vmem:[%s2 + $0xf0] sm:$0xff]
  %v1427 = vld [vmem:[%s2 + $0xf8] sm:$0xff]
  %v1460 = vunpack.c.l.b16 %v1396
  %v1461 = vunpack.c.h.b16 %v1396
  %v1462 = vunpack.c.l.b16 %v1397
  %v1463 = vunpack.c.h.b16 %v1397
  %v1464 = vunpack.c.l.b16 %v1398
  %v1465 = vunpack.c.h.b16 %v1398
  %v1466 = vunpack.c.l.b16 %v1399
  %v1467 = vunpack.c.h.b16 %v1399
  %v1468 = vunpack.c.l.b16 %v1400
  %v1469 = vunpack.c.h.b16 %v1400
  %v1470 = vunpack.c.l.b16 %v1401
  %v1471 = vunpack.c.h.b16 %v1401
  %v1472 = vunpack.c.l.b16 %v1402
  %v1473 = vunpack.c.h.b16 %v1402
  %v1474 = vunpack.c.l.b16 %v1403
  %v1475 = vunpack.c.h.b16 %v1403
  %v1476 = vunpack.c.l.b16 %v1404
  %v1477 = vunpack.c.h.b16 %v1404
  %v1478 = vunpack.c.l.b16 %v1405
  %v1479 = vunpack.c.h.b16 %v1405
  %v1480 = vunpack.c.l.b16 %v1406
  %v1481 = vunpack.c.h.b16 %v1406
  %v1482 = vunpack.c.l.b16 %v1407
  %v1483 = vunpack.c.h.b16 %v1407
  %v1484 = vunpack.c.l.b16 %v1408
  %v1485 = vunpack.c.h.b16 %v1408
  %v1486 = vunpack.c.l.b16 %v1409
  %v1487 = vunpack.c.h.b16 %v1409
  %v1488 = vunpack.c.l.b16 %v1410
  %v1489 = vunpack.c.h.b16 %v1410
  %v1490 = vunpack.c.l.b16 %v1411
  %v1491 = vunpack.c.h.b16 %v1411
  %v1492 = vunpack.c.l.b16 %v1412
  %v1493 = vunpack.c.h.b16 %v1412
  %v1494 = vunpack.c.l.b16 %v1413
  %v1495 = vunpack.c.h.b16 %v1413
  %v1496 = vunpack.c.l.b16 %v1414
  %v1497 = vunpack.c.h.b16 %v1414
  %v1498 = vunpack.c.l.b16 %v1415
  %v1499 = vunpack.c.h.b16 %v1415
  %v1500 = vunpack.c.l.b16 %v1416
  %v1501 = vunpack.c.h.b16 %v1416
  %v1502 = vunpack.c.l.b16 %v1417
  %v1503 = vunpack.c.h.b16 %v1417
  %v1504 = vunpack.c.l.b16 %v1418
  %v1505 = vunpack.c.h.b16 %v1418
  %v1506 = vunpack.c.l.b16 %v1419
  %v1507 = vunpack.c.h.b16 %v1419
  %v1508 = vunpack.c.l.b16 %v1420
  %v1509 = vunpack.c.h.b16 %v1420
  %v1510 = vunpack.c.l.b16 %v1421
  %v1511 = vunpack.c.h.b16 %v1421
  %v1512 = vunpack.c.l.b16 %v1422
  %v1513 = vunpack.c.h.b16 %v1422
  %v1514 = vunpack.c.l.b16 %v1423
  %v1515 = vunpack.c.h.b16 %v1423
  %v1516 = vunpack.c.l.b16 %v1424
  %v1517 = vunpack.c.h.b16 %v1424
  %v1518 = vunpack.c.l.b16 %v1425
  %v1519 = vunpack.c.h.b16 %v1425
  %v1520 = vunpack.c.l.b16 %v1426
  %v1521 = vunpack.c.h.b16 %v1426
  %v1522 = vunpack.c.l.b16 %v1427
  %v1523 = vunpack.c.h.b16 %v1427
  %v1524 = vpack.c.b16 %v1464, %v1460
  %v1525 = vpack.c.b16 %v1465, %v1461
  %v1526 = vpack.c.b16 %v1466, %v1462
  %v1527 = vpack.c.b16 %v1467, %v1463
  %v1528 = vpack.c.b16 %v1472, %v1468
  %v1529 = vpack.c.b16 %v1473, %v1469
  %v1530 = vpack.c.b16 %v1474, %v1470
  %v1531 = vpack.c.b16 %v1475, %v1471
  %v1532 = vpack.c.b16 %v1480, %v1476
  %v1533 = vpack.c.b16 %v1481, %v1477
  %v1534 = vpack.c.b16 %v1482, %v1478
  %v1535 = vpack.c.b16 %v1483, %v1479
  %v1536 = vpack.c.b16 %v1488, %v1484
  %v1537 = vpack.c.b16 %v1489, %v1485
  %v1538 = vpack.c.b16 %v1490, %v1486
  %v1539 = vpack.c.b16 %v1491, %v1487
  %v1540 = vpack.c.b16 %v1496, %v1492
  %v1541 = vpack.c.b16 %v1497, %v1493
  %v1542 = vpack.c.b16 %v1498, %v1494
  %v1543 = vpack.c.b16 %v1499, %v1495
  %v1544 = vpack.c.b16 %v1504, %v1500
  %v1545 = vpack.c.b16 %v1505, %v1501
  %v1546 = vpack.c.b16 %v1506, %v1502
  %v1547 = vpack.c.b16 %v1507, %v1503
  %v1548 = vpack.c.b16 %v1512, %v1508
  %v1549 = vpack.c.b16 %v1513, %v1509
  %v1550 = vpack.c.b16 %v1514, %v1510
  %v1551 = vpack.c.b16 %v1515, %v1511
  %v1552 = vpack.c.b16 %v1520, %v1516
  %v1553 = vpack.c.b16 %v1521, %v1517
  %v1554 = vpack.c.b16 %v1522, %v1518
  %v1555 = vpack.c.b16 %v1523, %v1519
  %1588 = vmatprep.subr.bf16.mxu0 %v1553
  %1589 = vmatpush1.bf16.msra.mxu0 %v1552
  %1590 = vmatprep.subr.bf16.mxu0 %v1549
  %1591 = vmatpush1.bf16.msra.mxu0 %v1548
  %1592 = vmatprep.subr.bf16.mxu0 %v1545
  %1593 = vmatpush1.bf16.msra.mxu0 %v1544
  %1594 = vmatprep.subr.bf16.mxu0 %v1541
  %1595 = vmatpush1.bf16.msra.mxu0 %v1540
  %1596 = vmatprep.subr.bf16.mxu0 %v1537
  %1597 = vmatpush1.bf16.msra.mxu0 %v1536
  %1598 = vmatprep.subr.bf16.mxu0 %v1533
  %1599 = vmatpush1.bf16.msra.mxu0 %v1532
  %1600 = vmatprep.subr.bf16.mxu0 %v1529
  %1601 = vmatpush1.bf16.msra.mxu0 %v1528
  %1602 = vmatprep.subr.bf16.mxu0 %v1525
  %1603 = vmatpush1.bf16.msra.mxu0 %v1524
  %1604 = vmatprep.subr.bf16.mxu0 0
  %1605 = vmatpush2.bf16.msra.mxu0 0
  %1606 = vmatprep.subr.bf16.mxu0 0
  %1607 = vmatpush2.bf16.msra.mxu0 0
  %1608 = vmatprep.subr.bf16.mxu0 0
  %1609 = vmatpush2.bf16.msra.mxu0 0
  %1610 = vmatprep.subr.bf16.mxu0 0
  %1611 = vmatpush2.bf16.msra.mxu0 0
  %1612 = vmatprep.subr.bf16.mxu0 0
  %1613 = vmatpush2.bf16.msra.mxu0 0
  %1614 = vmatprep.subr.bf16.mxu0 0
  %1615 = vmatpush2.bf16.msra.mxu0 0
  %1616 = vmatprep.subr.bf16.mxu0 0
  %1617 = vmatpush2.bf16.msra.mxu0 0
  %1618 = vmatprep.subr.bf16.mxu0 0
  %1619 = vmatpush2.bf16.msra.mxu0 0
  %1620 = vmatprep.mubr.bf16.mxu0 0
  %1621 = vmatmul.mubr.bf16.gmra.mxu0 %v1395
  %v1622 = vpop.f32.mrf.mxu0
  %v1623 = vadd.f32 0.0, %v1622
  %v1624 = vpop.f32.mrf.mxu0
  %v1625 = vadd.f32 0.0, %v1624
  %v1626 = vpop.f32.mrf.mxu0
  %v1627 = vpop.f32.mrf.mxu0
  %1628 = vdwg.mxu0
  %1629 = vmatprep.subr.bf16.mxu0 %v1555
  %1630 = vmatpush1.bf16.msra.mxu0 %v1554
  %1631 = vmatprep.subr.bf16.mxu0 %v1551
  %1632 = vmatpush1.bf16.msra.mxu0 %v1550
  %1633 = vmatprep.subr.bf16.mxu0 %v1547
  %1634 = vmatpush1.bf16.msra.mxu0 %v1546
  %1635 = vmatprep.subr.bf16.mxu0 %v1543
  %1636 = vmatpush1.bf16.msra.mxu0 %v1542
  %1637 = vmatprep.subr.bf16.mxu0 %v1539
  %1638 = vmatpush1.bf16.msra.mxu0 %v1538
  %1639 = vmatprep.subr.bf16.mxu0 %v1535
  %1640 = vmatpush1.bf16.msra.mxu0 %v1534
  %1641 = vmatprep.subr.bf16.mxu0 %v1531
  %1642 = vmatpush1.bf16.msra.mxu0 %v1530
  %1643 = vmatprep.subr.bf16.mxu0 %v1527
  %1644 = vmatpush1.bf16.msra.mxu0 %v1526
  %1645 = vmatprep.subr.bf16.mxu0 0
  %1646 = vmatpush2.bf16.msra.mxu0 0
  %1647 = vmatprep.subr.bf16.mxu0 0
  %1648 = vmatpush2.bf16.msra.mxu0 0
  %1649 = vmatprep.subr.bf16.mxu0 0
  %1650 = vmatpush2.bf16.msra.mxu0 0
  %1651 = vmatprep.subr.bf16.mxu0 0
  %1652 = vmatpush2.bf16.msra.mxu0 0
  %1653 = vmatprep.subr.bf16.mxu0 0
  %1654 = vmatpush2.bf16.msra.mxu0 0
  %1655 = vmatprep.subr.bf16.mxu0 0
  %1656 = vmatpush2.bf16.msra.mxu0 0
  %1657 = vmatprep.subr.bf16.mxu0 0
  %1658 = vmatpush2.bf16.msra.mxu0 0
  %1659 = vmatprep.subr.bf16.mxu0 0
  %1660 = vmatpush2.bf16.msra.mxu0 0
  %1661 = vmatprep.mubr.bf16.mxu0 0
  %1662 = vmatmul.mubr.bf16.gmra.mxu0 %v1395
  %v1663 = vpop.f32.mrf.mxu0
  %v1664 = vadd.f32 0.0, %v1663
  %v1665 = vpop.f32.mrf.mxu0
  %v1666 = vadd.f32 0.0, %v1665
  %v1667 = vpop.f32.mrf.mxu0
  %v1668 = vpop.f32.mrf.mxu0
  %1669 = vdwg.mxu0
  %v1670 = vadd.f32 %v1391, %v1623
  %v1671 = vadd.f32 %v1392, %v1625
  %v1672 = vadd.f32 %v1393, %v1664
  %v1673 = vadd.f32 %v1394, %v1666
  %v1674 = vxor.u32 %v1670, 2147483648
  %v1675 = vxor.u32 %v1671, 2147483648
  %v1676 = vxor.u32 %v1672, 2147483648
  %v1677 = vmul.f32 %v1674, 1.442695
  %v1678 = vpow.pop %v1677
  %v1679 = vmul.f32 %v1675, 1.442695
  %v1680 = vpow.pop %v1679
  %v1681 = vmul.f32 %v1676, 1.442695
  %v1682 = vpow.pop %v1681
  %v1683 = vadd.f32 %v1678, 1.0
  %v1684 = vadd.f32 %v1680, 1.0
  %v1685 = vadd.f32 %v1682, 1.0
  %v1686 = vrcp.pop %v1683
  %v1687 = vmul.f32 1.0, %v1686
  %v1688 = vrcp.pop %v1684
  %v1689 = vmul.f32 1.0, %v1688
  %v1690 = vrcp.pop %v1685
  %v1691 = vmul.f32 1.0, %v1690
  %v1692 = vtanh.pop %v1673
  %v1693 = vmul.f32 %v1689, %v1387
  %v1694 = vmul.f32 %v1687, %v1692
  %v1695 = vadd.f32 %v1693, %v1694
  %v1696 = vtanh.pop %v1695
  %v1697 = vmul.f32 %v1691, %v1696
  %1698 = vst [vmem:[#allocation7 + $0x18] sm:$0xff] %v1697
  %v1699 = vld [vmem:[#allocation2 + $0x80] sm:$0xff]
  %v1700 = vld [vmem:[#allocation2 + $0x88] sm:$0xff]
  %v1701 = vld [vmem:[#allocation2 + $0x90] sm:$0xff]
  %v1702 = vld [vmem:[#allocation2 + $0x98] sm:$0xff]
  %v1703 = vpack.c.bf16 %v1697, %v1697
  %v1704 = vld [vmem:[%s2] sm:$0xff]
  %v1705 = vld [vmem:[%s2 + $0x8] sm:$0xff]
  %v1706 = vld [vmem:[%s2 + $0x10] sm:$0xff]
  %v1707 = vld [vmem:[%s2 + $0x18] sm:$0xff]
  %v1708 = vld [vmem:[%s2 + $0x20] sm:$0xff]
  %v1709 = vld [vmem:[%s2 + $0x28] sm:$0xff]
  %v1710 = vld [vmem:[%s2 + $0x30] sm:$0xff]
  %v1711 = vld [vmem:[%s2 + $0x38] sm:$0xff]
  %v1712 = vld [vmem:[%s2 + $0x40] sm:$0xff]
  %v1713 = vld [vmem:[%s2 + $0x48] sm:$0xff]
  %v1714 = vld [vmem:[%s2 + $0x50] sm:$0xff]
  %v1715 = vld [vmem:[%s2 + $0x58] sm:$0xff]
  %v1716 = vld [vmem:[%s2 + $0x60] sm:$0xff]
  %v1717 = vld [vmem:[%s2 + $0x68] sm:$0xff]
  %v1718 = vld [vmem:[%s2 + $0x70] sm:$0xff]
  %v1719 = vld [vmem:[%s2 + $0x78] sm:$0xff]
  %v1720 = vld [vmem:[%s2 + $0x80] sm:$0xff]
  %v1721 = vld [vmem:[%s2 + $0x88] sm:$0xff]
  %v1722 = vld [vmem:[%s2 + $0x90] sm:$0xff]
  %v1723 = vld [vmem:[%s2 + $0x98] sm:$0xff]
  %v1724 = vld [vmem:[%s2 + $0xa0] sm:$0xff]
  %v1725 = vld [vmem:[%s2 + $0xa8] sm:$0xff]
  %v1726 = vld [vmem:[%s2 + $0xb0] sm:$0xff]
  %v1727 = vld [vmem:[%s2 + $0xb8] sm:$0xff]
  %v1728 = vld [vmem:[%s2 + $0xc0] sm:$0xff]
  %v1729 = vld [vmem:[%s2 + $0xc8] sm:$0xff]
  %v1730 = vld [vmem:[%s2 + $0xd0] sm:$0xff]
  %v1731 = vld [vmem:[%s2 + $0xd8] sm:$0xff]
  %v1732 = vld [vmem:[%s2 + $0xe0] sm:$0xff]
  %v1733 = vld [vmem:[%s2 + $0xe8] sm:$0xff]
  %v1734 = vld [vmem:[%s2 + $0xf0] sm:$0xff]
  %v1735 = vld [vmem:[%s2 + $0xf8] sm:$0xff]
  %v1768 = vunpack.c.l.b16 %v1704
  %v1769 = vunpack.c.h.b16 %v1704
  %v1770 = vunpack.c.l.b16 %v1705
  %v1771 = vunpack.c.h.b16 %v1705
  %v1772 = vunpack.c.l.b16 %v1706
  %v1773 = vunpack.c.h.b16 %v1706
  %v1774 = vunpack.c.l.b16 %v1707
  %v1775 = vunpack.c.h.b16 %v1707
  %v1776 = vunpack.c.l.b16 %v1708
  %v1777 = vunpack.c.h.b16 %v1708
  %v1778 = vunpack.c.l.b16 %v1709
  %v1779 = vunpack.c.h.b16 %v1709
  %v1780 = vunpack.c.l.b16 %v1710
  %v1781 = vunpack.c.h.b16 %v1710
  %v1782 = vunpack.c.l.b16 %v1711
  %v1783 = vunpack.c.h.b16 %v1711
  %v1784 = vunpack.c.l.b16 %v1712
  %v1785 = vunpack.c.h.b16 %v1712
  %v1786 = vunpack.c.l.b16 %v1713
  %v1787 = vunpack.c.h.b16 %v1713
  %v1788 = vunpack.c.l.b16 %v1714
  %v1789 = vunpack.c.h.b16 %v1714
  %v1790 = vunpack.c.l.b16 %v1715
  %v1791 = vunpack.c.h.b16 %v1715
  %v1792 = vunpack.c.l.b16 %v1716
  %v1793 = vunpack.c.h.b16 %v1716
  %v1794 = vunpack.c.l.b16 %v1717
  %v1795 = vunpack.c.h.b16 %v1717
  %v1796 = vunpack.c.l.b16 %v1718
  %v1797 = vunpack.c.h.b16 %v1718
  %v1798 = vunpack.c.l.b16 %v1719
  %v1799 = vunpack.c.h.b16 %v1719
  %v1800 = vunpack.c.l.b16 %v1720
  %v1801 = vunpack.c.h.b16 %v1720
  %v1802 = vunpack.c.l.b16 %v1721
  %v1803 = vunpack.c.h.b16 %v1721
  %v1804 = vunpack.c.l.b16 %v1722
  %v1805 = vunpack.c.h.b16 %v1722
  %v1806 = vunpack.c.l.b16 %v1723
  %v1807 = vunpack.c.h.b16 %v1723
  %v1808 = vunpack.c.l.b16 %v1724
  %v1809 = vunpack.c.h.b16 %v1724
  %v1810 = vunpack.c.l.b16 %v1725
  %v1811 = vunpack.c.h.b16 %v1725
  %v1812 = vunpack.c.l.b16 %v1726
  %v1813 = vunpack.c.h.b16 %v1726
  %v1814 = vunpack.c.l.b16 %v1727
  %v1815 = vunpack.c.h.b16 %v1727
  %v1816 = vunpack.c.l.b16 %v1728
  %v1817 = vunpack.c.h.b16 %v1728
  %v1818 = vunpack.c.l.b16 %v1729
  %v1819 = vunpack.c.h.b16 %v1729
  %v1820 = vunpack.c.l.b16 %v1730
  %v1821 = vunpack.c.h.b16 %v1730
  %v1822 = vunpack.c.l.b16 %v1731
  %v1823 = vunpack.c.h.b16 %v1731
  %v1824 = vunpack.c.l.b16 %v1732
  %v1825 = vunpack.c.h.b16 %v1732
  %v1826 = vunpack.c.l.b16 %v1733
  %v1827 = vunpack.c.h.b16 %v1733
  %v1828 = vunpack.c.l.b16 %v1734
  %v1829 = vunpack.c.h.b16 %v1734
  %v1830 = vunpack.c.l.b16 %v1735
  %v1831 = vunpack.c.h.b16 %v1735
  %v1832 = vpack.c.b16 %v1772, %v1768
  %v1833 = vpack.c.b16 %v1773, %v1769
  %v1834 = vpack.c.b16 %v1774, %v1770
  %v1835 = vpack.c.b16 %v1775, %v1771
  %v1836 = vpack.c.b16 %v1780, %v1776
  %v1837 = vpack.c.b16 %v1781, %v1777
  %v1838 = vpack.c.b16 %v1782, %v1778
  %v1839 = vpack.c.b16 %v1783, %v1779
  %v1840 = vpack.c.b16 %v1788, %v1784
  %v1841 = vpack.c.b16 %v1789, %v1785
  %v1842 = vpack.c.b16 %v1790, %v1786
  %v1843 = vpack.c.b16 %v1791, %v1787
  %v1844 = vpack.c.b16 %v1796, %v1792
  %v1845 = vpack.c.b16 %v1797, %v1793
  %v1846 = vpack.c.b16 %v1798, %v1794
  %v1847 = vpack.c.b16 %v1799, %v1795
  %v1848 = vpack.c.b16 %v1804, %v1800
  %v1849 = vpack.c.b16 %v1805, %v1801
  %v1850 = vpack.c.b16 %v1806, %v1802
  %v1851 = vpack.c.b16 %v1807, %v1803
  %v1852 = vpack.c.b16 %v1812, %v1808
  %v1853 = vpack.c.b16 %v1813, %v1809
  %v1854 = vpack.c.b16 %v1814, %v1810
  %v1855 = vpack.c.b16 %v1815, %v1811
  %v1856 = vpack.c.b16 %v1820, %v1816
  %v1857 = vpack.c.b16 %v1821, %v1817
  %v1858 = vpack.c.b16 %v1822, %v1818
  %v1859 = vpack.c.b16 %v1823, %v1819
  %v1860 = vpack.c.b16 %v1828, %v1824
  %v1861 = vpack.c.b16 %v1829, %v1825
  %v1862 = vpack.c.b16 %v1830, %v1826
  %v1863 = vpack.c.b16 %v1831, %v1827
  %1896 = vmatprep.subr.bf16.mxu0 %v1861
  %1897 = vmatpush1.bf16.msra.mxu0 %v1860
  %1898 = vmatprep.subr.bf16.mxu0 %v1857
  %1899 = vmatpush1.bf16.msra.mxu0 %v1856
  %1900 = vmatprep.subr.bf16.mxu0 %v1853
  %1901 = vmatpush1.bf16.msra.mxu0 %v1852
  %1902 = vmatprep.subr.bf16.mxu0 %v1849
  %1903 = vmatpush1.bf16.msra.mxu0 %v1848
  %1904 = vmatprep.subr.bf16.mxu0 %v1845
  %1905 = vmatpush1.bf16.msra.mxu0 %v1844
  %1906 = vmatprep.subr.bf16.mxu0 %v1841
  %1907 = vmatpush1.bf16.msra.mxu0 %v1840
  %1908 = vmatprep.subr.bf16.mxu0 %v1837
  %1909 = vmatpush1.bf16.msra.mxu0 %v1836
  %1910 = vmatprep.subr.bf16.mxu0 %v1833
  %1911 = vmatpush1.bf16.msra.mxu0 %v1832
  %1912 = vmatprep.subr.bf16.mxu0 0
  %1913 = vmatpush2.bf16.msra.mxu0 0
  %1914 = vmatprep.subr.bf16.mxu0 0
  %1915 = vmatpush2.bf16.msra.mxu0 0
  %1916 = vmatprep.subr.bf16.mxu0 0
  %1917 = vmatpush2.bf16.msra.mxu0 0
  %1918 = vmatprep.subr.bf16.mxu0 0
  %1919 = vmatpush2.bf16.msra.mxu0 0
  %1920 = vmatprep.subr.bf16.mxu0 0
  %1921 = vmatpush2.bf16.msra.mxu0 0
  %1922 = vmatprep.subr.bf16.mxu0 0
  %1923 = vmatpush2.bf16.msra.mxu0 0
  %1924 = vmatprep.subr.bf16.mxu0 0
  %1925 = vmatpush2.bf16.msra.mxu0 0
  %1926 = vmatprep.subr.bf16.mxu0 0
  %1927 = vmatpush2.bf16.msra.mxu0 0
  %1928 = vmatprep.mubr.bf16.mxu0 0
  %1929 = vmatmul.mubr.bf16.gmra.mxu0 %v1703
  %v1930 = vpop.f32.mrf.mxu0
  %v1931 = vadd.f32 0.0, %v1930
  %v1932 = vpop.f32.mrf.mxu0
  %v1933 = vadd.f32 0.0, %v1932
  %v1934 = vpop.f32.mrf.mxu0
  %v1935 = vpop.f32.mrf.mxu0
  %1936 = vdwg.mxu0
  %1937 = vmatprep.subr.bf16.mxu0 %v1863
  %1938 = vmatpush1.bf16.msra.mxu0 %v1862
  %1939 = vmatprep.subr.bf16.mxu0 %v1859
  %1940 = vmatpush1.bf16.msra.mxu0 %v1858
  %1941 = vmatprep.subr.bf16.mxu0 %v1855
  %1942 = vmatpush1.bf16.msra.mxu0 %v1854
  %1943 = vmatprep.subr.bf16.mxu0 %v1851
  %1944 = vmatpush1.bf16.msra.mxu0 %v1850
  %1945 = vmatprep.subr.bf16.mxu0 %v1847
  %1946 = vmatpush1.bf16.msra.mxu0 %v1846
  %1947 = vmatprep.subr.bf16.mxu0 %v1843
  %1948 = vmatpush1.bf16.msra.mxu0 %v1842
  %1949 = vmatprep.subr.bf16.mxu0 %v1839
  %1950 = vmatpush1.bf16.msra.mxu0 %v1838
  %1951 = vmatprep.subr.bf16.mxu0 %v1835
  %1952 = vmatpush1.bf16.msra.mxu0 %v1834
  %1953 = vmatprep.subr.bf16.mxu0 0
  %1954 = vmatpush2.bf16.msra.mxu0 0
  %1955 = vmatprep.subr.bf16.mxu0 0
  %1956 = vmatpush2.bf16.msra.mxu0 0
  %1957 = vmatprep.subr.bf16.mxu0 0
  %1958 = vmatpush2.bf16.msra.mxu0 0
  %1959 = vmatprep.subr.bf16.mxu0 0
  %1960 = vmatpush2.bf16.msra.mxu0 0
  %1961 = vmatprep.subr.bf16.mxu0 0
  %1962 = vmatpush2.bf16.msra.mxu0 0
  %1963 = vmatprep.subr.bf16.mxu0 0
  %1964 = vmatpush2.bf16.msra.mxu0 0
  %1965 = vmatprep.subr.bf16.mxu0 0
  %1966 = vmatpush2.bf16.msra.mxu0 0
  %1967 = vmatprep.subr.bf16.mxu0 0
  %1968 = vmatpush2.bf16.msra.mxu0 0
  %1969 = vmatprep.mubr.bf16.mxu0 0
  %1970 = vmatmul.mubr.bf16.gmra.mxu0 %v1703
  %v1971 = vpop.f32.mrf.mxu0
  %v1972 = vadd.f32 0.0, %v1971
  %v1973 = vpop.f32.mrf.mxu0
  %v1974 = vadd.f32 0.0, %v1973
  %v1975 = vpop.f32.mrf.mxu0
  %v1976 = vpop.f32.mrf.mxu0
  %1977 = vdwg.mxu0
  %v1978 = vadd.f32 %v1699, %v1931
  %v1979 = vadd.f32 %v1700, %v1933
  %v1980 = vadd.f32 %v1701, %v1972
  %v1981 = vadd.f32 %v1702, %v1974
  %v1982 = vxor.u32 %v1978, 2147483648
  %v1983 = vxor.u32 %v1979, 2147483648
  %v1984 = vxor.u32 %v1980, 2147483648
  %v1985 = vmul.f32 %v1982, 1.442695
  %v1986 = vpow.pop %v1985
  %v1987 = vmul.f32 %v1983, 1.442695
  %v1988 = vpow.pop %v1987
  %v1989 = vmul.f32 %v1984, 1.442695
  %v1990 = vpow.pop %v1989
  %v1991 = vadd.f32 %v1986, 1.0
  %v1992 = vadd.f32 %v1988, 1.0
  %v1993 = vadd.f32 %v1990, 1.0
  %v1994 = vrcp.pop %v1991
  %v1995 = vmul.f32 1.0, %v1994
  %v1996 = vrcp.pop %v1992
  %v1997 = vmul.f32 1.0, %v1996
  %v1998 = vrcp.pop %v1993
  %v1999 = vmul.f32 1.0, %v1998
  %v2000 = vtanh.pop %v1981
  %v2001 = vmul.f32 %v1997, %v1695
  %v2002 = vmul.f32 %v1995, %v2000
  %v2003 = vadd.f32 %v2001, %v2002
  %v2004 = vtanh.pop %v2003
  %v2005 = vmul.f32 %v1999, %v2004
  %2006 = vst [vmem:[#allocation7 + $0x20] sm:$0xff] %v2005
  %v2007 = vld [vmem:[#allocation2 + $0xa0] sm:$0xff]
  %v2008 = vld [vmem:[#allocation2 + $0xa8] sm:$0xff]
  %v2009 = vld [vmem:[#allocation2 + $0xb0] sm:$0xff]
  %v2010 = vld [vmem:[#allocation2 + $0xb8] sm:$0xff]
  %v2011 = vpack.c.bf16 %v2005, %v2005
  %v2012 = vld [vmem:[%s2] sm:$0xff]
  %v2013 = vld [vmem:[%s2 + $0x8] sm:$0xff]
  %v2014 = vld [vmem:[%s2 + $0x10] sm:$0xff]
  %v2015 = vld [vmem:[%s2 + $0x18] sm:$0xff]
  %v2016 = vld [vmem:[%s2 + $0x20] sm:$0xff]
  %v2017 = vld [vmem:[%s2 + $0x28] sm:$0xff]
  %v2018 = vld [vmem:[%s2 + $0x30] sm:$0xff]
  %v2019 = vld [vmem:[%s2 + $0x38] sm:$0xff]
  %v2020 = vld [vmem:[%s2 + $0x40] sm:$0xff]
  %v2021 = vld [vmem:[%s2 + $0x48] sm:$0xff]
  %v2022 = vld [vmem:[%s2 + $0x50] sm:$0xff]
  %v2023 = vld [vmem:[%s2 + $0x58] sm:$0xff]
  %v2024 = vld [vmem:[%s2 + $0x60] sm:$0xff]
  %v2025 = vld [vmem:[%s2 + $0x68] sm:$0xff]
  %v2026 = vld [vmem:[%s2 + $0x70] sm:$0xff]
  %v2027 = vld [vmem:[%s2 + $0x78] sm:$0xff]
  %v2028 = vld [vmem:[%s2 + $0x80] sm:$0xff]
  %v2029 = vld [vmem:[%s2 + $0x88] sm:$0xff]
  %v2030 = vld [vmem:[%s2 + $0x90] sm:$0xff]
  %v2031 = vld [vmem:[%s2 + $0x98] sm:$0xff]
  %v2032 = vld [vmem:[%s2 + $0xa0] sm:$0xff]
  %v2033 = vld [vmem:[%s2 + $0xa8] sm:$0xff]
  %v2034 = vld [vmem:[%s2 + $0xb0] sm:$0xff]
  %v2035 = vld [vmem:[%s2 + $0xb8] sm:$0xff]
  %v2036 = vld [vmem:[%s2 + $0xc0] sm:$0xff]
  %v2037 = vld [vmem:[%s2 + $0xc8] sm:$0xff]
  %v2038 = vld [vmem:[%s2 + $0xd0] sm:$0xff]
  %v2039 = vld [vmem:[%s2 + $0xd8] sm:$0xff]
  %v2040 = vld [vmem:[%s2 + $0xe0] sm:$0xff]
  %v2041 = vld [vmem:[%s2 + $0xe8] sm:$0xff]
  %v2042 = vld [vmem:[%s2 + $0xf0] sm:$0xff]
  %v2043 = vld [vmem:[%s2 + $0xf8] sm:$0xff]
  %v2076 = vunpack.c.l.b16 %v2012
  %v2077 = vunpack.c.h.b16 %v2012
  %v2078 = vunpack.c.l.b16 %v2013
  %v2079 = vunpack.c.h.b16 %v2013
  %v2080 = vunpack.c.l.b16 %v2014
  %v2081 = vunpack.c.h.b16 %v2014
  %v2082 = vunpack.c.l.b16 %v2015
  %v2083 = vunpack.c.h.b16 %v2015
  %v2084 = vunpack.c.l.b16 %v2016
  %v2085 = vunpack.c.h.b16 %v2016
  %v2086 = vunpack.c.l.b16 %v2017
  %v2087 = vunpack.c.h.b16 %v2017
  %v2088 = vunpack.c.l.b16 %v2018
  %v2089 = vunpack.c.h.b16 %v2018
  %v2090 = vunpack.c.l.b16 %v2019
  %v2091 = vunpack.c.h.b16 %v2019
  %v2092 = vunpack.c.l.b16 %v2020
  %v2093 = vunpack.c.h.b16 %v2020
  %v2094 = vunpack.c.l.b16 %v2021
  %v2095 = vunpack.c.h.b16 %v2021
  %v2096 = vunpack.c.l.b16 %v2022
  %v2097 = vunpack.c.h.b16 %v2022
  %v2098 = vunpack.c.l.b16 %v2023
  %v2099 = vunpack.c.h.b16 %v2023
  %v2100 = vunpack.c.l.b16 %v2024
  %v2101 = vunpack.c.h.b16 %v2024
  %v2102 = vunpack.c.l.b16 %v2025
  %v2103 = vunpack.c.h.b16 %v2025
  %v2104 = vunpack.c.l.b16 %v2026
  %v2105 = vunpack.c.h.b16 %v2026
  %v2106 = vunpack.c.l.b16 %v2027
  %v2107 = vunpack.c.h.b16 %v2027
  %v2108 = vunpack.c.l.b16 %v2028
  %v2109 = vunpack.c.h.b16 %v2028
  %v2110 = vunpack.c.l.b16 %v2029
  %v2111 = vunpack.c.h.b16 %v2029
  %v2112 = vunpack.c.l.b16 %v2030
  %v2113 = vunpack.c.h.b16 %v2030
  %v2114 = vunpack.c.l.b16 %v2031
  %v2115 = vunpack.c.h.b16 %v2031
  %v2116 = vunpack.c.l.b16 %v2032
  %v2117 = vunpack.c.h.b16 %v2032
  %v2118 = vunpack.c.l.b16 %v2033
  %v2119 = vunpack.c.h.b16 %v2033
  %v2120 = vunpack.c.l.b16 %v2034
  %v2121 = vunpack.c.h.b16 %v2034
  %v2122 = vunpack.c.l.b16 %v2035
  %v2123 = vunpack.c.h.b16 %v2035
  %v2124 = vunpack.c.l.b16 %v2036
  %v2125 = vunpack.c.h.b16 %v2036
  %v2126 = vunpack.c.l.b16 %v2037
  %v2127 = vunpack.c.h.b16 %v2037
  %v2128 = vunpack.c.l.b16 %v2038
  %v2129 = vunpack.c.h.b16 %v2038
  %v2130 = vunpack.c.l.b16 %v2039
  %v2131 = vunpack.c.h.b16 %v2039
  %v2132 = vunpack.c.l.b16 %v2040
  %v2133 = vunpack.c.h.b16 %v2040
  %v2134 = vunpack.c.l.b16 %v2041
  %v2135 = vunpack.c.h.b16 %v2041
  %v2136 = vunpack.c.l.b16 %v2042
  %v2137 = vunpack.c.h.b16 %v2042
  %v2138 = vunpack.c.l.b16 %v2043
  %v2139 = vunpack.c.h.b16 %v2043
  %v2140 = vpack.c.b16 %v2080, %v2076
  %v2141 = vpack.c.b16 %v2081, %v2077
  %v2142 = vpack.c.b16 %v2082, %v2078
  %v2143 = vpack.c.b16 %v2083, %v2079
  %v2144 = vpack.c.b16 %v2088, %v2084
  %v2145 = vpack.c.b16 %v2089, %v2085
  %v2146 = vpack.c.b16 %v2090, %v2086
  %v2147 = vpack.c.b16 %v2091, %v2087
  %v2148 = vpack.c.b16 %v2096, %v2092
  %v2149 = vpack.c.b16 %v2097, %v2093
  %v2150 = vpack.c.b16 %v2098, %v2094
  %v2151 = vpack.c.b16 %v2099, %v2095
  %v2152 = vpack.c.b16 %v2104, %v2100
  %v2153 = vpack.c.b16 %v2105, %v2101
  %v2154 = vpack.c.b16 %v2106, %v2102
  %v2155 = vpack.c.b16 %v2107, %v2103
  %v2156 = vpack.c.b16 %v2112, %v2108
  %v2157 = vpack.c.b16 %v2113, %v2109
  %v2158 = vpack.c.b16 %v2114, %v2110
  %v2159 = vpack.c.b16 %v2115, %v2111
  %v2160 = vpack.c.b16 %v2120, %v2116
  %v2161 = vpack.c.b16 %v2121, %v2117
  %v2162 = vpack.c.b16 %v2122, %v2118
  %v2163 = vpack.c.b16 %v2123, %v2119
  %v2164 = vpack.c.b16 %v2128, %v2124
  %v2165 = vpack.c.b16 %v2129, %v2125
  %v2166 = vpack.c.b16 %v2130, %v2126
  %v2167 = vpack.c.b16 %v2131, %v2127
  %v2168 = vpack.c.b16 %v2136, %v2132
  %v2169 = vpack.c.b16 %v2137, %v2133
  %v2170 = vpack.c.b16 %v2138, %v2134
  %v2171 = vpack.c.b16 %v2139, %v2135
  %2204 = vmatprep.subr.bf16.mxu0 %v2169
  %2205 = vmatpush1.bf16.msra.mxu0 %v2168
  %2206 = vmatprep.subr.bf16.mxu0 %v2165
  %2207 = vmatpush1.bf16.msra.mxu0 %v2164
  %2208 = vmatprep.subr.bf16.mxu0 %v2161
  %2209 = vmatpush1.bf16.msra.mxu0 %v2160
  %2210 = vmatprep.subr.bf16.mxu0 %v2157
  %2211 = vmatpush1.bf16.msra.mxu0 %v2156
  %2212 = vmatprep.subr.bf16.mxu0 %v2153
  %2213 = vmatpush1.bf16.msra.mxu0 %v2152
  %2214 = vmatprep.subr.bf16.mxu0 %v2149
  %2215 = vmatpush1.bf16.msra.mxu0 %v2148
  %2216 = vmatprep.subr.bf16.mxu0 %v2145
  %2217 = vmatpush1.bf16.msra.mxu0 %v2144
  %2218 = vmatprep.subr.bf16.mxu0 %v2141
  %2219 = vmatpush1.bf16.msra.mxu0 %v2140
  %2220 = vmatprep.subr.bf16.mxu0 0
  %2221 = vmatpush2.bf16.msra.mxu0 0
  %2222 = vmatprep.subr.bf16.mxu0 0
  %2223 = vmatpush2.bf16.msra.mxu0 0
  %2224 = vmatprep.subr.bf16.mxu0 0
  %2225 = vmatpush2.bf16.msra.mxu0 0
  %2226 = vmatprep.subr.bf16.mxu0 0
  %2227 = vmatpush2.bf16.msra.mxu0 0
  %2228 = vmatprep.subr.bf16.mxu0 0
  %2229 = vmatpush2.bf16.msra.mxu0 0
  %2230 = vmatprep.subr.bf16.mxu0 0
  %2231 = vmatpush2.bf16.msra.mxu0 0
  %2232 = vmatprep.subr.bf16.mxu0 0
  %2233 = vmatpush2.bf16.msra.mxu0 0
  %2234 = vmatprep.subr.bf16.mxu0 0
  %2235 = vmatpush2.bf16.msra.mxu0 0
  %2236 = vmatprep.mubr.bf16.mxu0 0
  %2237 = vmatmul.mubr.bf16.gmra.mxu0 %v2011
  %v2238 = vpop.f32.mrf.mxu0
  %v2239 = vadd.f32 0.0, %v2238
  %v2240 = vpop.f32.mrf.mxu0
  %v2241 = vadd.f32 0.0, %v2240
  %v2242 = vpop.f32.mrf.mxu0
  %v2243 = vpop.f32.mrf.mxu0
  %2244 = vdwg.mxu0
  %2245 = vmatprep.subr.bf16.mxu0 %v2171
  %2246 = vmatpush1.bf16.msra.mxu0 %v2170
  %2247 = vmatprep.subr.bf16.mxu0 %v2167
  %2248 = vmatpush1.bf16.msra.mxu0 %v2166
  %2249 = vmatprep.subr.bf16.mxu0 %v2163
  %2250 = vmatpush1.bf16.msra.mxu0 %v2162
  %2251 = vmatprep.subr.bf16.mxu0 %v2159
  %2252 = vmatpush1.bf16.msra.mxu0 %v2158
  %2253 = vmatprep.subr.bf16.mxu0 %v2155
  %2254 = vmatpush1.bf16.msra.mxu0 %v2154
  %2255 = vmatprep.subr.bf16.mxu0 %v2151
  %2256 = vmatpush1.bf16.msra.mxu0 %v2150
  %2257 = vmatprep.subr.bf16.mxu0 %v2147
  %2258 = vmatpush1.bf16.msra.mxu0 %v2146
  %2259 = vmatprep.subr.bf16.mxu0 %v2143
  %2260 = vmatpush1.bf16.msra.mxu0 %v2142
  %2261 = vmatprep.subr.bf16.mxu0 0
  %2262 = vmatpush2.bf16.msra.mxu0 0
  %2263 = vmatprep.subr.bf16.mxu0 0
  %2264 = vmatpush2.bf16.msra.mxu0 0
  %2265 = vmatprep.subr.bf16.mxu0 0
  %2266 = vmatpush2.bf16.msra.mxu0 0
  %2267 = vmatprep.subr.bf16.mxu0 0
  %2268 = vmatpush2.bf16.msra.mxu0 0
  %2269 = vmatprep.subr.bf16.mxu0 0
  %2270 = vmatpush2.bf16.msra.mxu0 0
  %2271 = vmatprep.subr.bf16.mxu0 0
  %2272 = vmatpush2.bf16.msra.mxu0 0
  %2273 = vmatprep.subr.bf16.mxu0 0
  %2274 = vmatpush2.bf16.msra.mxu0 0
  %2275 = vmatprep.subr.bf16.mxu0 0
  %2276 = vmatpush2.bf16.msra.mxu0 0
  %2277 = vmatprep.mubr.bf16.mxu0 0
  %2278 = vmatmul.mubr.bf16.gmra.mxu0 %v2011
  %v2279 = vpop.f32.mrf.mxu0
  %v2280 = vadd.f32 0.0, %v2279
  %v2281 = vpop.f32.mrf.mxu0
  %v2282 = vadd.f32 0.0, %v2281
  %v2283 = vpop.f32.mrf.mxu0
  %v2284 = vpop.f32.mrf.mxu0
  %2285 = vdwg.mxu0
  %v2286 = vadd.f32 %v2007, %v2239
  %v2287 = vadd.f32 %v2008, %v2241
  %v2288 = vadd.f32 %v2009, %v2280
  %v2289 = vadd.f32 %v2010, %v2282
  %v2290 = vxor.u32 %v2286, 2147483648
  %v2291 = vxor.u32 %v2287, 2147483648
  %v2292 = vxor.u32 %v2288, 2147483648
  %v2293 = vmul.f32 %v2290, 1.442695
  %v2294 = vpow.pop %v2293
  %v2295 = vmul.f32 %v2291, 1.442695
  %v2296 = vpow.pop %v2295
  %v2297 = vmul.f32 %v2292, 1.442695
  %v2298 = vpow.pop %v2297
  %v2299 = vadd.f32 %v2294, 1.0
  %v2300 = vadd.f32 %v2296, 1.0
  %v2301 = vadd.f32 %v2298, 1.0
  %v2302 = vrcp.pop %v2299
  %v2303 = vmul.f32 1.0, %v2302
  %v2304 = vrcp.pop %v2300
  %v2305 = vmul.f32 1.0, %v2304
  %v2306 = vrcp.pop %v2301
  %v2307 = vmul.f32 1.0, %v2306
  %v2308 = vtanh.pop %v2289
  %v2309 = vmul.f32 %v2305, %v2003
  %v2310 = vmul.f32 %v2303, %v2308
  %v2311 = vadd.f32 %v2309, %v2310
  %v2312 = vtanh.pop %v2311
  %v2313 = vmul.f32 %v2307, %v2312
  %2314 = vst [vmem:[#allocation7 + $0x28] sm:$0xff] %v2313
  %v2315 = vld [vmem:[#allocation2 + $0xc0] sm:$0xff]
  %v2316 = vld [vmem:[#allocation2 + $0xc8] sm:$0xff]
  %v2317 = vld [vmem:[#allocation2 + $0xd0] sm:$0xff]
  %v2318 = vld [vmem:[#allocation2 + $0xd8] sm:$0xff]
  %v2319 = vpack.c.bf16 %v2313, %v2313
  %v2320 = vld [vmem:[%s2] sm:$0xff]
  %v2321 = vld [vmem:[%s2 + $0x8] sm:$0xff]
  %v2322 = vld [vmem:[%s2 + $0x10] sm:$0xff]
  %v2323 = vld [vmem:[%s2 + $0x18] sm:$0xff]
  %v2324 = vld [vmem:[%s2 + $0x20] sm:$0xff]
  %v2325 = vld [vmem:[%s2 + $0x28] sm:$0xff]
  %v2326 = vld [vmem:[%s2 + $0x30] sm:$0xff]
  %v2327 = vld [vmem:[%s2 + $0x38] sm:$0xff]
  %v2328 = vld [vmem:[%s2 + $0x40] sm:$0xff]
  %v2329 = vld [vmem:[%s2 + $0x48] sm:$0xff]
  %v2330 = vld [vmem:[%s2 + $0x50] sm:$0xff]
  %v2331 = vld [vmem:[%s2 + $0x58] sm:$0xff]
  %v2332 = vld [vmem:[%s2 + $0x60] sm:$0xff]
  %v2333 = vld [vmem:[%s2 + $0x68] sm:$0xff]
  %v2334 = vld [vmem:[%s2 + $0x70] sm:$0xff]
  %v2335 = vld [vmem:[%s2 + $0x78] sm:$0xff]
  %v2336 = vld [vmem:[%s2 + $0x80] sm:$0xff]
  %v2337 = vld [vmem:[%s2 + $0x88] sm:$0xff]
  %v2338 = vld [vmem:[%s2 + $0x90] sm:$0xff]
  %v2339 = vld [vmem:[%s2 + $0x98] sm:$0xff]
  %v2340 = vld [vmem:[%s2 + $0xa0] sm:$0xff]
  %v2341 = vld [vmem:[%s2 + $0xa8] sm:$0xff]
  %v2342 = vld [vmem:[%s2 + $0xb0] sm:$0xff]
  %v2343 = vld [vmem:[%s2 + $0xb8] sm:$0xff]
  %v2344 = vld [vmem:[%s2 + $0xc0] sm:$0xff]
  %v2345 = vld [vmem:[%s2 + $0xc8] sm:$0xff]
  %v2346 = vld [vmem:[%s2 + $0xd0] sm:$0xff]
  %v2347 = vld [vmem:[%s2 + $0xd8] sm:$0xff]
  %v2348 = vld [vmem:[%s2 + $0xe0] sm:$0xff]
  %v2349 = vld [vmem:[%s2 + $0xe8] sm:$0xff]
  %v2350 = vld [vmem:[%s2 + $0xf0] sm:$0xff]
  %v2351 = vld [vmem:[%s2 + $0xf8] sm:$0xff]
  %v2384 = vunpack.c.l.b16 %v2320
  %v2385 = vunpack.c.h.b16 %v2320
  %v2386 = vunpack.c.l.b16 %v2321
  %v2387 = vunpack.c.h.b16 %v2321
  %v2388 = vunpack.c.l.b16 %v2322
  %v2389 = vunpack.c.h.b16 %v2322
  %v2390 = vunpack.c.l.b16 %v2323
  %v2391 = vunpack.c.h.b16 %v2323
  %v2392 = vunpack.c.l.b16 %v2324
  %v2393 = vunpack.c.h.b16 %v2324
  %v2394 = vunpack.c.l.b16 %v2325
  %v2395 = vunpack.c.h.b16 %v2325
  %v2396 = vunpack.c.l.b16 %v2326
  %v2397 = vunpack.c.h.b16 %v2326
  %v2398 = vunpack.c.l.b16 %v2327
  %v2399 = vunpack.c.h.b16 %v2327
  %v2400 = vunpack.c.l.b16 %v2328
  %v2401 = vunpack.c.h.b16 %v2328
  %v2402 = vunpack.c.l.b16 %v2329
  %v2403 = vunpack.c.h.b16 %v2329
  %v2404 = vunpack.c.l.b16 %v2330
  %v2405 = vunpack.c.h.b16 %v2330
  %v2406 = vunpack.c.l.b16 %v2331
  %v2407 = vunpack.c.h.b16 %v2331
  %v2408 = vunpack.c.l.b16 %v2332
  %v2409 = vunpack.c.h.b16 %v2332
  %v2410 = vunpack.c.l.b16 %v2333
  %v2411 = vunpack.c.h.b16 %v2333
  %v2412 = vunpack.c.l.b16 %v2334
  %v2413 = vunpack.c.h.b16 %v2334
  %v2414 = vunpack.c.l.b16 %v2335
  %v2415 = vunpack.c.h.b16 %v2335
  %v2416 = vunpack.c.l.b16 %v2336
  %v2417 = vunpack.c.h.b16 %v2336
  %v2418 = vunpack.c.l.b16 %v2337
  %v2419 = vunpack.c.h.b16 %v2337
  %v2420 = vunpack.c.l.b16 %v2338
  %v2421 = vunpack.c.h.b16 %v2338
  %v2422 = vunpack.c.l.b16 %v2339
  %v2423 = vunpack.c.h.b16 %v2339
  %v2424 = vunpack.c.l.b16 %v2340
  %v2425 = vunpack.c.h.b16 %v2340
  %v2426 = vunpack.c.l.b16 %v2341
  %v2427 = vunpack.c.h.b16 %v2341
  %v2428 = vunpack.c.l.b16 %v2342
  %v2429 = vunpack.c.h.b16 %v2342
  %v2430 = vunpack.c.l.b16 %v2343
  %v2431 = vunpack.c.h.b16 %v2343
  %v2432 = vunpack.c.l.b16 %v2344
  %v2433 = vunpack.c.h.b16 %v2344
  %v2434 = vunpack.c.l.b16 %v2345
  %v2435 = vunpack.c.h.b16 %v2345
  %v2436 = vunpack.c.l.b16 %v2346
  %v2437 = vunpack.c.h.b16 %v2346
  %v2438 = vunpack.c.l.b16 %v2347
  %v2439 = vunpack.c.h.b16 %v2347
  %v2440 = vunpack.c.l.b16 %v2348
  %v2441 = vunpack.c.h.b16 %v2348
  %v2442 = vunpack.c.l.b16 %v2349
  %v2443 = vunpack.c.h.b16 %v2349
  %v2444 = vunpack.c.l.b16 %v2350
  %v2445 = vunpack.c.h.b16 %v2350
  %v2446 = vunpack.c.l.b16 %v2351
  %v2447 = vunpack.c.h.b16 %v2351
  %v2448 = vpack.c.b16 %v2388, %v2384
  %v2449 = vpack.c.b16 %v2389, %v2385
  %v2450 = vpack.c.b16 %v2390, %v2386
  %v2451 = vpack.c.b16 %v2391, %v2387
  %v2452 = vpack.c.b16 %v2396, %v2392
  %v2453 = vpack.c.b16 %v2397, %v2393
  %v2454 = vpack.c.b16 %v2398, %v2394
  %v2455 = vpack.c.b16 %v2399, %v2395
  %v2456 = vpack.c.b16 %v2404, %v2400
  %v2457 = vpack.c.b16 %v2405, %v2401
  %v2458 = vpack.c.b16 %v2406, %v2402
  %v2459 = vpack.c.b16 %v2407, %v2403
  %v2460 = vpack.c.b16 %v2412, %v2408
  %v2461 = vpack.c.b16 %v2413, %v2409
  %v2462 = vpack.c.b16 %v2414, %v2410
  %v2463 = vpack.c.b16 %v2415, %v2411
  %v2464 = vpack.c.b16 %v2420, %v2416
  %v2465 = vpack.c.b16 %v2421, %v2417
  %v2466 = vpack.c.b16 %v2422, %v2418
  %v2467 = vpack.c.b16 %v2423, %v2419
  %v2468 = vpack.c.b16 %v2428, %v2424
  %v2469 = vpack.c.b16 %v2429, %v2425
  %v2470 = vpack.c.b16 %v2430, %v2426
  %v2471 = vpack.c.b16 %v2431, %v2427
  %v2472 = vpack.c.b16 %v2436, %v2432
  %v2473 = vpack.c.b16 %v2437, %v2433
  %v2474 = vpack.c.b16 %v2438, %v2434
  %v2475 = vpack.c.b16 %v2439, %v2435
  %v2476 = vpack.c.b16 %v2444, %v2440
  %v2477 = vpack.c.b16 %v2445, %v2441
  %v2478 = vpack.c.b16 %v2446, %v2442
  %v2479 = vpack.c.b16 %v2447, %v2443
  %2512 = vmatprep.subr.bf16.mxu0 %v2477
  %2513 = vmatpush1.bf16.msra.mxu0 %v2476
  %2514 = vmatprep.subr.bf16.mxu0 %v2473
  %2515 = vmatpush1.bf16.msra.mxu0 %v2472
  %2516 = vmatprep.subr.bf16.mxu0 %v2469
  %2517 = vmatpush1.bf16.msra.mxu0 %v2468
  %2518 = vmatprep.subr.bf16.mxu0 %v2465
  %2519 = vmatpush1.bf16.msra.mxu0 %v2464
  %2520 = vmatprep.subr.bf16.mxu0 %v2461
  %2521 = vmatpush1.bf16.msra.mxu0 %v2460
  %2522 = vmatprep.subr.bf16.mxu0 %v2457
  %2523 = vmatpush1.bf16.msra.mxu0 %v2456
  %2524 = vmatprep.subr.bf16.mxu0 %v2453
  %2525 = vmatpush1.bf16.msra.mxu0 %v2452
  %2526 = vmatprep.subr.bf16.mxu0 %v2449
  %2527 = vmatpush1.bf16.msra.mxu0 %v2448
  %2528 = vmatprep.subr.bf16.mxu0 0
  %2529 = vmatpush2.bf16.msra.mxu0 0
  %2530 = vmatprep.subr.bf16.mxu0 0
  %2531 = vmatpush2.bf16.msra.mxu0 0
  %2532 = vmatprep.subr.bf16.mxu0 0
  %2533 = vmatpush2.bf16.msra.mxu0 0
  %2534 = vmatprep.subr.bf16.mxu0 0
  %2535 = vmatpush2.bf16.msra.mxu0 0
  %2536 = vmatprep.subr.bf16.mxu0 0
  %2537 = vmatpush2.bf16.msra.mxu0 0
  %2538 = vmatprep.subr.bf16.mxu0 0
  %2539 = vmatpush2.bf16.msra.mxu0 0
  %2540 = vmatprep.subr.bf16.mxu0 0
  %2541 = vmatpush2.bf16.msra.mxu0 0
  %2542 = vmatprep.subr.bf16.mxu0 0
  %2543 = vmatpush2.bf16.msra.mxu0 0
  %2544 = vmatprep.mubr.bf16.mxu0 0
  %2545 = vmatmul.mubr.bf16.gmra.mxu0 %v2319
  %v2546 = vpop.f32.mrf.mxu0
  %v2547 = vadd.f32 0.0, %v2546
  %v2548 = vpop.f32.mrf.mxu0
  %v2549 = vadd.f32 0.0, %v2548
  %v2550 = vpop.f32.mrf.mxu0
  %v2551 = vpop.f32.mrf.mxu0
  %2552 = vdwg.mxu0
  %2553 = vmatprep.subr.bf16.mxu0 %v2479
  %2554 = vmatpush1.bf16.msra.mxu0 %v2478
  %2555 = vmatprep.subr.bf16.mxu0 %v2475
  %2556 = vmatpush1.bf16.msra.mxu0 %v2474
  %2557 = vmatprep.subr.bf16.mxu0 %v2471
  %2558 = vmatpush1.bf16.msra.mxu0 %v2470
  %2559 = vmatprep.subr.bf16.mxu0 %v2467
  %2560 = vmatpush1.bf16.msra.mxu0 %v2466
  %2561 = vmatprep.subr.bf16.mxu0 %v2463
  %2562 = vmatpush1.bf16.msra.mxu0 %v2462
  %2563 = vmatprep.subr.bf16.mxu0 %v2459
  %2564 = vmatpush1.bf16.msra.mxu0 %v2458
  %2565 = vmatprep.subr.bf16.mxu0 %v2455
  %2566 = vmatpush1.bf16.msra.mxu0 %v2454
  %2567 = vmatprep.subr.bf16.mxu0 %v2451
  %2568 = vmatpush1.bf16.msra.mxu0 %v2450
  %2569 = vmatprep.subr.bf16.mxu0 0
  %2570 = vmatpush2.bf16.msra.mxu0 0
  %2571 = vmatprep.subr.bf16.mxu0 0
  %2572 = vmatpush2.bf16.msra.mxu0 0
  %2573 = vmatprep.subr.bf16.mxu0 0
  %2574 = vmatpush2.bf16.msra.mxu0 0
  %2575 = vmatprep.subr.bf16.mxu0 0
  %2576 = vmatpush2.bf16.msra.mxu0 0
  %2577 = vmatprep.subr.bf16.mxu0 0
  %2578 = vmatpush2.bf16.msra.mxu0 0
  %2579 = vmatprep.subr.bf16.mxu0 0
  %2580 = vmatpush2.bf16.msra.mxu0 0
  %2581 = vmatprep.subr.bf16.mxu0 0
  %2582 = vmatpush2.bf16.msra.mxu0 0
  %2583 = vmatprep.subr.bf16.mxu0 0
  %2584 = vmatpush2.bf16.msra.mxu0 0
  %2585 = vmatprep.mubr.bf16.mxu0 0
  %2586 = vmatmul.mubr.bf16.gmra.mxu0 %v2319
  %v2587 = vpop.f32.mrf.mxu0
  %v2588 = vadd.f32 0.0, %v2587
  %v2589 = vpop.f32.mrf.mxu0
  %v2590 = vadd.f32 0.0, %v2589
  %v2591 = vpop.f32.mrf.mxu0
  %v2592 = vpop.f32.mrf.mxu0
  %2593 = vdwg.mxu0
  %v2594 = vadd.f32 %v2315, %v2547
  %v2595 = vadd.f32 %v2316, %v2549
  %v2596 = vadd.f32 %v2317, %v2588
  %v2597 = vadd.f32 %v2318, %v2590
  %v2598 = vxor.u32 %v2594, 2147483648
  %v2599 = vxor.u32 %v2595, 2147483648
  %v2600 = vxor.u32 %v2596, 2147483648
  %v2601 = vmul.f32 %v2598, 1.442695
  %v2602 = vpow.pop %v2601
  %v2603 = vmul.f32 %v2599, 1.442695
  %v2604 = vpow.pop %v2603
  %v2605 = vmul.f32 %v2600, 1.442695
  %v2606 = vpow.pop %v2605
  %v2607 = vadd.f32 %v2602, 1.0
  %v2608 = vadd.f32 %v2604, 1.0
  %v2609 = vadd.f32 %v2606, 1.0
  %v2610 = vrcp.pop %v2607
  %v2611 = vmul.f32 1.0, %v2610
  %v2612 = vrcp.pop %v2608
  %v2613 = vmul.f32 1.0, %v2612
  %v2614 = vrcp.pop %v2609
  %v2615 = vmul.f32 1.0, %v2614
  %v2616 = vtanh.pop %v2597
  %v2617 = vmul.f32 %v2613, %v2311
  %v2618 = vmul.f32 %v2611, %v2616
  %v2619 = vadd.f32 %v2617, %v2618
  %v2620 = vtanh.pop %v2619
  %v2621 = vmul.f32 %v2615, %v2620
  %2622 = vst [vmem:[#allocation7 + $0x30] sm:$0xff] %v2621
  %v2623 = vld [vmem:[#allocation2 + $0xe0] sm:$0xff]
  %v2624 = vld [vmem:[#allocation2 + $0xe8] sm:$0xff]
  %v2625 = vld [vmem:[#allocation2 + $0xf0] sm:$0xff]
  %v2626 = vld [vmem:[#allocation2 + $0xf8] sm:$0xff]
  %v2627 = vpack.c.bf16 %v2621, %v2621
  %v2628 = vld [vmem:[%s2] sm:$0xff]
  %v2629 = vld [vmem:[%s2 + $0x8] sm:$0xff]
  %v2630 = vld [vmem:[%s2 + $0x10] sm:$0xff]
  %v2631 = vld [vmem:[%s2 + $0x18] sm:$0xff]
  %v2632 = vld [vmem:[%s2 + $0x20] sm:$0xff]
  %v2633 = vld [vmem:[%s2 + $0x28] sm:$0xff]
  %v2634 = vld [vmem:[%s2 + $0x30] sm:$0xff]
  %v2635 = vld [vmem:[%s2 + $0x38] sm:$0xff]
  %v2636 = vld [vmem:[%s2 + $0x40] sm:$0xff]
  %v2637 = vld [vmem:[%s2 + $0x48] sm:$0xff]
  %v2638 = vld [vmem:[%s2 + $0x50] sm:$0xff]
  %v2639 = vld [vmem:[%s2 + $0x58] sm:$0xff]
  %v2640 = vld [vmem:[%s2 + $0x60] sm:$0xff]
  %v2641 = vld [vmem:[%s2 + $0x68] sm:$0xff]
  %v2642 = vld [vmem:[%s2 + $0x70] sm:$0xff]
  %v2643 = vld [vmem:[%s2 + $0x78] sm:$0xff]
  %v2644 = vld [vmem:[%s2 + $0x80] sm:$0xff]
  %v2645 = vld [vmem:[%s2 + $0x88] sm:$0xff]
  %v2646 = vld [vmem:[%s2 + $0x90] sm:$0xff]
  %v2647 = vld [vmem:[%s2 + $0x98] sm:$0xff]
  %v2648 = vld [vmem:[%s2 + $0xa0] sm:$0xff]
  %v2649 = vld [vmem:[%s2 + $0xa8] sm:$0xff]
  %v2650 = vld [vmem:[%s2 + $0xb0] sm:$0xff]
  %v2651 = vld [vmem:[%s2 + $0xb8] sm:$0xff]
  %v2652 = vld [vmem:[%s2 + $0xc0] sm:$0xff]
  %v2653 = vld [vmem:[%s2 + $0xc8] sm:$0xff]
  %v2654 = vld [vmem:[%s2 + $0xd0] sm:$0xff]
  %v2655 = vld [vmem:[%s2 + $0xd8] sm:$0xff]
  %v2656 = vld [vmem:[%s2 + $0xe0] sm:$0xff]
  %v2657 = vld [vmem:[%s2 + $0xe8] sm:$0xff]
  %v2658 = vld [vmem:[%s2 + $0xf0] sm:$0xff]
  %v2659 = vld [vmem:[%s2 + $0xf8] sm:$0xff]
  %v2692 = vunpack.c.l.b16 %v2628
  %v2693 = vunpack.c.h.b16 %v2628
  %v2694 = vunpack.c.l.b16 %v2629
  %v2695 = vunpack.c.h.b16 %v2629
  %v2696 = vunpack.c.l.b16 %v2630
  %v2697 = vunpack.c.h.b16 %v2630
  %v2698 = vunpack.c.l.b16 %v2631
  %v2699 = vunpack.c.h.b16 %v2631
  %v2700 = vunpack.c.l.b16 %v2632
  %v2701 = vunpack.c.h.b16 %v2632
  %v2702 = vunpack.c.l.b16 %v2633
  %v2703 = vunpack.c.h.b16 %v2633
  %v2704 = vunpack.c.l.b16 %v2634
  %v2705 = vunpack.c.h.b16 %v2634
  %v2706 = vunpack.c.l.b16 %v2635
  %v2707 = vunpack.c.h.b16 %v2635
  %v2708 = vunpack.c.l.b16 %v2636
  %v2709 = vunpack.c.h.b16 %v2636
  %v2710 = vunpack.c.l.b16 %v2637
  %v2711 = vunpack.c.h.b16 %v2637
  %v2712 = vunpack.c.l.b16 %v2638
  %v2713 = vunpack.c.h.b16 %v2638
  %v2714 = vunpack.c.l.b16 %v2639
  %v2715 = vunpack.c.h.b16 %v2639
  %v2716 = vunpack.c.l.b16 %v2640
  %v2717 = vunpack.c.h.b16 %v2640
  %v2718 = vunpack.c.l.b16 %v2641
  %v2719 = vunpack.c.h.b16 %v2641
  %v2720 = vunpack.c.l.b16 %v2642
  %v2721 = vunpack.c.h.b16 %v2642
  %v2722 = vunpack.c.l.b16 %v2643
  %v2723 = vunpack.c.h.b16 %v2643
  %v2724 = vunpack.c.l.b16 %v2644
  %v2725 = vunpack.c.h.b16 %v2644
  %v2726 = vunpack.c.l.b16 %v2645
  %v2727 = vunpack.c.h.b16 %v2645
  %v2728 = vunpack.c.l.b16 %v2646
  %v2729 = vunpack.c.h.b16 %v2646
  %v2730 = vunpack.c.l.b16 %v2647
  %v2731 = vunpack.c.h.b16 %v2647
  %v2732 = vunpack.c.l.b16 %v2648
  %v2733 = vunpack.c.h.b16 %v2648
  %v2734 = vunpack.c.l.b16 %v2649
  %v2735 = vunpack.c.h.b16 %v2649
  %v2736 = vunpack.c.l.b16 %v2650
  %v2737 = vunpack.c.h.b16 %v2650
  %v2738 = vunpack.c.l.b16 %v2651
  %v2739 = vunpack.c.h.b16 %v2651
  %v2740 = vunpack.c.l.b16 %v2652
  %v2741 = vunpack.c.h.b16 %v2652
  %v2742 = vunpack.c.l.b16 %v2653
  %v2743 = vunpack.c.h.b16 %v2653
  %v2744 = vunpack.c.l.b16 %v2654
  %v2745 = vunpack.c.h.b16 %v2654
  %v2746 = vunpack.c.l.b16 %v2655
  %v2747 = vunpack.c.h.b16 %v2655
  %v2748 = vunpack.c.l.b16 %v2656
  %v2749 = vunpack.c.h.b16 %v2656
  %v2750 = vunpack.c.l.b16 %v2657
  %v2751 = vunpack.c.h.b16 %v2657
  %v2752 = vunpack.c.l.b16 %v2658
  %v2753 = vunpack.c.h.b16 %v2658
  %v2754 = vunpack.c.l.b16 %v2659
  %v2755 = vunpack.c.h.b16 %v2659
  %v2756 = vpack.c.b16 %v2696, %v2692
  %v2757 = vpack.c.b16 %v2697, %v2693
  %v2758 = vpack.c.b16 %v2698, %v2694
  %v2759 = vpack.c.b16 %v2699, %v2695
  %v2760 = vpack.c.b16 %v2704, %v2700
  %v2761 = vpack.c.b16 %v2705, %v2701
  %v2762 = vpack.c.b16 %v2706, %v2702
  %v2763 = vpack.c.b16 %v2707, %v2703
  %v2764 = vpack.c.b16 %v2712, %v2708
  %v2765 = vpack.c.b16 %v2713, %v2709
  %v2766 = vpack.c.b16 %v2714, %v2710
  %v2767 = vpack.c.b16 %v2715, %v2711
  %v2768 = vpack.c.b16 %v2720, %v2716
  %v2769 = vpack.c.b16 %v2721, %v2717
  %v2770 = vpack.c.b16 %v2722, %v2718
  %v2771 = vpack.c.b16 %v2723, %v2719
  %v2772 = vpack.c.b16 %v2728, %v2724
  %v2773 = vpack.c.b16 %v2729, %v2725
  %v2774 = vpack.c.b16 %v2730, %v2726
  %v2775 = vpack.c.b16 %v2731, %v2727
  %v2776 = vpack.c.b16 %v2736, %v2732
  %v2777 = vpack.c.b16 %v2737, %v2733
  %v2778 = vpack.c.b16 %v2738, %v2734
  %v2779 = vpack.c.b16 %v2739, %v2735
  %v2780 = vpack.c.b16 %v2744, %v2740
  %v2781 = vpack.c.b16 %v2745, %v2741
  %v2782 = vpack.c.b16 %v2746, %v2742
  %v2783 = vpack.c.b16 %v2747, %v2743
  %v2784 = vpack.c.b16 %v2752, %v2748
  %v2785 = vpack.c.b16 %v2753, %v2749
  %v2786 = vpack.c.b16 %v2754, %v2750
  %v2787 = vpack.c.b16 %v2755, %v2751
  %2820 = vmatprep.subr.bf16.mxu0 %v2785
  %2821 = vmatpush1.bf16.msra.mxu0 %v2784
  %2822 = vmatprep.subr.bf16.mxu0 %v2781
  %2823 = vmatpush1.bf16.msra.mxu0 %v2780
  %2824 = vmatprep.subr.bf16.mxu0 %v2777
  %2825 = vmatpush1.bf16.msra.mxu0 %v2776
  %2826 = vmatprep.subr.bf16.mxu0 %v2773
  %2827 = vmatpush1.bf16.msra.mxu0 %v2772
  %2828 = vmatprep.subr.bf16.mxu0 %v2769
  %2829 = vmatpush1.bf16.msra.mxu0 %v2768
  %2830 = vmatprep.subr.bf16.mxu0 %v2765
  %2831 = vmatpush1.bf16.msra.mxu0 %v2764
  %2832 = vmatprep.subr.bf16.mxu0 %v2761
  %2833 = vmatpush1.bf16.msra.mxu0 %v2760
  %2834 = vmatprep.subr.bf16.mxu0 %v2757
  %2835 = vmatpush1.bf16.msra.mxu0 %v2756
  %2836 = vmatprep.subr.bf16.mxu0 0
  %2837 = vmatpush2.bf16.msra.mxu0 0
  %2838 = vmatprep.subr.bf16.mxu0 0
  %2839 = vmatpush2.bf16.msra.mxu0 0
  %2840 = vmatprep.subr.bf16.mxu0 0
  %2841 = vmatpush2.bf16.msra.mxu0 0
  %2842 = vmatprep.subr.bf16.mxu0 0
  %2843 = vmatpush2.bf16.msra.mxu0 0
  %2844 = vmatprep.subr.bf16.mxu0 0
  %2845 = vmatpush2.bf16.msra.mxu0 0
  %2846 = vmatprep.subr.bf16.mxu0 0
  %2847 = vmatpush2.bf16.msra.mxu0 0
  %2848 = vmatprep.subr.bf16.mxu0 0
  %2849 = vmatpush2.bf16.msra.mxu0 0
  %2850 = vmatprep.subr.bf16.mxu0 0
  %2851 = vmatpush2.bf16.msra.mxu0 0
  %2852 = vmatprep.mubr.bf16.mxu0 0
  %2853 = vmatmul.mubr.bf16.gmra.mxu0 %v2627
  %v2854 = vpop.f32.mrf.mxu0
  %v2855 = vadd.f32 0.0, %v2854
  %v2856 = vpop.f32.mrf.mxu0
  %v2857 = vadd.f32 0.0, %v2856
  %v2858 = vpop.f32.mrf.mxu0
  %v2859 = vpop.f32.mrf.mxu0
  %2860 = vdwg.mxu0
  %2861 = vmatprep.subr.bf16.mxu0 %v2787
  %2862 = vmatpush1.bf16.msra.mxu0 %v2786
  %2863 = vmatprep.subr.bf16.mxu0 %v2783
  %2864 = vmatpush1.bf16.msra.mxu0 %v2782
  %2865 = vmatprep.subr.bf16.mxu0 %v2779
  %2866 = vmatpush1.bf16.msra.mxu0 %v2778
  %2867 = vmatprep.subr.bf16.mxu0 %v2775
  %2868 = vmatpush1.bf16.msra.mxu0 %v2774
  %2869 = vmatprep.subr.bf16.mxu0 %v2771
  %2870 = vmatpush1.bf16.msra.mxu0 %v2770
  %2871 = vmatprep.subr.bf16.mxu0 %v2767
  %2872 = vmatpush1.bf16.msra.mxu0 %v2766
  %2873 = vmatprep.subr.bf16.mxu0 %v2763
  %2874 = vmatpush1.bf16.msra.mxu0 %v2762
  %2875 = vmatprep.subr.bf16.mxu0 %v2759
  %2876 = vmatpush1.bf16.msra.mxu0 %v2758
  %2877 = vmatprep.subr.bf16.mxu0 0
  %2878 = vmatpush2.bf16.msra.mxu0 0
  %2879 = vmatprep.subr.bf16.mxu0 0
  %2880 = vmatpush2.bf16.msra.mxu0 0
  %2881 = vmatprep.subr.bf16.mxu0 0
  %2882 = vmatpush2.bf16.msra.mxu0 0
  %2883 = vmatprep.subr.bf16.mxu0 0
  %2884 = vmatpush2.bf16.msra.mxu0 0
  %2885 = vmatprep.subr.bf16.mxu0 0
  %2886 = vmatpush2.bf16.msra.mxu0 0
  %2887 = vmatprep.subr.bf16.mxu0 0
  %2888 = vmatpush2.bf16.msra.mxu0 0
  %2889 = vmatprep.subr.bf16.mxu0 0
  %2890 = vmatpush2.bf16.msra.mxu0 0
  %2891 = vmatprep.subr.bf16.mxu0 0
  %2892 = vmatpush2.bf16.msra.mxu0 0
  %2893 = vmatprep.mubr.bf16.mxu0 0
  %2894 = vmatmul.mubr.bf16.gmra.mxu0 %v2627
  %v2895 = vpop.f32.mrf.mxu0
  %v2896 = vadd.f32 0.0, %v2895
  %v2897 = vpop.f32.mrf.mxu0
  %v2898 = vadd.f32 0.0, %v2897
  %v2899 = vpop.f32.mrf.mxu0
  %v2900 = vpop.f32.mrf.mxu0
  %2901 = vdwg.mxu0
  %v2902 = vadd.f32 %v2623, %v2855
  %v2903 = vadd.f32 %v2624, %v2857
  %v2904 = vadd.f32 %v2625, %v2896
  %v2905 = vadd.f32 %v2626, %v2898
  %v2906 = vxor.u32 %v2902, 2147483648
  %v2907 = vxor.u32 %v2903, 2147483648
  %v2908 = vxor.u32 %v2904, 2147483648
  %v2909 = vmul.f32 %v2906, 1.442695
  %v2910 = vpow.pop %v2909
  %v2911 = vmul.f32 %v2907, 1.442695
  %v2912 = vpow.pop %v2911
  %v2913 = vmul.f32 %v2908, 1.442695
  %v2914 = vpow.pop %v2913
  %v2915 = vadd.f32 %v2910, 1.0
  %v2916 = vadd.f32 %v2912, 1.0
  %v2917 = vadd.f32 %v2914, 1.0
  %v2918 = vrcp.pop %v2915
  %v2919 = vmul.f32 1.0, %v2918
  %v2920 = vrcp.pop %v2916
  %v2921 = vmul.f32 1.0, %v2920
  %v2922 = vrcp.pop %v2917
  %v2923 = vmul.f32 1.0, %v2922
  %v2924 = vtanh.pop %v2905
  %v2925 = vmul.f32 %v2921, %v2619
  %v2926 = vmul.f32 %v2919, %v2924
  %v2927 = vadd.f32 %v2925, %v2926
  %v2928 = vtanh.pop %v2927
  %v2929 = vmul.f32 %v2923, %v2928
  %2930 = vst [vmem:[#allocation7 + $0x38] sm:$0xff] %v2929
  %2931 = vst [vmem:[#allocation3] sm:$0xff] %v2929
  %2932 = vst [vmem:[#allocation4] sm:$0xff] %v2927
  %v2933 = vld [vmem:[#allocation7] sm:$0xff]
  %v2934 = vld [vmem:[#allocation7 + $0x8] sm:$0xff]
  %v2935 = vld [vmem:[#allocation7 + $0x10] sm:$0xff]
  %v2936 = vld [vmem:[#allocation7 + $0x18] sm:$0xff]
  %v2937 = vld [vmem:[#allocation7 + $0x20] sm:$0xff]
  %v2938 = vld [vmem:[#allocation7 + $0x28] sm:$0xff]
  %v2939 = vld [vmem:[#allocation7 + $0x30] sm:$0xff]
  %v2940 = vld [vmem:[#allocation7 + $0x38] sm:$0xff]
  %v2941 = vpack.c.bf16 %v2934, %v2933
  %v2942 = vpack.c.bf16 %v2936, %v2935
  %v2943 = vpack.c.bf16 %v2938, %v2937
  %v2944 = vpack.c.bf16 %v2940, %v2939
  %v2945 = vld [vmem:[%s4] sm:$0xff]
  %v2946 = vld [vmem:[%s4 + $0x8] sm:$0xff]
  %v2947 = vld [vmem:[%s4 + $0x10] sm:$0xff]
  %v2948 = vld [vmem:[%s4 + $0x18] sm:$0xff]
  %v2949 = vld [vmem:[%s4 + $0x20] sm:$0xff]
  %v2950 = vld [vmem:[%s4 + $0x28] sm:$0xff]
  %v2951 = vld [vmem:[%s4 + $0x30] sm:$0xff]
  %v2952 = vld [vmem:[%s4 + $0x38] sm:$0xff]
  %v2953 = vld [vmem:[%s4 + $0x40] sm:$0xff]
  %v2954 = vld [vmem:[%s4 + $0x48] sm:$0xff]
  %v2955 = vld [vmem:[%s4 + $0x50] sm:$0xff]
  %v2956 = vld [vmem:[%s4 + $0x58] sm:$0xff]
  %v2957 = vld [vmem:[%s4 + $0x60] sm:$0xff]
  %v2958 = vld [vmem:[%s4 + $0x68] sm:$0xff]
  %v2959 = vld [vmem:[%s4 + $0x70] sm:$0xff]
  %v2960 = vld [vmem:[%s4 + $0x78] sm:$0xff]
  %v2961 = vld [vmem:[%s4 + $0x80] sm:$0xff]
  %v2962 = vld [vmem:[%s4 + $0x88] sm:$0xff]
  %v2963 = vld [vmem:[%s4 + $0x90] sm:$0xff]
  %v2964 = vld [vmem:[%s4 + $0x98] sm:$0xff]
  %v2965 = vld [vmem:[%s4 + $0xa0] sm:$0xff]
  %v2966 = vld [vmem:[%s4 + $0xa8] sm:$0xff]
  %v2967 = vld [vmem:[%s4 + $0xb0] sm:$0xff]
  %v2968 = vld [vmem:[%s4 + $0xb8] sm:$0xff]
  %v2969 = vld [vmem:[%s4 + $0xc0] sm:$0xff]
  %v2970 = vld [vmem:[%s4 + $0xc8] sm:$0xff]
  %v2971 = vld [vmem:[%s4 + $0xd0] sm:$0xff]
  %v2972 = vld [vmem:[%s4 + $0xd8] sm:$0xff]
  %v2973 = vld [vmem:[%s4 + $0xe0] sm:$0xff]
  %v2974 = vld [vmem:[%s4 + $0xe8] sm:$0xff]
  %v2975 = vld [vmem:[%s4 + $0xf0] sm:$0xff]
  %v2976 = vld [vmem:[%s4 + $0xf8] sm:$0xff]
  %v2977 = vld [vmem:[%s6] sm:$0xf]
  %v2979 = vlaneseq
  %v2980 = vshrl.u32 %v2979, 7
  %v2981 = vsub.s32 0, %v2980
  %v2982 = vrot.slane %v2977, %v2981
  %v2983 = vlaneseq
  %v2984 = vshrl.u32 %v2983, 7
  %v2985 = vsub.s32 1, %v2984
  %v2986 = vrot.slane %v2977, %v2985
  %v2987 = vlaneseq
  %v2988 = vshrl.u32 %v2987, 7
  %v2989 = vsub.s32 2, %v2988
  %v2990 = vrot.slane %v2977, %v2989
  %v2991 = vlaneseq
  %v2992 = vshrl.u32 %v2991, 7
  %v2993 = vsub.s32 3, %v2992
  %v2994 = vrot.slane %v2977, %v2993
  %v3031 = vunpack.c.l.b16 %v2945
  %v3032 = vunpack.c.h.b16 %v2945
  %v3033 = vunpack.c.l.b16 %v2946
  %v3034 = vunpack.c.h.b16 %v2946
  %v3035 = vunpack.c.l.b16 %v2947
  %v3036 = vunpack.c.h.b16 %v2947
  %v3037 = vunpack.c.l.b16 %v2948
  %v3038 = vunpack.c.h.b16 %v2948
  %v3039 = vunpack.c.l.b16 %v2949
  %v3040 = vunpack.c.h.b16 %v2949
  %v3041 = vunpack.c.l.b16 %v2950
  %v3042 = vunpack.c.h.b16 %v2950
  %v3043 = vunpack.c.l.b16 %v2951
  %v3044 = vunpack.c.h.b16 %v2951
  %v3045 = vunpack.c.l.b16 %v2952
  %v3046 = vunpack.c.h.b16 %v2952
  %v3047 = vunpack.c.l.b16 %v2953
  %v3048 = vunpack.c.h.b16 %v2953
  %v3049 = vunpack.c.l.b16 %v2954
  %v3050 = vunpack.c.h.b16 %v2954
  %v3051 = vunpack.c.l.b16 %v2955
  %v3052 = vunpack.c.h.b16 %v2955
  %v3053 = vunpack.c.l.b16 %v2956
  %v3054 = vunpack.c.h.b16 %v2956
  %v3055 = vunpack.c.l.b16 %v2957
  %v3056 = vunpack.c.h.b16 %v2957
  %v3057 = vunpack.c.l.b16 %v2958
  %v3058 = vunpack.c.h.b16 %v2958
  %v3059 = vunpack.c.l.b16 %v2959
  %v3060 = vunpack.c.h.b16 %v2959
  %v3061 = vunpack.c.l.b16 %v2960
  %v3062 = vunpack.c.h.b16 %v2960
  %v3063 = vunpack.c.l.b16 %v2961
  %v3064 = vunpack.c.h.b16 %v2961
  %v3065 = vunpack.c.l.b16 %v2962
  %v3066 = vunpack.c.h.b16 %v2962
  %v3067 = vunpack.c.l.b16 %v2963
  %v3068 = vunpack.c.h.b16 %v2963
  %v3069 = vunpack.c.l.b16 %v2964
  %v3070 = vunpack.c.h.b16 %v2964
  %v3071 = vunpack.c.l.b16 %v2965
  %v3072 = vunpack.c.h.b16 %v2965
  %v3073 = vunpack.c.l.b16 %v2966
  %v3074 = vunpack.c.h.b16 %v2966
  %v3075 = vunpack.c.l.b16 %v2967
  %v3076 = vunpack.c.h.b16 %v2967
  %v3077 = vunpack.c.l.b16 %v2968
  %v3078 = vunpack.c.h.b16 %v2968
  %v3079 = vunpack.c.l.b16 %v2969
  %v3080 = vunpack.c.h.b16 %v2969
  %v3081 = vunpack.c.l.b16 %v2970
  %v3082 = vunpack.c.h.b16 %v2970
  %v3083 = vunpack.c.l.b16 %v2971
  %v3084 = vunpack.c.h.b16 %v2971
  %v3085 = vunpack.c.l.b16 %v2972
  %v3086 = vunpack.c.h.b16 %v2972
  %v3087 = vunpack.c.l.b16 %v2973
  %v3088 = vunpack.c.h.b16 %v2973
  %v3089 = vunpack.c.l.b16 %v2974
  %v3090 = vunpack.c.h.b16 %v2974
  %v3091 = vunpack.c.l.b16 %v2975
  %v3092 = vunpack.c.h.b16 %v2975
  %v3093 = vunpack.c.l.b16 %v2976
  %v3094 = vunpack.c.h.b16 %v2976
  %v3095 = vpack.c.b16 %v3035, %v3031
  %v3096 = vpack.c.b16 %v3036, %v3032
  %v3097 = vpack.c.b16 %v3037, %v3033
  %v3098 = vpack.c.b16 %v3038, %v3034
  %v3099 = vpack.c.b16 %v3043, %v3039
  %v3100 = vpack.c.b16 %v3044, %v3040
  %v3101 = vpack.c.b16 %v3045, %v3041
  %v3102 = vpack.c.b16 %v3046, %v3042
  %v3103 = vpack.c.b16 %v3051, %v3047
  %v3104 = vpack.c.b16 %v3052, %v3048
  %v3105 = vpack.c.b16 %v3053, %v3049
  %v3106 = vpack.c.b16 %v3054, %v3050
  %v3107 = vpack.c.b16 %v3059, %v3055
  %v3108 = vpack.c.b16 %v3060, %v3056
  %v3109 = vpack.c.b16 %v3061, %v3057
  %v3110 = vpack.c.b16 %v3062, %v3058
  %v3111 = vpack.c.b16 %v3067, %v3063
  %v3112 = vpack.c.b16 %v3068, %v3064
  %v3113 = vpack.c.b16 %v3069, %v3065
  %v3114 = vpack.c.b16 %v3070, %v3066
  %v3115 = vpack.c.b16 %v3075, %v3071
  %v3116 = vpack.c.b16 %v3076, %v3072
  %v3117 = vpack.c.b16 %v3077, %v3073
  %v3118 = vpack.c.b16 %v3078, %v3074
  %v3119 = vpack.c.b16 %v3083, %v3079
  %v3120 = vpack.c.b16 %v3084, %v3080
  %v3121 = vpack.c.b16 %v3085, %v3081
  %v3122 = vpack.c.b16 %v3086, %v3082
  %v3123 = vpack.c.b16 %v3091, %v3087
  %v3124 = vpack.c.b16 %v3092, %v3088
  %v3125 = vpack.c.b16 %v3093, %v3089
  %v3126 = vpack.c.b16 %v3094, %v3090
  %3159 = vmatprep.subr.bf16.mxu0 %v3124
  %3160 = vmatpush1.bf16.msra.mxu0 %v3123
  %3161 = vmatprep.subr.bf16.mxu0 %v3120
  %3162 = vmatpush1.bf16.msra.mxu0 %v3119
  %3163 = vmatprep.subr.bf16.mxu0 %v3116
  %3164 = vmatpush1.bf16.msra.mxu0 %v3115
  %3165 = vmatprep.subr.bf16.mxu0 %v3112
  %3166 = vmatpush1.bf16.msra.mxu0 %v3111
  %3167 = vmatprep.subr.bf16.mxu0 %v3108
  %3168 = vmatpush1.bf16.msra.mxu0 %v3107
  %3169 = vmatprep.subr.bf16.mxu0 %v3104
  %3170 = vmatpush1.bf16.msra.mxu0 %v3103
  %3171 = vmatprep.subr.bf16.mxu0 %v3100
  %3172 = vmatpush1.bf16.msra.mxu0 %v3099
  %3173 = vmatprep.subr.bf16.mxu0 %v3096
  %3174 = vmatpush1.bf16.msra.mxu0 %v3095
  %3175 = vmatprep.subr.bf16.mxu0 0
  %3176 = vmatpush2.bf16.msra.mxu0 0
  %3177 = vmatprep.subr.bf16.mxu0 0
  %3178 = vmatpush2.bf16.msra.mxu0 0
  %3179 = vmatprep.subr.bf16.mxu0 0
  %3180 = vmatpush2.bf16.msra.mxu0 0
  %3181 = vmatprep.subr.bf16.mxu0 0
  %3182 = vmatpush2.bf16.msra.mxu0 0
  %3183 = vmatprep.subr.bf16.mxu0 0
  %3184 = vmatpush2.bf16.msra.mxu0 0
  %3185 = vmatprep.subr.bf16.mxu0 0
  %3186 = vmatpush2.bf16.msra.mxu0 0
  %3187 = vmatprep.subr.bf16.mxu0 0
  %3188 = vmatpush2.bf16.msra.mxu0 0
  %3189 = vmatprep.subr.bf16.mxu0 0
  %3190 = vmatpush2.bf16.msra.mxu0 0
  %3191 = vmatprep.mubr.bf16.mxu0 0
  %3192 = vmatmul.mubr.bf16.gmra.mxu0 %v2941
  %v3193 = vpop.f32.mrf.mxu0
  %v3194 = vadd.f32 %v2982, %v3193
  %v3195 = vpop.f32.mrf.mxu0
  %v3196 = vadd.f32 %v2986, %v3195
  %v3197 = vpop.f32.mrf.mxu0
  %v3198 = vadd.f32 %v2982, %v3197
  %v3199 = vpop.f32.mrf.mxu0
  %v3200 = vadd.f32 %v2986, %v3199
  %3201 = vmatprep.mubr.bf16.mxu0 0
  %3202 = vmatmul.mubr.bf16.gmra.mxu0 %v2942
  %v3203 = vpop.f32.mrf.mxu0
  %v3204 = vadd.f32 %v2982, %v3203
  %v3205 = vpop.f32.mrf.mxu0
  %v3206 = vadd.f32 %v2986, %v3205
  %v3207 = vpop.f32.mrf.mxu0
  %v3208 = vadd.f32 %v2982, %v3207
  %v3209 = vpop.f32.mrf.mxu0
  %v3210 = vadd.f32 %v2986, %v3209
  %3211 = vmatprep.mubr.bf16.mxu0 0
  %3212 = vmatmul.mubr.bf16.gmra.mxu0 %v2943
  %v3213 = vpop.f32.mrf.mxu0
  %v3214 = vadd.f32 %v2982, %v3213
  %v3215 = vpop.f32.mrf.mxu0
  %v3216 = vadd.f32 %v2986, %v3215
  %v3217 = vpop.f32.mrf.mxu0
  %v3218 = vadd.f32 %v2982, %v3217
  %v3219 = vpop.f32.mrf.mxu0
  %v3220 = vadd.f32 %v2986, %v3219
  %3221 = vmatprep.mubr.bf16.mxu0 0
  %3222 = vmatmul.mubr.bf16.gmra.mxu0 %v2944
  %v3223 = vpop.f32.mrf.mxu0
  %v3224 = vadd.f32 %v2982, %v3223
  %v3225 = vpop.f32.mrf.mxu0
  %v3226 = vadd.f32 %v2986, %v3225
  %v3227 = vpop.f32.mrf.mxu0
  %v3228 = vadd.f32 %v2982, %v3227
  %v3229 = vpop.f32.mrf.mxu0
  %v3230 = vadd.f32 %v2986, %v3229
  %3231 = vdwg.mxu0
  %3232 = vmatprep.subr.bf16.mxu0 %v3126
  %3233 = vmatpush1.bf16.msra.mxu0 %v3125
  %3234 = vmatprep.subr.bf16.mxu0 %v3122
  %3235 = vmatpush1.bf16.msra.mxu0 %v3121
  %3236 = vmatprep.subr.bf16.mxu0 %v3118
  %3237 = vmatpush1.bf16.msra.mxu0 %v3117
  %3238 = vmatprep.subr.bf16.mxu0 %v3114
  %3239 = vmatpush1.bf16.msra.mxu0 %v3113
  %3240 = vmatprep.subr.bf16.mxu0 %v3110
  %3241 = vmatpush1.bf16.msra.mxu0 %v3109
  %3242 = vmatprep.subr.bf16.mxu0 %v3106
  %3243 = vmatpush1.bf16.msra.mxu0 %v3105
  %3244 = vmatprep.subr.bf16.mxu0 %v3102
  %3245 = vmatpush1.bf16.msra.mxu0 %v3101
  %3246 = vmatprep.subr.bf16.mxu0 %v3098
  %3247 = vmatpush1.bf16.msra.mxu0 %v3097
  %3248 = vmatprep.subr.bf16.mxu0 0
  %3249 = vmatpush2.bf16.msra.mxu0 0
  %3250 = vmatprep.subr.bf16.mxu0 0
  %3251 = vmatpush2.bf16.msra.mxu0 0
  %3252 = vmatprep.subr.bf16.mxu0 0
  %3253 = vmatpush2.bf16.msra.mxu0 0
  %3254 = vmatprep.subr.bf16.mxu0 0
  %3255 = vmatpush2.bf16.msra.mxu0 0
  %3256 = vmatprep.subr.bf16.mxu0 0
  %3257 = vmatpush2.bf16.msra.mxu0 0
  %3258 = vmatprep.subr.bf16.mxu0 0
  %3259 = vmatpush2.bf16.msra.mxu0 0
  %3260 = vmatprep.subr.bf16.mxu0 0
  %3261 = vmatpush2.bf16.msra.mxu0 0
  %3262 = vmatprep.subr.bf16.mxu0 0
  %3263 = vmatpush2.bf16.msra.mxu0 0
  %3264 = vmatprep.mubr.bf16.mxu0 0
  %3265 = vmatmul.mubr.bf16.gmra.mxu0 %v2941
  %v3266 = vpop.f32.mrf.mxu0
  %v3267 = vadd.f32 %v2990, %v3266
  %v3268 = vpop.f32.mrf.mxu0
  %v3269 = vadd.f32 %v2994, %v3268
  %v3270 = vpop.f32.mrf.mxu0
  %v3271 = vadd.f32 %v2990, %v3270
  %v3272 = vpop.f32.mrf.mxu0
  %v3273 = vadd.f32 %v2994, %v3272
  %3274 = vmatprep.mubr.bf16.mxu0 0
  %3275 = vmatmul.mubr.bf16.gmra.mxu0 %v2942
  %v3276 = vpop.f32.mrf.mxu0
  %v3277 = vadd.f32 %v2990, %v3276
  %v3278 = vpop.f32.mrf.mxu0
  %v3279 = vadd.f32 %v2994, %v3278
  %v3280 = vpop.f32.mrf.mxu0
  %v3281 = vadd.f32 %v2990, %v3280
  %v3282 = vpop.f32.mrf.mxu0
  %v3283 = vadd.f32 %v2994, %v3282
  %3284 = vmatprep.mubr.bf16.mxu0 0
  %3285 = vmatmul.mubr.bf16.gmra.mxu0 %v2943
  %v3286 = vpop.f32.mrf.mxu0
  %v3287 = vadd.f32 %v2990, %v3286
  %v3288 = vpop.f32.mrf.mxu0
  %v3289 = vadd.f32 %v2994, %v3288
  %v3290 = vpop.f32.mrf.mxu0
  %v3291 = vadd.f32 %v2990, %v3290
  %v3292 = vpop.f32.mrf.mxu0
  %v3293 = vadd.f32 %v2994, %v3292
  %3294 = vmatprep.mubr.bf16.mxu0 0
  %3295 = vmatmul.mubr.bf16.gmra.mxu0 %v2944
  %v3296 = vpop.f32.mrf.mxu0
  %v3297 = vadd.f32 %v2990, %v3296
  %v3298 = vpop.f32.mrf.mxu0
  %v3299 = vadd.f32 %v2994, %v3298
  %v3300 = vpop.f32.mrf.mxu0
  %v3301 = vadd.f32 %v2990, %v3300
  %v3302 = vpop.f32.mrf.mxu0
  %v3303 = vadd.f32 %v2994, %v3302
  %3304 = vdwg.mxu0
  %3305 = vst [vmem:[#allocation2] sm:$0xff] %v3194
  %3306 = vst [vmem:[#allocation2 + $0x8] sm:$0xff] %v3196
  %3307 = vst [vmem:[#allocation2 + $0x10] sm:$0xff] %v3267
  %3308 = vst [vmem:[#allocation2 + $0x18] sm:$0xff] %v3269
  %3309 = vst [vmem:[#allocation2 + $0x20] sm:$0xff] %v3198
  %3310 = vst [vmem:[#allocation2 + $0x28] sm:$0xff] %v3200
  %3311 = vst [vmem:[#allocation2 + $0x30] sm:$0xff] %v3271
  %3312 = vst [vmem:[#allocation2 + $0x38] sm:$0xff] %v3273
  %3313 = vst [vmem:[#allocation2 + $0x40] sm:$0xff] %v3204
  %3314 = vst [vmem:[#allocation2 + $0x48] sm:$0xff] %v3206
  %3315 = vst [vmem:[#allocation2 + $0x50] sm:$0xff] %v3277
  %3316 = vst [vmem:[#allocation2 + $0x58] sm:$0xff] %v3279
  %3317 = vst [vmem:[#allocation2 + $0x60] sm:$0xff] %v3208
  %3318 = vst [vmem:[#allocation2 + $0x68] sm:$0xff] %v3210
  %3319 = vst [vmem:[#allocation2 + $0x70] sm:$0xff] %v3281
  %3320 = vst [vmem:[#allocation2 + $0x78] sm:$0xff] %v3283
  %3321 = vst [vmem:[#allocation2 + $0x80] sm:$0xff] %v3214
  %3322 = vst [vmem:[#allocation2 + $0x88] sm:$0xff] %v3216
  %3323 = vst [vmem:[#allocation2 + $0x90] sm:$0xff] %v3287
  %3324 = vst [vmem:[#allocation2 + $0x98] sm:$0xff] %v3289
  %3325 = vst [vmem:[#allocation2 + $0xa0] sm:$0xff] %v3218
  %3326 = vst [vmem:[#allocation2 + $0xa8] sm:$0xff] %v3220
  %3327 = vst [vmem:[#allocation2 + $0xb0] sm:$0xff] %v3291
  %3328 = vst [vmem:[#allocation2 + $0xb8] sm:$0xff] %v3293
  %3329 = vst [vmem:[#allocation2 + $0xc0] sm:$0xff] %v3224
  %3330 = vst [vmem:[#allocation2 + $0xc8] sm:$0xff] %v3226
  %3331 = vst [vmem:[#allocation2 + $0xd0] sm:$0xff] %v3297
  %3332 = vst [vmem:[#allocation2 + $0xd8] sm:$0xff] %v3299
  %3333 = vst [vmem:[#allocation2 + $0xe0] sm:$0xff] %v3228
  %3334 = vst [vmem:[#allocation2 + $0xe8] sm:$0xff] %v3230
  %3335 = vst [vmem:[#allocation2 + $0xf0] sm:$0xff] %v3301
  %3336 = vst [vmem:[#allocation2 + $0xf8] sm:$0xff] %v3303
  %v3337 = vld [vmem:[#allocation5] sm:$0xff]
  %v3338 = vld [vmem:[#allocation6] sm:$0xff]
  %v3339 = vld [vmem:[#allocation2] sm:$0xff]
  %v3340 = vld [vmem:[#allocation2 + $0x8] sm:$0xff]
  %v3341 = vld [vmem:[#allocation2 + $0x10] sm:$0xff]
  %v3342 = vld [vmem:[#allocation2 + $0x18] sm:$0xff]
  %v3343 = vpack.c.bf16 %v3337, %v3337
  %v3344 = vld [vmem:[%s5] sm:$0xff]
  %v3345 = vld [vmem:[%s5 + $0x8] sm:$0xff]
  %v3346 = vld [vmem:[%s5 + $0x10] sm:$0xff]
  %v3347 = vld [vmem:[%s5 + $0x18] sm:$0xff]
  %v3348 = vld [vmem:[%s5 + $0x20] sm:$0xff]
  %v3349 = vld [vmem:[%s5 + $0x28] sm:$0xff]
  %v3350 = vld [vmem:[%s5 + $0x30] sm:$0xff]
  %v3351 = vld [vmem:[%s5 + $0x38] sm:$0xff]
  %v3352 = vld [vmem:[%s5 + $0x40] sm:$0xff]
  %v3353 = vld [vmem:[%s5 + $0x48] sm:$0xff]
  %v3354 = vld [vmem:[%s5 + $0x50] sm:$0xff]
  %v3355 = vld [vmem:[%s5 + $0x58] sm:$0xff]
  %v3356 = vld [vmem:[%s5 + $0x60] sm:$0xff]
  %v3357 = vld [vmem:[%s5 + $0x68] sm:$0xff]
  %v3358 = vld [vmem:[%s5 + $0x70] sm:$0xff]
  %v3359 = vld [vmem:[%s5 + $0x78] sm:$0xff]
  %v3360 = vld [vmem:[%s5 + $0x80] sm:$0xff]
  %v3361 = vld [vmem:[%s5 + $0x88] sm:$0xff]
  %v3362 = vld [vmem:[%s5 + $0x90] sm:$0xff]
  %v3363 = vld [vmem:[%s5 + $0x98] sm:$0xff]
  %v3364 = vld [vmem:[%s5 + $0xa0] sm:$0xff]
  %v3365 = vld [vmem:[%s5 + $0xa8] sm:$0xff]
  %v3366 = vld [vmem:[%s5 + $0xb0] sm:$0xff]
  %v3367 = vld [vmem:[%s5 + $0xb8] sm:$0xff]
  %v3368 = vld [vmem:[%s5 + $0xc0] sm:$0xff]
  %v3369 = vld [vmem:[%s5 + $0xc8] sm:$0xff]
  %v3370 = vld [vmem:[%s5 + $0xd0] sm:$0xff]
  %v3371 = vld [vmem:[%s5 + $0xd8] sm:$0xff]
  %v3372 = vld [vmem:[%s5 + $0xe0] sm:$0xff]
  %v3373 = vld [vmem:[%s5 + $0xe8] sm:$0xff]
  %v3374 = vld [vmem:[%s5 + $0xf0] sm:$0xff]
  %v3375 = vld [vmem:[%s5 + $0xf8] sm:$0xff]
  %v3408 = vunpack.c.l.b16 %v3344
  %v3409 = vunpack.c.h.b16 %v3344
  %v3410 = vunpack.c.l.b16 %v3345
  %v3411 = vunpack.c.h.b16 %v3345
  %v3412 = vunpack.c.l.b16 %v3346
  %v3413 = vunpack.c.h.b16 %v3346
  %v3414 = vunpack.c.l.b16 %v3347
  %v3415 = vunpack.c.h.b16 %v3347
  %v3416 = vunpack.c.l.b16 %v3348
  %v3417 = vunpack.c.h.b16 %v3348
  %v3418 = vunpack.c.l.b16 %v3349
  %v3419 = vunpack.c.h.b16 %v3349
  %v3420 = vunpack.c.l.b16 %v3350
  %v3421 = vunpack.c.h.b16 %v3350
  %v3422 = vunpack.c.l.b16 %v3351
  %v3423 = vunpack.c.h.b16 %v3351
  %v3424 = vunpack.c.l.b16 %v3352
  %v3425 = vunpack.c.h.b16 %v3352
  %v3426 = vunpack.c.l.b16 %v3353
  %v3427 = vunpack.c.h.b16 %v3353
  %v3428 = vunpack.c.l.b16 %v3354
  %v3429 = vunpack.c.h.b16 %v3354
  %v3430 = vunpack.c.l.b16 %v3355
  %v3431 = vunpack.c.h.b16 %v3355
  %v3432 = vunpack.c.l.b16 %v3356
  %v3433 = vunpack.c.h.b16 %v3356
  %v3434 = vunpack.c.l.b16 %v3357
  %v3435 = vunpack.c.h.b16 %v3357
  %v3436 = vunpack.c.l.b16 %v3358
  %v3437 = vunpack.c.h.b16 %v3358
  %v3438 = vunpack.c.l.b16 %v3359
  %v3439 = vunpack.c.h.b16 %v3359
  %v3440 = vunpack.c.l.b16 %v3360
  %v3441 = vunpack.c.h.b16 %v3360
  %v3442 = vunpack.c.l.b16 %v3361
  %v3443 = vunpack.c.h.b16 %v3361
  %v3444 = vunpack.c.l.b16 %v3362
  %v3445 = vunpack.c.h.b16 %v3362
  %v3446 = vunpack.c.l.b16 %v3363
  %v3447 = vunpack.c.h.b16 %v3363
  %v3448 = vunpack.c.l.b16 %v3364
  %v3449 = vunpack.c.h.b16 %v3364
  %v3450 = vunpack.c.l.b16 %v3365
  %v3451 = vunpack.c.h.b16 %v3365
  %v3452 = vunpack.c.l.b16 %v3366
  %v3453 = vunpack.c.h.b16 %v3366
  %v3454 = vunpack.c.l.b16 %v3367
  %v3455 = vunpack.c.h.b16 %v3367
  %v3456 = vunpack.c.l.b16 %v3368
  %v3457 = vunpack.c.h.b16 %v3368
  %v3458 = vunpack.c.l.b16 %v3369
  %v3459 = vunpack.c.h.b16 %v3369
  %v3460 = vunpack.c.l.b16 %v3370
  %v3461 = vunpack.c.h.b16 %v3370
  %v3462 = vunpack.c.l.b16 %v3371
  %v3463 = vunpack.c.h.b16 %v3371
  %v3464 = vunpack.c.l.b16 %v3372
  %v3465 = vunpack.c.h.b16 %v3372
  %v3466 = vunpack.c.l.b16 %v3373
  %v3467 = vunpack.c.h.b16 %v3373
  %v3468 = vunpack.c.l.b16 %v3374
  %v3469 = vunpack.c.h.b16 %v3374
  %v3470 = vunpack.c.l.b16 %v3375
  %v3471 = vunpack.c.h.b16 %v3375
  %v3472 = vpack.c.b16 %v3412, %v3408
  %v3473 = vpack.c.b16 %v3413, %v3409
  %v3474 = vpack.c.b16 %v3414, %v3410
  %v3475 = vpack.c.b16 %v3415, %v3411
  %v3476 = vpack.c.b16 %v3420, %v3416
  %v3477 = vpack.c.b16 %v3421, %v3417
  %v3478 = vpack.c.b16 %v3422, %v3418
  %v3479 = vpack.c.b16 %v3423, %v3419
  %v3480 = vpack.c.b16 %v3428, %v3424
  %v3481 = vpack.c.b16 %v3429, %v3425
  %v3482 = vpack.c.b16 %v3430, %v3426
  %v3483 = vpack.c.b16 %v3431, %v3427
  %v3484 = vpack.c.b16 %v3436, %v3432
  %v3485 = vpack.c.b16 %v3437, %v3433
  %v3486 = vpack.c.b16 %v3438, %v3434
  %v3487 = vpack.c.b16 %v3439, %v3435
  %v3488 = vpack.c.b16 %v3444, %v3440
  %v3489 = vpack.c.b16 %v3445, %v3441
  %v3490 = vpack.c.b16 %v3446, %v3442
  %v3491 = vpack.c.b16 %v3447, %v3443
  %v3492 = vpack.c.b16 %v3452, %v3448
  %v3493 = vpack.c.b16 %v3453, %v3449
  %v3494 = vpack.c.b16 %v3454, %v3450
  %v3495 = vpack.c.b16 %v3455, %v3451
  %v3496 = vpack.c.b16 %v3460, %v3456
  %v3497 = vpack.c.b16 %v3461, %v3457
  %v3498 = vpack.c.b16 %v3462, %v3458
  %v3499 = vpack.c.b16 %v3463, %v3459
  %v3500 = vpack.c.b16 %v3468, %v3464
  %v3501 = vpack.c.b16 %v3469, %v3465
  %v3502 = vpack.c.b16 %v3470, %v3466
  %v3503 = vpack.c.b16 %v3471, %v3467
  %3536 = vmatprep.subr.bf16.mxu0 %v3501
  %3537 = vmatpush1.bf16.msra.mxu0 %v3500
  %3538 = vmatprep.subr.bf16.mxu0 %v3497
  %3539 = vmatpush1.bf16.msra.mxu0 %v3496
  %3540 = vmatprep.subr.bf16.mxu0 %v3493
  %3541 = vmatpush1.bf16.msra.mxu0 %v3492
  %3542 = vmatprep.subr.bf16.mxu0 %v3489
  %3543 = vmatpush1.bf16.msra.mxu0 %v3488
  %3544 = vmatprep.subr.bf16.mxu0 %v3485
  %3545 = vmatpush1.bf16.msra.mxu0 %v3484
  %3546 = vmatprep.subr.bf16.mxu0 %v3481
  %3547 = vmatpush1.bf16.msra.mxu0 %v3480
  %3548 = vmatprep.subr.bf16.mxu0 %v3477
  %3549 = vmatpush1.bf16.msra.mxu0 %v3476
  %3550 = vmatprep.subr.bf16.mxu0 %v3473
  %3551 = vmatpush1.bf16.msra.mxu0 %v3472
  %3552 = vmatprep.subr.bf16.mxu0 0
  %3553 = vmatpush2.bf16.msra.mxu0 0
  %3554 = vmatprep.subr.bf16.mxu0 0
  %3555 = vmatpush2.bf16.msra.mxu0 0
  %3556 = vmatprep.subr.bf16.mxu0 0
  %3557 = vmatpush2.bf16.msra.mxu0 0
  %3558 = vmatprep.subr.bf16.mxu0 0
  %3559 = vmatpush2.bf16.msra.mxu0 0
  %3560 = vmatprep.subr.bf16.mxu0 0
  %3561 = vmatpush2.bf16.msra.mxu0 0
  %3562 = vmatprep.subr.bf16.mxu0 0
  %3563 = vmatpush2.bf16.msra.mxu0 0
  %3564 = vmatprep.subr.bf16.mxu0 0
  %3565 = vmatpush2.bf16.msra.mxu0 0
  %3566 = vmatprep.subr.bf16.mxu0 0
  %3567 = vmatpush2.bf16.msra.mxu0 0
  %3568 = vmatprep.mubr.bf16.mxu0 0
  %3569 = vmatmul.mubr.bf16.gmra.mxu0 %v3343
  %v3570 = vpop.f32.mrf.mxu0
  %v3571 = vadd.f32 0.0, %v3570
  %v3572 = vpop.f32.mrf.mxu0
  %v3573 = vadd.f32 0.0, %v3572
  %v3574 = vpop.f32.mrf.mxu0
  %v3575 = vpop.f32.mrf.mxu0
  %3576 = vdwg.mxu0
  %3577 = vmatprep.subr.bf16.mxu0 %v3503
  %3578 = vmatpush1.bf16.msra.mxu0 %v3502
  %3579 = vmatprep.subr.bf16.mxu0 %v3499
  %3580 = vmatpush1.bf16.msra.mxu0 %v3498
  %3581 = vmatprep.subr.bf16.mxu0 %v3495
  %3582 = vmatpush1.bf16.msra.mxu0 %v3494
  %3583 = vmatprep.subr.bf16.mxu0 %v3491
  %3584 = vmatpush1.bf16.msra.mxu0 %v3490
  %3585 = vmatprep.subr.bf16.mxu0 %v3487
  %3586 = vmatpush1.bf16.msra.mxu0 %v3486
  %3587 = vmatprep.subr.bf16.mxu0 %v3483
  %3588 = vmatpush1.bf16.msra.mxu0 %v3482
  %3589 = vmatprep.subr.bf16.mxu0 %v3479
  %3590 = vmatpush1.bf16.msra.mxu0 %v3478
  %3591 = vmatprep.subr.bf16.mxu0 %v3475
  %3592 = vmatpush1.bf16.msra.mxu0 %v3474
  %3593 = vmatprep.subr.bf16.mxu0 0
  %3594 = vmatpush2.bf16.msra.mxu0 0
  %3595 = vmatprep.subr.bf16.mxu0 0
  %3596 = vmatpush2.bf16.msra.mxu0 0
  %3597 = vmatprep.subr.bf16.mxu0 0
  %3598 = vmatpush2.bf16.msra.mxu0 0
  %3599 = vmatprep.subr.bf16.mxu0 0
  %3600 = vmatpush2.bf16.msra.mxu0 0
  %3601 = vmatprep.subr.bf16.mxu0 0
  %3602 = vmatpush2.bf16.msra.mxu0 0
  %3603 = vmatprep.subr.bf16.mxu0 0
  %3604 = vmatpush2.bf16.msra.mxu0 0
  %3605 = vmatprep.subr.bf16.mxu0 0
  %3606 = vmatpush2.bf16.msra.mxu0 0
  %3607 = vmatprep.subr.bf16.mxu0 0
  %3608 = vmatpush2.bf16.msra.mxu0 0
  %3609 = vmatprep.mubr.bf16.mxu0 0
  %3610 = vmatmul.mubr.bf16.gmra.mxu0 %v3343
  %v3611 = vpop.f32.mrf.mxu0
  %v3612 = vadd.f32 0.0, %v3611
  %v3613 = vpop.f32.mrf.mxu0
  %v3614 = vadd.f32 0.0, %v3613
  %v3615 = vpop.f32.mrf.mxu0
  %v3616 = vpop.f32.mrf.mxu0
  %3617 = vdwg.mxu0
  %v3618 = vadd.f32 %v3339, %v3571
  %v3619 = vadd.f32 %v3340, %v3573
  %v3620 = vadd.f32 %v3341, %v3612
  %v3621 = vadd.f32 %v3342, %v3614
  %v3622 = vxor.u32 %v3618, 2147483648
  %v3623 = vxor.u32 %v3619, 2147483648
  %v3624 = vxor.u32 %v3620, 2147483648
  %v3625 = vmul.f32 %v3622, 1.442695
  %v3626 = vpow.pop %v3625
  %v3627 = vmul.f32 %v3623, 1.442695
  %v3628 = vpow.pop %v3627
  %v3629 = vmul.f32 %v3624, 1.442695
  %v3630 = vpow.pop %v3629
  %v3631 = vadd.f32 %v3626, 1.0
  %v3632 = vadd.f32 %v3628, 1.0
  %v3633 = vadd.f32 %v3630, 1.0
  %v3634 = vrcp.pop %v3631
  %v3635 = vmul.f32 1.0, %v3634
  %v3636 = vrcp.pop %v3632
  %v3637 = vmul.f32 1.0, %v3636
  %v3638 = vrcp.pop %v3633
  %v3639 = vmul.f32 1.0, %v3638
  %v3640 = vtanh.pop %v3621
  %v3641 = vmul.f32 %v3637, %v3338
  %v3642 = vmul.f32 %v3635, %v3640
  %v3643 = vadd.f32 %v3641, %v3642
  %v3644 = vtanh.pop %v3643
  %v3645 = vmul.f32 %v3639, %v3644
  %v3646 = vld [vmem:[#allocation2 + $0x20] sm:$0xff]
  %v3647 = vld [vmem:[#allocation2 + $0x28] sm:$0xff]
  %v3648 = vld [vmem:[#allocation2 + $0x30] sm:$0xff]
  %v3649 = vld [vmem:[#allocation2 + $0x38] sm:$0xff]
  %v3650 = vpack.c.bf16 %v3645, %v3645
  %3651 = vmatprep.subr.bf16.mxu0 %v3501
  %3652 = vmatpush1.bf16.msra.mxu0 %v3500
  %3653 = vmatprep.subr.bf16.mxu0 %v3497
  %3654 = vmatpush1.bf16.msra.mxu0 %v3496
  %3655 = vmatprep.subr.bf16.mxu0 %v3493
  %3656 = vmatpush1.bf16.msra.mxu0 %v3492
  %3657 = vmatprep.subr.bf16.mxu0 %v3489
  %3658 = vmatpush1.bf16.msra.mxu0 %v3488
  %3659 = vmatprep.subr.bf16.mxu0 %v3485
  %3660 = vmatpush1.bf16.msra.mxu0 %v3484
  %3661 = vmatprep.subr.bf16.mxu0 %v3481
  %3662 = vmatpush1.bf16.msra.mxu0 %v3480
  %3663 = vmatprep.subr.bf16.mxu0 %v3477
  %3664 = vmatpush1.bf16.msra.mxu0 %v3476
  %3665 = vmatprep.subr.bf16.mxu0 %v3473
  %3666 = vmatpush1.bf16.msra.mxu0 %v3472
  %3667 = vmatprep.subr.bf16.mxu0 0
  %3668 = vmatpush2.bf16.msra.mxu0 0
  %3669 = vmatprep.subr.bf16.mxu0 0
  %3670 = vmatpush2.bf16.msra.mxu0 0
  %3671 = vmatprep.subr.bf16.mxu0 0
  %3672 = vmatpush2.bf16.msra.mxu0 0
  %3673 = vmatprep.subr.bf16.mxu0 0
  %3674 = vmatpush2.bf16.msra.mxu0 0
  %3675 = vmatprep.subr.bf16.mxu0 0
  %3676 = vmatpush2.bf16.msra.mxu0 0
  %3677 = vmatprep.subr.bf16.mxu0 0
  %3678 = vmatpush2.bf16.msra.mxu0 0
  %3679 = vmatprep.subr.bf16.mxu0 0
  %3680 = vmatpush2.bf16.msra.mxu0 0
  %3681 = vmatprep.subr.bf16.mxu0 0
  %3682 = vmatpush2.bf16.msra.mxu0 0
  %3683 = vmatprep.mubr.bf16.mxu0 0
  %3684 = vmatmul.mubr.bf16.gmra.mxu0 %v3650
  %v3685 = vpop.f32.mrf.mxu0
  %v3686 = vadd.f32 0.0, %v3685
  %v3687 = vpop.f32.mrf.mxu0
  %v3688 = vadd.f32 0.0, %v3687
  %v3689 = vpop.f32.mrf.mxu0
  %v3690 = vpop.f32.mrf.mxu0
  %3691 = vdwg.mxu0
  %3692 = vmatprep.subr.bf16.mxu0 %v3503
  %3693 = vmatpush1.bf16.msra.mxu0 %v3502
  %3694 = vmatprep.subr.bf16.mxu0 %v3499
  %3695 = vmatpush1.bf16.msra.mxu0 %v3498
  %3696 = vmatprep.subr.bf16.mxu0 %v3495
  %3697 = vmatpush1.bf16.msra.mxu0 %v3494
  %3698 = vmatprep.subr.bf16.mxu0 %v3491
  %3699 = vmatpush1.bf16.msra.mxu0 %v3490
  %3700 = vmatprep.subr.bf16.mxu0 %v3487
  %3701 = vmatpush1.bf16.msra.mxu0 %v3486
  %3702 = vmatprep.subr.bf16.mxu0 %v3483
  %3703 = vmatpush1.bf16.msra.mxu0 %v3482
  %3704 = vmatprep.subr.bf16.mxu0 %v3479
  %3705 = vmatpush1.bf16.msra.mxu0 %v3478
  %3706 = vmatprep.subr.bf16.mxu0 %v3475
  %3707 = vmatpush1.bf16.msra.mxu0 %v3474
  %3708 = vmatprep.subr.bf16.mxu0 0
  %3709 = vmatpush2.bf16.msra.mxu0 0
  %3710 = vmatprep.subr.bf16.mxu0 0
  %3711 = vmatpush2.bf16.msra.mxu0 0
  %3712 = vmatprep.subr.bf16.mxu0 0
  %3713 = vmatpush2.bf16.msra.mxu0 0
  %3714 = vmatprep.subr.bf16.mxu0 0
  %3715 = vmatpush2.bf16.msra.mxu0 0
  %3716 = vmatprep.subr.bf16.mxu0 0
  %3717 = vmatpush2.bf16.msra.mxu0 0
  %3718 = vmatprep.subr.bf16.mxu0 0
  %3719 = vmatpush2.bf16.msra.mxu0 0
  %3720 = vmatprep.subr.bf16.mxu0 0
  %3721 = vmatpush2.bf16.msra.mxu0 0
  %3722 = vmatprep.subr.bf16.mxu0 0
  %3723 = vmatpush2.bf16.msra.mxu0 0
  %3724 = vmatprep.mubr.bf16.mxu0 0
  %3725 = vmatmul.mubr.bf16.gmra.mxu0 %v3650
  %v3726 = vpop.f32.mrf.mxu0
  %v3727 = vadd.f32 0.0, %v3726
  %v3728 = vpop.f32.mrf.mxu0
  %v3729 = vadd.f32 0.0, %v3728
  %v3730 = vpop.f32.mrf.mxu0
  %v3731 = vpop.f32.mrf.mxu0
  %3732 = vdwg.mxu0
  %v3733 = vadd.f32 %v3646, %v3686
  %v3734 = vadd.f32 %v3647, %v3688
  %v3735 = vadd.f32 %v3648, %v3727
  %v3736 = vadd.f32 %v3649, %v3729
  %v3737 = vxor.u32 %v3733, 2147483648
  %v3738 = vxor.u32 %v3734, 2147483648
  %v3739 = vxor.u32 %v3735, 2147483648
  %v3740 = vmul.f32 %v3737, 1.442695
  %v3741 = vpow.pop %v3740
  %v3742 = vmul.f32 %v3738, 1.442695
  %v3743 = vpow.pop %v3742
  %v3744 = vmul.f32 %v3739, 1.442695
  %v3745 = vpow.pop %v3744
  %v3746 = vadd.f32 %v3741, 1.0
  %v3747 = vadd.f32 %v3743, 1.0
  %v3748 = vadd.f32 %v3745, 1.0
  %v3749 = vrcp.pop %v3746
  %v3750 = vmul.f32 1.0, %v3749
  %v3751 = vrcp.pop %v3747
  %v3752 = vmul.f32 1.0, %v3751
  %v3753 = vrcp.pop %v3748
  %v3754 = vmul.f32 1.0, %v3753
  %v3755 = vtanh.pop %v3736
  %v3756 = vmul.f32 %v3752, %v3643
  %v3757 = vmul.f32 %v3750, %v3755
  %v3758 = vadd.f32 %v3756, %v3757
  %v3759 = vtanh.pop %v3758
  %v3760 = vmul.f32 %v3754, %v3759
  %v3761 = vld [vmem:[#allocation2 + $0x40] sm:$0xff]
  %v3762 = vld [vmem:[#allocation2 + $0x48] sm:$0xff]
  %v3763 = vld [vmem:[#allocation2 + $0x50] sm:$0xff]
  %v3764 = vld [vmem:[#allocation2 + $0x58] sm:$0xff]
  %v3765 = vpack.c.bf16 %v3760, %v3760
  %3766 = vmatprep.subr.bf16.mxu0 %v3501
  %3767 = vmatpush1.bf16.msra.mxu0 %v3500
  %3768 = vmatprep.subr.bf16.mxu0 %v3497
  %3769 = vmatpush1.bf16.msra.mxu0 %v3496
  %3770 = vmatprep.subr.bf16.mxu0 %v3493
  %3771 = vmatpush1.bf16.msra.mxu0 %v3492
  %3772 = vmatprep.subr.bf16.mxu0 %v3489
  %3773 = vmatpush1.bf16.msra.mxu0 %v3488
  %3774 = vmatprep.subr.bf16.mxu0 %v3485
  %3775 = vmatpush1.bf16.msra.mxu0 %v3484
  %3776 = vmatprep.subr.bf16.mxu0 %v3481
  %3777 = vmatpush1.bf16.msra.mxu0 %v3480
  %3778 = vmatprep.subr.bf16.mxu0 %v3477
  %3779 = vmatpush1.bf16.msra.mxu0 %v3476
  %3780 = vmatprep.subr.bf16.mxu0 %v3473
  %3781 = vmatpush1.bf16.msra.mxu0 %v3472
  %3782 = vmatprep.subr.bf16.mxu0 0
  %3783 = vmatpush2.bf16.msra.mxu0 0
  %3784 = vmatprep.subr.bf16.mxu0 0
  %3785 = vmatpush2.bf16.msra.mxu0 0
  %3786 = vmatprep.subr.bf16.mxu0 0
  %3787 = vmatpush2.bf16.msra.mxu0 0
  %3788 = vmatprep.subr.bf16.mxu0 0
  %3789 = vmatpush2.bf16.msra.mxu0 0
  %3790 = vmatprep.subr.bf16.mxu0 0
  %3791 = vmatpush2.bf16.msra.mxu0 0
  %3792 = vmatprep.subr.bf16.mxu0 0
  %3793 = vmatpush2.bf16.msra.mxu0 0
  %3794 = vmatprep.subr.bf16.mxu0 0
  %3795 = vmatpush2.bf16.msra.mxu0 0
  %3796 = vmatprep.subr.bf16.mxu0 0
  %3797 = vmatpush2.bf16.msra.mxu0 0
  %3798 = vmatprep.mubr.bf16.mxu0 0
  %3799 = vmatmul.mubr.bf16.gmra.mxu0 %v3765
  %v3800 = vpop.f32.mrf.mxu0
  %v3801 = vadd.f32 0.0, %v3800
  %v3802 = vpop.f32.mrf.mxu0
  %v3803 = vadd.f32 0.0, %v3802
  %v3804 = vpop.f32.mrf.mxu0
  %v3805 = vpop.f32.mrf.mxu0
  %3806 = vdwg.mxu0
  %3807 = vmatprep.subr.bf16.mxu0 %v3503
  %3808 = vmatpush1.bf16.msra.mxu0 %v3502
  %3809 = vmatprep.subr.bf16.mxu0 %v3499
  %3810 = vmatpush1.bf16.msra.mxu0 %v3498
  %3811 = vmatprep.subr.bf16.mxu0 %v3495
  %3812 = vmatpush1.bf16.msra.mxu0 %v3494
  %3813 = vmatprep.subr.bf16.mxu0 %v3491
  %3814 = vmatpush1.bf16.msra.mxu0 %v3490
  %3815 = vmatprep.subr.bf16.mxu0 %v3487
  %3816 = vmatpush1.bf16.msra.mxu0 %v3486
  %3817 = vmatprep.subr.bf16.mxu0 %v3483
  %3818 = vmatpush1.bf16.msra.mxu0 %v3482
  %3819 = vmatprep.subr.bf16.mxu0 %v3479
  %3820 = vmatpush1.bf16.msra.mxu0 %v3478
  %3821 = vmatprep.subr.bf16.mxu0 %v3475
  %3822 = vmatpush1.bf16.msra.mxu0 %v3474
  %3823 = vmatprep.subr.bf16.mxu0 0
  %3824 = vmatpush2.bf16.msra.mxu0 0
  %3825 = vmatprep.subr.bf16.mxu0 0
  %3826 = vmatpush2.bf16.msra.mxu0 0
  %3827 = vmatprep.subr.bf16.mxu0 0
  %3828 = vmatpush2.bf16.msra.mxu0 0
  %3829 = vmatprep.subr.bf16.mxu0 0
  %3830 = vmatpush2.bf16.msra.mxu0 0
  %3831 = vmatprep.subr.bf16.mxu0 0
  %3832 = vmatpush2.bf16.msra.mxu0 0
  %3833 = vmatprep.subr.bf16.mxu0 0
  %3834 = vmatpush2.bf16.msra.mxu0 0
  %3835 = vmatprep.subr.bf16.mxu0 0
  %3836 = vmatpush2.bf16.msra.mxu0 0
  %3837 = vmatprep.subr.bf16.mxu0 0
  %3838 = vmatpush2.bf16.msra.mxu0 0
  %3839 = vmatprep.mubr.bf16.mxu0 0
  %3840 = vmatmul.mubr.bf16.gmra.mxu0 %v3765
  %v3841 = vpop.f32.mrf.mxu0
  %v3842 = vadd.f32 0.0, %v3841
  %v3843 = vpop.f32.mrf.mxu0
  %v3844 = vadd.f32 0.0, %v3843
  %v3845 = vpop.f32.mrf.mxu0
  %v3846 = vpop.f32.mrf.mxu0
  %3847 = vdwg.mxu0
  %v3848 = vadd.f32 %v3761, %v3801
  %v3849 = vadd.f32 %v3762, %v3803
  %v3850 = vadd.f32 %v3763, %v3842
  %v3851 = vadd.f32 %v3764, %v3844
  %v3852 = vxor.u32 %v3848, 2147483648
  %v3853 = vxor.u32 %v3849, 2147483648
  %v3854 = vxor.u32 %v3850, 2147483648
  %v3855 = vmul.f32 %v3852, 1.442695
  %v3856 = vpow.pop %v3855
  %v3857 = vmul.f32 %v3853, 1.442695
  %v3858 = vpow.pop %v3857
  %v3859 = vmul.f32 %v3854, 1.442695
  %v3860 = vpow.pop %v3859
  %v3861 = vadd.f32 %v3856, 1.0
  %v3862 = vadd.f32 %v3858, 1.0
  %v3863 = vadd.f32 %v3860, 1.0
  %v3864 = vrcp.pop %v3861
  %v3865 = vmul.f32 1.0, %v3864
  %v3866 = vrcp.pop %v3862
  %v3867 = vmul.f32 1.0, %v3866
  %v3868 = vrcp.pop %v3863
  %v3869 = vmul.f32 1.0, %v3868
  %v3870 = vtanh.pop %v3851
  %v3871 = vmul.f32 %v3867, %v3758
  %v3872 = vmul.f32 %v3865, %v3870
  %v3873 = vadd.f32 %v3871, %v3872
  %v3874 = vtanh.pop %v3873
  %v3875 = vmul.f32 %v3869, %v3874
  %v3876 = vld [vmem:[#allocation2 + $0x60] sm:$0xff]
  %v3877 = vld [vmem:[#allocation2 + $0x68] sm:$0xff]
  %v3878 = vld [vmem:[#allocation2 + $0x70] sm:$0xff]
  %v3879 = vld [vmem:[#allocation2 + $0x78] sm:$0xff]
  %v3880 = vpack.c.bf16 %v3875, %v3875
  %3881 = vmatprep.subr.bf16.mxu0 %v3501
  %3882 = vmatpush1.bf16.msra.mxu0 %v3500
  %3883 = vmatprep.subr.bf16.mxu0 %v3497
  %3884 = vmatpush1.bf16.msra.mxu0 %v3496
  %3885 = vmatprep.subr.bf16.mxu0 %v3493
  %3886 = vmatpush1.bf16.msra.mxu0 %v3492
  %3887 = vmatprep.subr.bf16.mxu0 %v3489
  %3888 = vmatpush1.bf16.msra.mxu0 %v3488
  %3889 = vmatprep.subr.bf16.mxu0 %v3485
  %3890 = vmatpush1.bf16.msra.mxu0 %v3484
  %3891 = vmatprep.subr.bf16.mxu0 %v3481
  %3892 = vmatpush1.bf16.msra.mxu0 %v3480
  %3893 = vmatprep.subr.bf16.mxu0 %v3477
  %3894 = vmatpush1.bf16.msra.mxu0 %v3476
  %3895 = vmatprep.subr.bf16.mxu0 %v3473
  %3896 = vmatpush1.bf16.msra.mxu0 %v3472
  %3897 = vmatprep.subr.bf16.mxu0 0
  %3898 = vmatpush2.bf16.msra.mxu0 0
  %3899 = vmatprep.subr.bf16.mxu0 0
  %3900 = vmatpush2.bf16.msra.mxu0 0
  %3901 = vmatprep.subr.bf16.mxu0 0
  %3902 = vmatpush2.bf16.msra.mxu0 0
  %3903 = vmatprep.subr.bf16.mxu0 0
  %3904 = vmatpush2.bf16.msra.mxu0 0
  %3905 = vmatprep.subr.bf16.mxu0 0
  %3906 = vmatpush2.bf16.msra.mxu0 0
  %3907 = vmatprep.subr.bf16.mxu0 0
  %3908 = vmatpush2.bf16.msra.mxu0 0
  %3909 = vmatprep.subr.bf16.mxu0 0
  %3910 = vmatpush2.bf16.msra.mxu0 0
  %3911 = vmatprep.subr.bf16.mxu0 0
  %3912 = vmatpush2.bf16.msra.mxu0 0
  %3913 = vmatprep.mubr.bf16.mxu0 0
  %3914 = vmatmul.mubr.bf16.gmra.mxu0 %v3880
  %v3915 = vpop.f32.mrf.mxu0
  %v3916 = vadd.f32 0.0, %v3915
  %v3917 = vpop.f32.mrf.mxu0
  %v3918 = vadd.f32 0.0, %v3917
  %v3919 = vpop.f32.mrf.mxu0
  %v3920 = vpop.f32.mrf.mxu0
  %3921 = vdwg.mxu0
  %3922 = vmatprep.subr.bf16.mxu0 %v3503
  %3923 = vmatpush1.bf16.msra.mxu0 %v3502
  %3924 = vmatprep.subr.bf16.mxu0 %v3499
  %3925 = vmatpush1.bf16.msra.mxu0 %v3498
  %3926 = vmatprep.subr.bf16.mxu0 %v3495
  %3927 = vmatpush1.bf16.msra.mxu0 %v3494
  %3928 = vmatprep.subr.bf16.mxu0 %v3491
  %3929 = vmatpush1.bf16.msra.mxu0 %v3490
  %3930 = vmatprep.subr.bf16.mxu0 %v3487
  %3931 = vmatpush1.bf16.msra.mxu0 %v3486
  %3932 = vmatprep.subr.bf16.mxu0 %v3483
  %3933 = vmatpush1.bf16.msra.mxu0 %v3482
  %3934 = vmatprep.subr.bf16.mxu0 %v3479
  %3935 = vmatpush1.bf16.msra.mxu0 %v3478
  %3936 = vmatprep.subr.bf16.mxu0 %v3475
  %3937 = vmatpush1.bf16.msra.mxu0 %v3474
  %3938 = vmatprep.subr.bf16.mxu0 0
  %3939 = vmatpush2.bf16.msra.mxu0 0
  %3940 = vmatprep.subr.bf16.mxu0 0
  %3941 = vmatpush2.bf16.msra.mxu0 0
  %3942 = vmatprep.subr.bf16.mxu0 0
  %3943 = vmatpush2.bf16.msra.mxu0 0
  %3944 = vmatprep.subr.bf16.mxu0 0
  %3945 = vmatpush2.bf16.msra.mxu0 0
  %3946 = vmatprep.subr.bf16.mxu0 0
  %3947 = vmatpush2.bf16.msra.mxu0 0
  %3948 = vmatprep.subr.bf16.mxu0 0
  %3949 = vmatpush2.bf16.msra.mxu0 0
  %3950 = vmatprep.subr.bf16.mxu0 0
  %3951 = vmatpush2.bf16.msra.mxu0 0
  %3952 = vmatprep.subr.bf16.mxu0 0
  %3953 = vmatpush2.bf16.msra.mxu0 0
  %3954 = vmatprep.mubr.bf16.mxu0 0
  %3955 = vmatmul.mubr.bf16.gmra.mxu0 %v3880
  %v3956 = vpop.f32.mrf.mxu0
  %v3957 = vadd.f32 0.0, %v3956
  %v3958 = vpop.f32.mrf.mxu0
  %v3959 = vadd.f32 0.0, %v3958
  %v3960 = vpop.f32.mrf.mxu0
  %v3961 = vpop.f32.mrf.mxu0
  %3962 = vdwg.mxu0
  %v3963 = vadd.f32 %v3876, %v3916
  %v3964 = vadd.f32 %v3877, %v3918
  %v3965 = vadd.f32 %v3878, %v3957
  %v3966 = vadd.f32 %v3879, %v3959
  %v3967 = vxor.u32 %v3963, 2147483648
  %v3968 = vxor.u32 %v3964, 2147483648
  %v3969 = vxor.u32 %v3965, 2147483648
  %v3970 = vmul.f32 %v3967, 1.442695
  %v3971 = vpow.pop %v3970
  %v3972 = vmul.f32 %v3968, 1.442695
  %v3973 = vpow.pop %v3972
  %v3974 = vmul.f32 %v3969, 1.442695
  %v3975 = vpow.pop %v3974
  %v3976 = vadd.f32 %v3971, 1.0
  %v3977 = vadd.f32 %v3973, 1.0
  %v3978 = vadd.f32 %v3975, 1.0
  %v3979 = vrcp.pop %v3976
  %v3980 = vmul.f32 1.0, %v3979
  %v3981 = vrcp.pop %v3977
  %v3982 = vmul.f32 1.0, %v3981
  %v3983 = vrcp.pop %v3978
  %v3984 = vmul.f32 1.0, %v3983
  %v3985 = vtanh.pop %v3966
  %v3986 = vmul.f32 %v3982, %v3873
  %v3987 = vmul.f32 %v3980, %v3985
  %v3988 = vadd.f32 %v3986, %v3987
  %v3989 = vtanh.pop %v3988
  %v3990 = vmul.f32 %v3984, %v3989
  %v3991 = vld [vmem:[#allocation2 + $0x80] sm:$0xff]
  %v3992 = vld [vmem:[#allocation2 + $0x88] sm:$0xff]
  %v3993 = vld [vmem:[#allocation2 + $0x90] sm:$0xff]
  %v3994 = vld [vmem:[#allocation2 + $0x98] sm:$0xff]
  %v3995 = vpack.c.bf16 %v3990, %v3990
  %3996 = vmatprep.subr.bf16.mxu0 %v3501
  %3997 = vmatpush1.bf16.msra.mxu0 %v3500
  %3998 = vmatprep.subr.bf16.mxu0 %v3497
  %3999 = vmatpush1.bf16.msra.mxu0 %v3496
  %4000 = vmatprep.subr.bf16.mxu0 %v3493
  %4001 = vmatpush1.bf16.msra.mxu0 %v3492
  %4002 = vmatprep.subr.bf16.mxu0 %v3489
  %4003 = vmatpush1.bf16.msra.mxu0 %v3488
  %4004 = vmatprep.subr.bf16.mxu0 %v3485
  %4005 = vmatpush1.bf16.msra.mxu0 %v3484
  %4006 = vmatprep.subr.bf16.mxu0 %v3481
  %4007 = vmatpush1.bf16.msra.mxu0 %v3480
  %4008 = vmatprep.subr.bf16.mxu0 %v3477
  %4009 = vmatpush1.bf16.msra.mxu0 %v3476
  %4010 = vmatprep.subr.bf16.mxu0 %v3473
  %4011 = vmatpush1.bf16.msra.mxu0 %v3472
  %4012 = vmatprep.subr.bf16.mxu0 0
  %4013 = vmatpush2.bf16.msra.mxu0 0
  %4014 = vmatprep.subr.bf16.mxu0 0
  %4015 = vmatpush2.bf16.msra.mxu0 0
  %4016 = vmatprep.subr.bf16.mxu0 0
  %4017 = vmatpush2.bf16.msra.mxu0 0
  %4018 = vmatprep.subr.bf16.mxu0 0
  %4019 = vmatpush2.bf16.msra.mxu0 0
  %4020 = vmatprep.subr.bf16.mxu0 0
  %4021 = vmatpush2.bf16.msra.mxu0 0
  %4022 = vmatprep.subr.bf16.mxu0 0
  %4023 = vmatpush2.bf16.msra.mxu0 0
  %4024 = vmatprep.subr.bf16.mxu0 0
  %4025 = vmatpush2.bf16.msra.mxu0 0
  %4026 = vmatprep.subr.bf16.mxu0 0
  %4027 = vmatpush2.bf16.msra.mxu0 0
  %4028 = vmatprep.mubr.bf16.mxu0 0
  %4029 = vmatmul.mubr.bf16.gmra.mxu0 %v3995
  %v4030 = vpop.f32.mrf.mxu0
  %v4031 = vadd.f32 0.0, %v4030
  %v4032 = vpop.f32.mrf.mxu0
  %v4033 = vadd.f32 0.0, %v4032
  %v4034 = vpop.f32.mrf.mxu0
  %v4035 = vpop.f32.mrf.mxu0
  %4036 = vdwg.mxu0
  %4037 = vmatprep.subr.bf16.mxu0 %v3503
  %4038 = vmatpush1.bf16.msra.mxu0 %v3502
  %4039 = vmatprep.subr.bf16.mxu0 %v3499
  %4040 = vmatpush1.bf16.msra.mxu0 %v3498
  %4041 = vmatprep.subr.bf16.mxu0 %v3495
  %4042 = vmatpush1.bf16.msra.mxu0 %v3494
  %4043 = vmatprep.subr.bf16.mxu0 %v3491
  %4044 = vmatpush1.bf16.msra.mxu0 %v3490
  %4045 = vmatprep.subr.bf16.mxu0 %v3487
  %4046 = vmatpush1.bf16.msra.mxu0 %v3486
  %4047 = vmatprep.subr.bf16.mxu0 %v3483
  %4048 = vmatpush1.bf16.msra.mxu0 %v3482
  %4049 = vmatprep.subr.bf16.mxu0 %v3479
  %4050 = vmatpush1.bf16.msra.mxu0 %v3478
  %4051 = vmatprep.subr.bf16.mxu0 %v3475
  %4052 = vmatpush1.bf16.msra.mxu0 %v3474
  %4053 = vmatprep.subr.bf16.mxu0 0
  %4054 = vmatpush2.bf16.msra.mxu0 0
  %4055 = vmatprep.subr.bf16.mxu0 0
  %4056 = vmatpush2.bf16.msra.mxu0 0
  %4057 = vmatprep.subr.bf16.mxu0 0
  %4058 = vmatpush2.bf16.msra.mxu0 0
  %4059 = vmatprep.subr.bf16.mxu0 0
  %4060 = vmatpush2.bf16.msra.mxu0 0
  %4061 = vmatprep.subr.bf16.mxu0 0
  %4062 = vmatpush2.bf16.msra.mxu0 0
  %4063 = vmatprep.subr.bf16.mxu0 0
  %4064 = vmatpush2.bf16.msra.mxu0 0
  %4065 = vmatprep.subr.bf16.mxu0 0
  %4066 = vmatpush2.bf16.msra.mxu0 0
  %4067 = vmatprep.subr.bf16.mxu0 0
  %4068 = vmatpush2.bf16.msra.mxu0 0
  %4069 = vmatprep.mubr.bf16.mxu0 0
  %4070 = vmatmul.mubr.bf16.gmra.mxu0 %v3995
  %v4071 = vpop.f32.mrf.mxu0
  %v4072 = vadd.f32 0.0, %v4071
  %v4073 = vpop.f32.mrf.mxu0
  %v4074 = vadd.f32 0.0, %v4073
  %v4075 = vpop.f32.mrf.mxu0
  %v4076 = vpop.f32.mrf.mxu0
  %4077 = vdwg.mxu0
  %v4078 = vadd.f32 %v3991, %v4031
  %v4079 = vadd.f32 %v3992, %v4033
  %v4080 = vadd.f32 %v3993, %v4072
  %v4081 = vadd.f32 %v3994, %v4074
  %v4082 = vxor.u32 %v4078, 2147483648
  %v4083 = vxor.u32 %v4079, 2147483648
  %v4084 = vxor.u32 %v4080, 2147483648
  %v4085 = vmul.f32 %v4082, 1.442695
  %v4086 = vpow.pop %v4085
  %v4087 = vmul.f32 %v4083, 1.442695
  %v4088 = vpow.pop %v4087
  %v4089 = vmul.f32 %v4084, 1.442695
  %v4090 = vpow.pop %v4089
  %v4091 = vadd.f32 %v4086, 1.0
  %v4092 = vadd.f32 %v4088, 1.0
  %v4093 = vadd.f32 %v4090, 1.0
  %v4094 = vrcp.pop %v4091
  %v4095 = vmul.f32 1.0, %v4094
  %v4096 = vrcp.pop %v4092
  %v4097 = vmul.f32 1.0, %v4096
  %v4098 = vrcp.pop %v4093
  %v4099 = vmul.f32 1.0, %v4098
  %v4100 = vtanh.pop %v4081
  %v4101 = vmul.f32 %v4097, %v3988
  %v4102 = vmul.f32 %v4095, %v4100
  %v4103 = vadd.f32 %v4101, %v4102
  %v4104 = vtanh.pop %v4103
  %v4105 = vmul.f32 %v4099, %v4104
  %v4106 = vld [vmem:[#allocation2 + $0xa0] sm:$0xff]
  %v4107 = vld [vmem:[#allocation2 + $0xa8] sm:$0xff]
  %v4108 = vld [vmem:[#allocation2 + $0xb0] sm:$0xff]
  %v4109 = vld [vmem:[#allocation2 + $0xb8] sm:$0xff]
  %v4110 = vpack.c.bf16 %v4105, %v4105
  %4111 = vmatprep.subr.bf16.mxu0 %v3501
  %4112 = vmatpush1.bf16.msra.mxu0 %v3500
  %4113 = vmatprep.subr.bf16.mxu0 %v3497
  %4114 = vmatpush1.bf16.msra.mxu0 %v3496
  %4115 = vmatprep.subr.bf16.mxu0 %v3493
  %4116 = vmatpush1.bf16.msra.mxu0 %v3492
  %4117 = vmatprep.subr.bf16.mxu0 %v3489
  %4118 = vmatpush1.bf16.msra.mxu0 %v3488
  %4119 = vmatprep.subr.bf16.mxu0 %v3485
  %4120 = vmatpush1.bf16.msra.mxu0 %v3484
  %4121 = vmatprep.subr.bf16.mxu0 %v3481
  %4122 = vmatpush1.bf16.msra.mxu0 %v3480
  %4123 = vmatprep.subr.bf16.mxu0 %v3477
  %4124 = vmatpush1.bf16.msra.mxu0 %v3476
  %4125 = vmatprep.subr.bf16.mxu0 %v3473
  %4126 = vmatpush1.bf16.msra.mxu0 %v3472
  %4127 = vmatprep.subr.bf16.mxu0 0
  %4128 = vmatpush2.bf16.msra.mxu0 0
  %4129 = vmatprep.subr.bf16.mxu0 0
  %4130 = vmatpush2.bf16.msra.mxu0 0
  %4131 = vmatprep.subr.bf16.mxu0 0
  %4132 = vmatpush2.bf16.msra.mxu0 0
  %4133 = vmatprep.subr.bf16.mxu0 0
  %4134 = vmatpush2.bf16.msra.mxu0 0
  %4135 = vmatprep.subr.bf16.mxu0 0
  %4136 = vmatpush2.bf16.msra.mxu0 0
  %4137 = vmatprep.subr.bf16.mxu0 0
  %4138 = vmatpush2.bf16.msra.mxu0 0
  %4139 = vmatprep.subr.bf16.mxu0 0
  %4140 = vmatpush2.bf16.msra.mxu0 0
  %4141 = vmatprep.subr.bf16.mxu0 0
  %4142 = vmatpush2.bf16.msra.mxu0 0
  %4143 = vmatprep.mubr.bf16.mxu0 0
  %4144 = vmatmul.mubr.bf16.gmra.mxu0 %v4110
  %v4145 = vpop.f32.mrf.mxu0
  %v4146 = vadd.f32 0.0, %v4145
  %v4147 = vpop.f32.mrf.mxu0
  %v4148 = vadd.f32 0.0, %v4147
  %v4149 = vpop.f32.mrf.mxu0
  %v4150 = vpop.f32.mrf.mxu0
  %4151 = vdwg.mxu0
  %4152 = vmatprep.subr.bf16.mxu0 %v3503
  %4153 = vmatpush1.bf16.msra.mxu0 %v3502
  %4154 = vmatprep.subr.bf16.mxu0 %v3499
  %4155 = vmatpush1.bf16.msra.mxu0 %v3498
  %4156 = vmatprep.subr.bf16.mxu0 %v3495
  %4157 = vmatpush1.bf16.msra.mxu0 %v3494
  %4158 = vmatprep.subr.bf16.mxu0 %v3491
  %4159 = vmatpush1.bf16.msra.mxu0 %v3490
  %4160 = vmatprep.subr.bf16.mxu0 %v3487
  %4161 = vmatpush1.bf16.msra.mxu0 %v3486
  %4162 = vmatprep.subr.bf16.mxu0 %v3483
  %4163 = vmatpush1.bf16.msra.mxu0 %v3482
  %4164 = vmatprep.subr.bf16.mxu0 %v3479
  %4165 = vmatpush1.bf16.msra.mxu0 %v3478
  %4166 = vmatprep.subr.bf16.mxu0 %v3475
  %4167 = vmatpush1.bf16.msra.mxu0 %v3474
  %4168 = vmatprep.subr.bf16.mxu0 0
  %4169 = vmatpush2.bf16.msra.mxu0 0
  %4170 = vmatprep.subr.bf16.mxu0 0
  %4171 = vmatpush2.bf16.msra.mxu0 0
  %4172 = vmatprep.subr.bf16.mxu0 0
  %4173 = vmatpush2.bf16.msra.mxu0 0
  %4174 = vmatprep.subr.bf16.mxu0 0
  %4175 = vmatpush2.bf16.msra.mxu0 0
  %4176 = vmatprep.subr.bf16.mxu0 0
  %4177 = vmatpush2.bf16.msra.mxu0 0
  %4178 = vmatprep.subr.bf16.mxu0 0
  %4179 = vmatpush2.bf16.msra.mxu0 0
  %4180 = vmatprep.subr.bf16.mxu0 0
  %4181 = vmatpush2.bf16.msra.mxu0 0
  %4182 = vmatprep.subr.bf16.mxu0 0
  %4183 = vmatpush2.bf16.msra.mxu0 0
  %4184 = vmatprep.mubr.bf16.mxu0 0
  %4185 = vmatmul.mubr.bf16.gmra.mxu0 %v4110
  %v4186 = vpop.f32.mrf.mxu0
  %v4187 = vadd.f32 0.0, %v4186
  %v4188 = vpop.f32.mrf.mxu0
  %v4189 = vadd.f32 0.0, %v4188
  %v4190 = vpop.f32.mrf.mxu0
  %v4191 = vpop.f32.mrf.mxu0
  %4192 = vdwg.mxu0
  %v4193 = vadd.f32 %v4106, %v4146
  %v4194 = vadd.f32 %v4107, %v4148
  %v4195 = vadd.f32 %v4108, %v4187
  %v4196 = vadd.f32 %v4109, %v4189
  %v4197 = vxor.u32 %v4193, 2147483648
  %v4198 = vxor.u32 %v4194, 2147483648
  %v4199 = vxor.u32 %v4195, 2147483648
  %v4200 = vmul.f32 %v4197, 1.442695
  %v4201 = vpow.pop %v4200
  %v4202 = vmul.f32 %v4198, 1.442695
  %v4203 = vpow.pop %v4202
  %v4204 = vmul.f32 %v4199, 1.442695
  %v4205 = vpow.pop %v4204
  %v4206 = vadd.f32 %v4201, 1.0
  %v4207 = vadd.f32 %v4203, 1.0
  %v4208 = vadd.f32 %v4205, 1.0
  %v4209 = vrcp.pop %v4206
  %v4210 = vmul.f32 1.0, %v4209
  %v4211 = vrcp.pop %v4207
  %v4212 = vmul.f32 1.0, %v4211
  %v4213 = vrcp.pop %v4208
  %v4214 = vmul.f32 1.0, %v4213
  %v4215 = vtanh.pop %v4196
  %v4216 = vmul.f32 %v4212, %v4103
  %v4217 = vmul.f32 %v4210, %v4215
  %v4218 = vadd.f32 %v4216, %v4217
  %v4219 = vtanh.pop %v4218
  %v4220 = vmul.f32 %v4214, %v4219
  %v4221 = vld [vmem:[#allocation2 + $0xc0] sm:$0xff]
  %v4222 = vld [vmem:[#allocation2 + $0xc8] sm:$0xff]
  %v4223 = vld [vmem:[#allocation2 + $0xd0] sm:$0xff]
  %v4224 = vld [vmem:[#allocation2 + $0xd8] sm:$0xff]
  %v4225 = vpack.c.bf16 %v4220, %v4220
  %4226 = vmatprep.subr.bf16.mxu0 %v3501
  %4227 = vmatpush1.bf16.msra.mxu0 %v3500
  %4228 = vmatprep.subr.bf16.mxu0 %v3497
  %4229 = vmatpush1.bf16.msra.mxu0 %v3496
  %4230 = vmatprep.subr.bf16.mxu0 %v3493
  %4231 = vmatpush1.bf16.msra.mxu0 %v3492
  %4232 = vmatprep.subr.bf16.mxu0 %v3489
  %4233 = vmatpush1.bf16.msra.mxu0 %v3488
  %4234 = vmatprep.subr.bf16.mxu0 %v3485
  %4235 = vmatpush1.bf16.msra.mxu0 %v3484
  %4236 = vmatprep.subr.bf16.mxu0 %v3481
  %4237 = vmatpush1.bf16.msra.mxu0 %v3480
  %4238 = vmatprep.subr.bf16.mxu0 %v3477
  %4239 = vmatpush1.bf16.msra.mxu0 %v3476
  %4240 = vmatprep.subr.bf16.mxu0 %v3473
  %4241 = vmatpush1.bf16.msra.mxu0 %v3472
  %4242 = vmatprep.subr.bf16.mxu0 0
  %4243 = vmatpush2.bf16.msra.mxu0 0
  %4244 = vmatprep.subr.bf16.mxu0 0
  %4245 = vmatpush2.bf16.msra.mxu0 0
  %4246 = vmatprep.subr.bf16.mxu0 0
  %4247 = vmatpush2.bf16.msra.mxu0 0
  %4248 = vmatprep.subr.bf16.mxu0 0
  %4249 = vmatpush2.bf16.msra.mxu0 0
  %4250 = vmatprep.subr.bf16.mxu0 0
  %4251 = vmatpush2.bf16.msra.mxu0 0
  %4252 = vmatprep.subr.bf16.mxu0 0
  %4253 = vmatpush2.bf16.msra.mxu0 0
  %4254 = vmatprep.subr.bf16.mxu0 0
  %4255 = vmatpush2.bf16.msra.mxu0 0
  %4256 = vmatprep.subr.bf16.mxu0 0
  %4257 = vmatpush2.bf16.msra.mxu0 0
  %4258 = vmatprep.mubr.bf16.mxu0 0
  %4259 = vmatmul.mubr.bf16.gmra.mxu0 %v4225
  %v4260 = vpop.f32.mrf.mxu0
  %v4261 = vadd.f32 0.0, %v4260
  %v4262 = vpop.f32.mrf.mxu0
  %v4263 = vadd.f32 0.0, %v4262
  %v4264 = vpop.f32.mrf.mxu0
  %v4265 = vpop.f32.mrf.mxu0
  %4266 = vdwg.mxu0
  %4267 = vmatprep.subr.bf16.mxu0 %v3503
  %4268 = vmatpush1.bf16.msra.mxu0 %v3502
  %4269 = vmatprep.subr.bf16.mxu0 %v3499
  %4270 = vmatpush1.bf16.msra.mxu0 %v3498
  %4271 = vmatprep.subr.bf16.mxu0 %v3495
  %4272 = vmatpush1.bf16.msra.mxu0 %v3494
  %4273 = vmatprep.subr.bf16.mxu0 %v3491
  %4274 = vmatpush1.bf16.msra.mxu0 %v3490
  %4275 = vmatprep.subr.bf16.mxu0 %v3487
  %4276 = vmatpush1.bf16.msra.mxu0 %v3486
  %4277 = vmatprep.subr.bf16.mxu0 %v3483
  %4278 = vmatpush1.bf16.msra.mxu0 %v3482
  %4279 = vmatprep.subr.bf16.mxu0 %v3479
  %4280 = vmatpush1.bf16.msra.mxu0 %v3478
  %4281 = vmatprep.subr.bf16.mxu0 %v3475
  %4282 = vmatpush1.bf16.msra.mxu0 %v3474
  %4283 = vmatprep.subr.bf16.mxu0 0
  %4284 = vmatpush2.bf16.msra.mxu0 0
  %4285 = vmatprep.subr.bf16.mxu0 0
  %4286 = vmatpush2.bf16.msra.mxu0 0
  %4287 = vmatprep.subr.bf16.mxu0 0
  %4288 = vmatpush2.bf16.msra.mxu0 0
  %4289 = vmatprep.subr.bf16.mxu0 0
  %4290 = vmatpush2.bf16.msra.mxu0 0
  %4291 = vmatprep.subr.bf16.mxu0 0
  %4292 = vmatpush2.bf16.msra.mxu0 0
  %4293 = vmatprep.subr.bf16.mxu0 0
  %4294 = vmatpush2.bf16.msra.mxu0 0
  %4295 = vmatprep.subr.bf16.mxu0 0
  %4296 = vmatpush2.bf16.msra.mxu0 0
  %4297 = vmatprep.subr.bf16.mxu0 0
  %4298 = vmatpush2.bf16.msra.mxu0 0
  %4299 = vmatprep.mubr.bf16.mxu0 0
  %4300 = vmatmul.mubr.bf16.gmra.mxu0 %v4225
  %v4301 = vpop.f32.mrf.mxu0
  %v4302 = vadd.f32 0.0, %v4301
  %v4303 = vpop.f32.mrf.mxu0
  %v4304 = vadd.f32 0.0, %v4303
  %v4305 = vpop.f32.mrf.mxu0
  %v4306 = vpop.f32.mrf.mxu0
  %4307 = vdwg.mxu0
  %v4308 = vadd.f32 %v4221, %v4261
  %v4309 = vadd.f32 %v4222, %v4263
  %v4310 = vadd.f32 %v4223, %v4302
  %v4311 = vadd.f32 %v4224, %v4304
  %v4312 = vxor.u32 %v4308, 2147483648
  %v4313 = vxor.u32 %v4309, 2147483648
  %v4314 = vxor.u32 %v4310, 2147483648
  %v4315 = vmul.f32 %v4312, 1.442695
  %v4316 = vpow.pop %v4315
  %v4317 = vmul.f32 %v4313, 1.442695
  %v4318 = vpow.pop %v4317
  %v4319 = vmul.f32 %v4314, 1.442695
  %v4320 = vpow.pop %v4319
  %v4321 = vadd.f32 %v4316, 1.0
  %v4322 = vadd.f32 %v4318, 1.0
  %v4323 = vadd.f32 %v4320, 1.0
  %v4324 = vrcp.pop %v4321
  %v4325 = vmul.f32 1.0, %v4324
  %v4326 = vrcp.pop %v4322
  %v4327 = vmul.f32 1.0, %v4326
  %v4328 = vrcp.pop %v4323
  %v4329 = vmul.f32 1.0, %v4328
  %v4330 = vtanh.pop %v4311
  %v4331 = vmul.f32 %v4327, %v4218
  %v4332 = vmul.f32 %v4325, %v4330
  %v4333 = vadd.f32 %v4331, %v4332
  %v4334 = vtanh.pop %v4333
  %v4335 = vmul.f32 %v4329, %v4334
  %v4336 = vld [vmem:[#allocation2 + $0xe0] sm:$0xff]
  %v4337 = vld [vmem:[#allocation2 + $0xe8] sm:$0xff]
  %v4338 = vld [vmem:[#allocation2 + $0xf0] sm:$0xff]
  %v4339 = vld [vmem:[#allocation2 + $0xf8] sm:$0xff]
  %v4340 = vpack.c.bf16 %v4335, %v4335
  %4341 = vmatprep.subr.bf16.mxu0 %v3501
  %4342 = vmatpush1.bf16.msra.mxu0 %v3500
  %4343 = vmatprep.subr.bf16.mxu0 %v3497
  %4344 = vmatpush1.bf16.msra.mxu0 %v3496
  %4345 = vmatprep.subr.bf16.mxu0 %v3493
  %4346 = vmatpush1.bf16.msra.mxu0 %v3492
  %4347 = vmatprep.subr.bf16.mxu0 %v3489
  %4348 = vmatpush1.bf16.msra.mxu0 %v3488
  %4349 = vmatprep.subr.bf16.mxu0 %v3485
  %4350 = vmatpush1.bf16.msra.mxu0 %v3484
  %4351 = vmatprep.subr.bf16.mxu0 %v3481
  %4352 = vmatpush1.bf16.msra.mxu0 %v3480
  %4353 = vmatprep.subr.bf16.mxu0 %v3477
  %4354 = vmatpush1.bf16.msra.mxu0 %v3476
  %4355 = vmatprep.subr.bf16.mxu0 %v3473
  %4356 = vmatpush1.bf16.msra.mxu0 %v3472
  %4357 = vmatprep.subr.bf16.mxu0 0
  %4358 = vmatpush2.bf16.msra.mxu0 0
  %4359 = vmatprep.subr.bf16.mxu0 0
  %4360 = vmatpush2.bf16.msra.mxu0 0
  %4361 = vmatprep.subr.bf16.mxu0 0
  %4362 = vmatpush2.bf16.msra.mxu0 0
  %4363 = vmatprep.subr.bf16.mxu0 0
  %4364 = vmatpush2.bf16.msra.mxu0 0
  %4365 = vmatprep.subr.bf16.mxu0 0
  %4366 = vmatpush2.bf16.msra.mxu0 0
  %4367 = vmatprep.subr.bf16.mxu0 0
  %4368 = vmatpush2.bf16.msra.mxu0 0
  %4369 = vmatprep.subr.bf16.mxu0 0
  %4370 = vmatpush2.bf16.msra.mxu0 0
  %4371 = vmatprep.subr.bf16.mxu0 0
  %4372 = vmatpush2.bf16.msra.mxu0 0
  %4373 = vmatprep.mubr.bf16.mxu0 0
  %4374 = vmatmul.mubr.bf16.gmra.mxu0 %v4340
  %v4375 = vpop.f32.mrf.mxu0
  %v4376 = vadd.f32 0.0, %v4375
  %v4377 = vpop.f32.mrf.mxu0
  %v4378 = vadd.f32 0.0, %v4377
  %v4379 = vpop.f32.mrf.mxu0
  %v4380 = vpop.f32.mrf.mxu0
  %4381 = vdwg.mxu0
  %4382 = vmatprep.subr.bf16.mxu0 %v3503
  %4383 = vmatpush1.bf16.msra.mxu0 %v3502
  %4384 = vmatprep.subr.bf16.mxu0 %v3499
  %4385 = vmatpush1.bf16.msra.mxu0 %v3498
  %4386 = vmatprep.subr.bf16.mxu0 %v3495
  %4387 = vmatpush1.bf16.msra.mxu0 %v3494
  %4388 = vmatprep.subr.bf16.mxu0 %v3491
  %4389 = vmatpush1.bf16.msra.mxu0 %v3490
  %4390 = vmatprep.subr.bf16.mxu0 %v3487
  %4391 = vmatpush1.bf16.msra.mxu0 %v3486
  %4392 = vmatprep.subr.bf16.mxu0 %v3483
  %4393 = vmatpush1.bf16.msra.mxu0 %v3482
  %4394 = vmatprep.subr.bf16.mxu0 %v3479
  %4395 = vmatpush1.bf16.msra.mxu0 %v3478
  %4396 = vmatprep.subr.bf16.mxu0 %v3475
  %4397 = vmatpush1.bf16.msra.mxu0 %v3474
  %4398 = vmatprep.subr.bf16.mxu0 0
  %4399 = vmatpush2.bf16.msra.mxu0 0
  %4400 = vmatprep.subr.bf16.mxu0 0
  %4401 = vmatpush2.bf16.msra.mxu0 0
  %4402 = vmatprep.subr.bf16.mxu0 0
  %4403 = vmatpush2.bf16.msra.mxu0 0
  %4404 = vmatprep.subr.bf16.mxu0 0
  %4405 = vmatpush2.bf16.msra.mxu0 0
  %4406 = vmatprep.subr.bf16.mxu0 0
  %4407 = vmatpush2.bf16.msra.mxu0 0
  %4408 = vmatprep.subr.bf16.mxu0 0
  %4409 = vmatpush2.bf16.msra.mxu0 0
  %4410 = vmatprep.subr.bf16.mxu0 0
  %4411 = vmatpush2.bf16.msra.mxu0 0
  %4412 = vmatprep.subr.bf16.mxu0 0
  %4413 = vmatpush2.bf16.msra.mxu0 0
  %4414 = vmatprep.mubr.bf16.mxu0 0
  %4415 = vmatmul.mubr.bf16.gmra.mxu0 %v4340
  %v4416 = vpop.f32.mrf.mxu0
  %v4417 = vadd.f32 0.0, %v4416
  %v4418 = vpop.f32.mrf.mxu0
  %v4419 = vadd.f32 0.0, %v4418
  %v4420 = vpop.f32.mrf.mxu0
  %v4421 = vpop.f32.mrf.mxu0
  %4422 = vdwg.mxu0
  %v4423 = vadd.f32 %v4336, %v4376
  %v4424 = vadd.f32 %v4337, %v4378
  %v4425 = vadd.f32 %v4338, %v4417
  %v4426 = vadd.f32 %v4339, %v4419
  %v4427 = vxor.u32 %v4423, 2147483648
  %v4428 = vxor.u32 %v4424, 2147483648
  %v4429 = vxor.u32 %v4425, 2147483648
  %v4430 = vmul.f32 %v4427, 1.442695
  %v4431 = vpow.pop %v4430
  %v4432 = vmul.f32 %v4428, 1.442695
  %v4433 = vpow.pop %v4432
  %v4434 = vmul.f32 %v4429, 1.442695
  %v4435 = vpow.pop %v4434
  %v4436 = vadd.f32 %v4431, 1.0
  %v4437 = vadd.f32 %v4433, 1.0
  %v4438 = vadd.f32 %v4435, 1.0
  %v4439 = vrcp.pop %v4436
  %v4440 = vmul.f32 1.0, %v4439
  %v4441 = vrcp.pop %v4437
  %v4442 = vmul.f32 1.0, %v4441
  %v4443 = vrcp.pop %v4438
  %v4444 = vmul.f32 1.0, %v4443
  %v4445 = vtanh.pop %v4426
  %v4446 = vmul.f32 %v4442, %v4333
  %v4447 = vmul.f32 %v4440, %v4445
  %v4448 = vadd.f32 %v4446, %v4447
  %v4449 = vtanh.pop %v4448
  %v4450 = vmul.f32 %v4444, %v4449
  %4451 = vst [vmem:[#allocation5] sm:$0xff] %v4450
  %4452 = vst [vmem:[#allocation6] sm:$0xff] %v4448
  // Predicated region
  $region42: #{lstm_model_forward.1} parent=0 // pred_check
    %p4453 = pneg %p33
  $region43: #{lstm_model_forward.1} parent=0 // pred_check_branch
    %4455 = sbr.rel (%p4453) target = $region45
  $region44: #{lstm_model_forward.1} parent=0 // pred_region
    %v4456 = vld [vmem:[#allocation5] sm:$0xff]
    %v4457 = vpack.c.bf16 %v4456, %v4456
    %v4458 = vld [vmem:[%s7] sm:$0xf]
    %v4459 = vld [vmem:[%s7 + $0x4] sm:$0xf]
    %v4460 = vld [vmem:[%s7 + $0x8] sm:$0xf]
    %v4461 = vld [vmem:[%s7 + $0xc] sm:$0xf]
    %v4462 = vld [vmem:[%s7 + $0x10] sm:$0xf]
    %v4463 = vld [vmem:[%s7 + $0x14] sm:$0xf]
    %v4464 = vld [vmem:[%s7 + $0x18] sm:$0xf]
    %v4465 = vld [vmem:[%s7 + $0x1c] sm:$0xf]
    %v4466 = vld [vmem:[%s7 + $0x20] sm:$0xf]
    %v4467 = vld [vmem:[%s7 + $0x24] sm:$0xf]
    %v4468 = vld [vmem:[%s7 + $0x28] sm:$0xf]
    %v4469 = vld [vmem:[%s7 + $0x2c] sm:$0xf]
    %v4470 = vld [vmem:[%s7 + $0x30] sm:$0xf]
    %v4471 = vld [vmem:[%s7 + $0x34] sm:$0xf]
    %v4472 = vld [vmem:[%s7 + $0x38] sm:$0xf]
    %v4473 = vld [vmem:[%s7 + $0x3c] sm:$0xf]
    %v4474 = vld [vmem:[%s8] sm:$0x1]
    %v4476 = vlaneseq
    %v4477 = vshrl.u32 %v4476, 7
    %v4478 = vsub.s32 0, %v4477
    %v4479 = vrot.slane %v4474, %v4478
    %v4497 = vunpack.c.l.b16 %v4458
    %v4498 = vunpack.c.l.b16 %v4459
    %v4499 = vunpack.c.l.b16 %v4460
    %v4500 = vunpack.c.l.b16 %v4461
    %v4501 = vunpack.c.l.b16 %v4462
    %v4502 = vunpack.c.l.b16 %v4463
    %v4503 = vunpack.c.l.b16 %v4464
    %v4504 = vunpack.c.l.b16 %v4465
    %v4505 = vunpack.c.l.b16 %v4466
    %v4506 = vunpack.c.l.b16 %v4467
    %v4507 = vunpack.c.l.b16 %v4468
    %v4508 = vunpack.c.l.b16 %v4469
    %v4509 = vunpack.c.l.b16 %v4470
    %v4510 = vunpack.c.l.b16 %v4471
    %v4511 = vunpack.c.l.b16 %v4472
    %v4512 = vunpack.c.l.b16 %v4473
    %v4513 = vpack.c.b16 %v4498, %v4497
    %v4514 = vpack.c.b16 %v4500, %v4499
    %v4515 = vpack.c.b16 %v4502, %v4501
    %v4516 = vpack.c.b16 %v4504, %v4503
    %v4517 = vpack.c.b16 %v4506, %v4505
    %v4518 = vpack.c.b16 %v4508, %v4507
    %v4519 = vpack.c.b16 %v4510, %v4509
    %v4520 = vpack.c.b16 %v4512, %v4511
    %4529 = vmatprep.subr.bf16.mxu0 0
    %4530 = vmatpush1.bf16.msra.mxu0 %v4520
    %4531 = vmatprep.subr.bf16.mxu0 0
    %4532 = vmatpush1.bf16.msra.mxu0 %v4519
    %4533 = vmatprep.subr.bf16.mxu0 0
    %4534 = vmatpush1.bf16.msra.mxu0 %v4518
    %4535 = vmatprep.subr.bf16.mxu0 0
    %4536 = vmatpush1.bf16.msra.mxu0 %v4517
    %4537 = vmatprep.subr.bf16.mxu0 0
    %4538 = vmatpush1.bf16.msra.mxu0 %v4516
    %4539 = vmatprep.subr.bf16.mxu0 0
    %4540 = vmatpush1.bf16.msra.mxu0 %v4515
    %4541 = vmatprep.subr.bf16.mxu0 0
    %4542 = vmatpush1.bf16.msra.mxu0 %v4514
    %4543 = vmatprep.subr.bf16.mxu0 0
    %4544 = vmatpush1.bf16.msra.mxu0 %v4513
    %4545 = vmatprep.subr.bf16.mxu0 0
    %4546 = vmatpush2.bf16.msra.mxu0 0
    %4547 = vmatprep.subr.bf16.mxu0 0
    %4548 = vmatpush2.bf16.msra.mxu0 0
    %4549 = vmatprep.subr.bf16.mxu0 0
    %4550 = vmatpush2.bf16.msra.mxu0 0
    %4551 = vmatprep.subr.bf16.mxu0 0
    %4552 = vmatpush2.bf16.msra.mxu0 0
    %4553 = vmatprep.subr.bf16.mxu0 0
    %4554 = vmatpush2.bf16.msra.mxu0 0
    %4555 = vmatprep.subr.bf16.mxu0 0
    %4556 = vmatpush2.bf16.msra.mxu0 0
    %4557 = vmatprep.subr.bf16.mxu0 0
    %4558 = vmatpush2.bf16.msra.mxu0 0
    %4559 = vmatprep.subr.bf16.mxu0 0
    %4560 = vmatpush2.bf16.msra.mxu0 0
    %4561 = vmatprep.mubr.bf16.mxu0 0
    %4562 = vmatmul.mubr.bf16.gmra.mxu0 %v4457
    %v4563 = vpop.f32.mrf.mxu0
    %v4564 = vadd.f32 %v4479, %v4563
    %v4565 = vpop.f32.mrf.mxu0
    %v4566 = vpop.f32.mrf.mxu0
    %v4567 = vpop.f32.mrf.mxu0
    %4568 = vdwg.mxu0
    %4569 = vst [vmem:[%s9] sm:$0xff] %v4564
  $region45: #{lstm_model_forward.1} parent=0 // pred_fallthru
    _
  // Predicated region
  $region46: #{lstm_model_forward.1} parent=0 // pred_check
    _
  $region47: #{lstm_model_forward.1} parent=0 // pred_check_branch
    %4571 = sbr.rel (0) target = $region49
  $region48: #{lstm_model_forward.1} parent=0 // pred_region
    _
  $region49: #{lstm_model_forward.1} parent=0 // pred_fallthru
    _
  // Predicated region
  $region50: #{lstm_model_forward.1} parent=0 // pred_check
    _
  $region51: #{lstm_model_forward.1} parent=0 // pred_check_branch
    %4573 = sbr.rel (0) target = $region53
  $region52: #{lstm_model_forward.1} parent=0 // pred_region
    _
  $region53: #{lstm_model_forward.1} parent=0 // pred_fallthru
    _

</llo_original>
